<compile_context>
chip_gen: v6e
topology: v6e:2x2x1
jax: 0.10.0
libtpu: 0.0.40
codegen_flags: <defaults>
</compile_context>

<pallas_src>
import math
import jax
import jax.numpy as jnp
from jax.experimental import pallas as pl
from jax.experimental.pallas import tpu as pltpu

# ---------------- small-shape config (PyTorch defaults in comments) ----------------
BATCH         = 1                      # videos
SEG           = 4                      # segments per video            (default 12)
IMG           = 32                     # frame H = W
PATCH         = 8                      # backbone stand-in patch size
GRID_HW       = IMG // PATCH           # 4x4 feature map (resnet34 -> H/32 x W/32)
HW            = GRID_HW * GRID_HW      # spatial positions per frame
IMG_DIM       = 64                     # feature channels              (default 512)
HIDDEN        = 32                     # SRU hidden size               (default 1024)
NUM_CLASS     = 51                     # dataset == 'hmdb'
NUM_CLASS_PAD = 128                    # lane-dense classifier width (sliced to 51)
MIP           = max(8, IMG_DIM // 32)  # CoordAtt bottleneck (reduction=32)
N_FRAMES      = BATCH * SEG
TB            = SEG * BATCH            # time-major rows fed to the SRU
REC_DIM       = 2 * IMG_DIM            # 128: recurrent input width (avg branch zero-padded)
# TODO(synk): exact rescale constant of the external sru package approximated.
SRU_SCALE_X = (1.0 + math.exp(0.0) * 2.0) ** 0.5


# ======================= kernel 1: the whole spatial path in one call =======================
def _spatial_kernel(patches_ref, pw_ref, pool_ref, eh_ref, ew_ref,
                    w1_ref, b1_ref, bns_ref, bnb_ref, whw_ref, bhw_ref,
                    sones_ref, slrn_ref, o_ref):
    C = IMG_DIM
    # ---- backbone stand-in: strided-conv patch embedding as a matmul + ReLU ----
    # TODO(synk): stands in for the pretrained torchvision resnet34 trunk.
    feat = jax.nn.relu(jnp.dot(patches_ref[...].astype(jnp.bfloat16), pw_ref[...],
                               preferred_element_type=jnp.float32))        # (N*HW, C) f32
    fb = feat.astype(jnp.bfloat16)

    # ---- CoordAtt for ALL frames at once ----
    # pool_ref is a constant averaging matrix producing torch.cat([x_h, x_w], dim=2)
    # already concatenated: per frame rows 0..H-1 = W-mean, rows H..H+W-1 = H-mean.
    y = jnp.dot(pool_ref[...], fb, preferred_element_type=jnp.float32)     # (N*(H+W), C)
    t = jnp.dot(y.astype(jnp.bfloat16), w1_ref[...],
                preferred_element_type=jnp.float32) + b1_ref[...]          # 1x1 conv
    t = t * bns_ref[...] + bnb_ref[...]                                    # eval BatchNorm
    t = t * jnp.clip(t + 3.0, 0.0, 6.0) * (1.0 / 6.0)                      # h_swish
    # conv_h / conv_w stacked into one lane-dense (MIP, 2C)=(8,128) gate matmul.
    g = jax.nn.sigmoid(jnp.dot(t.astype(jnp.bfloat16), whw_ref[...],
                               preferred_element_type=jnp.float32) + bhw_ref[...])
    gb = g.astype(jnp.bfloat16)                                            # (N*(H+W), 2C)
    # Scatter (n,h)- / (n,w)-indexed gates back to the (n,h,w) grid with 0/1 matmuls.
    a_h = jnp.dot(eh_ref[...], gb[:, :C], preferred_element_type=jnp.float32)
    a_w = jnp.dot(ew_ref[...], gb[:, C:], preferred_element_type=jnp.float32)
    # Spatial_Net.forward: output = co(output) * output
    # and CoordAtt returns identity*a_w*a_h  =>  feat^2 * a_h * a_w (square is intentional).
    sp = feat * a_h * a_w * feat                                           # (N*HW, C) f32
    spb = sp.astype(jnp.bfloat16)

    # ---- three temporal-attention poolers (stand-ins), rows already time-major ----
    # TODO(synk): Attention.Attention_average / Attentnion_auto / Attention_learned
    # source unavailable; stand-ins = uniform / feature-softmax / learned spatial pooling.
    sones = sones_ref[...]                                                 # (T*B, N*HW) bf16
    avg = jnp.dot(sones, spb, preferred_element_type=jnp.float32) * (1.0 / HW)
    lrn = jnp.dot(slrn_ref[...], spb, preferred_element_type=jnp.float32)
    # per-frame softmax over channel-mean scores; a single GLOBAL shift keeps it exact.
    s = jnp.mean(sp, axis=-1, keepdims=True)                               # (N*HW, 1)
    e = jnp.exp(s - jnp.max(s, keepdims=True))
    eb = e.astype(jnp.bfloat16)
    num = jnp.dot(sones, spb * eb, preferred_element_type=jnp.float32)     # (T*B, C)
    den = jnp.dot(sones, eb, preferred_element_type=jnp.float32)           # (T*B, 1)
    auto = num / den

    # ---- stacked, concat-ready recurrent inputs; every store is 128 lanes wide ----
    zeros = jnp.zeros_like(avg)
    o_ref[0] = jnp.concatenate([avg, zeros], axis=-1)   # reason_average (zero-padded to 2C)
    o_ref[1] = jnp.concatenate([avg, auto], axis=-1)    # reason_auto  = cat([avg, auto])
    o_ref[2] = jnp.concatenate([avg, lrn], axis=-1)     # reason_learned = cat([avg, learned])


def spatial_fused(patches, p):
    # Whole spatial path in ONE single-block call; every operand fits VMEM at these shapes.
    return pl.pallas_call(
        _spatial_kernel,
        out_shape=jax.ShapeDtypeStruct((3, TB, REC_DIM), jnp.float32),
    )(patches, p['patch_w'], p['ca_pool'], p['ca_eh'], p['ca_ew'],
      p['ca_w1'], p['ca_b1'], p['ca_bns'], p['ca_bnb'],
      p['ca_whw'], p['ca_bhw'], p['pool_ones'], p['pool_lrn'])


# ======================= kernel 2: all 3 Recurrent_model branches in one call ==========
def _recurrent_kernel(x_ref, w0_ref, w1_ref, w2_ref, vb_ref, fcw_ref, fcb_ref, o_ref):
    T, B, H = SEG, BATCH, HIDDEN
    x = x_ref[0]                          # (T*B, REC_DIM) f32, time-major rows
    vb = vb_ref[0]                        # (12, H) f32: per layer [vf, vr, bf, br]

    def sru_layer(inp, w_ref, p0, has_res):
        """One SRU layer; gates and cell state live entirely in vregs (no scratch)."""
        ib = inp.astype(jnp.bfloat16)
        xt = jnp.dot(ib, w_ref[0, 0], preferred_element_type=jnp.float32)
        uf = jnp.dot(ib, w_ref[0, 1], preferred_element_type=jnp.float32)
        ur = jnp.dot(ib, w_ref[0, 2], preferred_element_type=jnp.float32)
        res = (jnp.dot(ib, w_ref[0, 3], preferred_element_type=jnp.float32)
               if has_res else inp)       # identity highway when d_in == hidden
        vf, vr = vb[p0 + 0:p0 + 1], vb[p0 + 1:p0 + 2]
        bf, br = vb[p0 + 2:p0 + 3], vb[p0 + 3:p0 + 4]
        c = jnp.zeros((B, H), jnp.float32)
        hs = []
        for t in range(T):                # T static & tiny: fully unrolled recurrence
            lo = t * B
            c_prev = c
            f = jax.nn.sigmoid(uf[lo:lo + B] + vf * c_prev + bf)
            c = f * c_prev + (1.0 - f) * xt[lo:lo + B]
            r = jax.nn.sigmoid(ur[lo:lo + B] + vr * c_prev + br)
            hs.append(r * c + (1.0 - r) * res[lo:lo + B] * SRU_SCALE_X)
        return hs

    h = jnp.concatenate(sru_layer(x, w0_ref, 0, True), axis=0)    # layer 0 (proj residual)
    h = jnp.concatenate(sru_layer(h, w1_ref, 4, False), axis=0)   # layer 1
    hs = sru_layer(h, w2_ref, 8, False)                           # layer 2 (kept in vregs)
    # classifier + time mean: fc is linear and eval dropout = identity, so
    # mean_t fc(h_t) == fc(mean_t h_t) — one (B,H)@(H,128) matmul, one lane-dense store.
    h_mean = sum(hs) * (1.0 / T)                                  # (B, H)
    logits = jnp.dot(h_mean.astype(jnp.bfloat16), fcw_ref[0],
                     preferred_element_type=jnp.float32) + fcb_ref[0]
    o_ref[0] = logits                                             # (B, NUM_CLASS_PAD)


def recurrent_fused(x_rec, rp):
    """All 3 Recurrent_model branches (3 fused SRU layers + fc + time-mean each).
    grid=(3,) "parallel": v7x's two TensorCores split the branches; on v5e/v6e the
    grid is a 3-step loop inside the same launch."""
    H, D = HIDDEN, REC_DIM
    return pl.pallas_call(
        _recurrent_kernel,
        out_shape=jax.ShapeDtypeStruct((3, BATCH, NUM_CLASS_PAD), jnp.float32),
        grid=(3,),
        in_specs=[
            pl.BlockSpec((1, TB, D), lambda i: (i, 0, 0)),
            pl.BlockSpec((1, 4, D, H), lambda i: (i, 0, 0, 0)),
            pl.BlockSpec((1, 3, H, H), lambda i: (i, 0, 0, 0)),
            pl.BlockSpec((1, 3, H, H), lambda i: (i, 0, 0, 0)),
            pl.BlockSpec((1, 12, H), lambda i: (i, 0, 0)),
            pl.BlockSpec((1, H, NUM_CLASS_PAD), lambda i: (i, 0, 0)),
            pl.BlockSpec((1, 1, NUM_CLASS_PAD), lambda i: (i, 0, 0)),
        ],
        out_specs=pl.BlockSpec((1, BATCH, NUM_CLASS_PAD), lambda i: (i, 0, 0)),
        compiler_params=pltpu.CompilerParams(dimension_semantics=("parallel",)),
        # TODO(synk): at PyTorch default sizes (img_dim=512, hidden=1024) tile the
        # d_in/K axes with BlockSpecs and raise vmem_limit_bytes (64 MiB VMEM on v7x,
        # 16/32 MiB scoped defaults on v5e/v6e) instead of single-block weights.
    )(x_rec, rp['W0'], rp['W1'], rp['W2'], rp['vb'], rp['fc_w'], rp['fc_b'])


# ======================= Spatial_TemporalNet forward =======================
def spatial_temporal_forward(params, x):
    """x: (BATCH*SEG, 3, IMG, IMG) float32, NCHW (PyTorch convention)."""
    N = x.shape[0]
    # im2col for the backbone stand-in (this is the only wrapper-side data prep).
    x_nhwc = jnp.transpose(x, (0, 2, 3, 1))
    patches = x_nhwc.reshape(N, GRID_HW, PATCH, GRID_HW, PATCH, 3)
    patches = patches.transpose(0, 1, 3, 2, 4, 5).reshape(N * HW, PATCH * PATCH * 3)

    # Spatial_Net + the three attention poolers + per-branch concat: one kernel.
    rec_in = spatial_fused(patches, params)            # (3, T*B, 2*IMG_DIM)

    # The three Recurrent_model branches (SRU x3 + fc + time mean): one kernel.
    logits = recurrent_fused(rec_in, params['rec'])    # (3, BATCH, NUM_CLASS_PAD)

    out_avg     = logits[0, :, :NUM_CLASS]
    out_auto    = logits[1, :, :NUM_CLASS]
    out_learned = logits[2, :, :NUM_CLASS]
    out = (out_avg + out_auto + out_learned) / 3.0
    return [out_avg, out_auto, out_learned, out]


# ======================= parameter init (deterministic, synthetic) =======================
def _init(key, shape, scale=0.1):
    return (scale * jax.random.normal(key, shape)).astype(jnp.float32)


def _coordatt_constants(num_frames, fh, fw):
    """Constant pooling / gate-scatter matrices for the batched CoordAtt (exact in bf16)."""
    p = jnp.arange(num_frames * fh * fw)
    ni = p // (fh * fw)
    hi = (p // fw) % fh
    wi = p % fw
    n_pooled = num_frames * (fh + fw)
    q_h = ni * (fh + fw) + hi           # pooled row holding x_h[n, hi]
    q_w = ni * (fh + fw) + fh + wi      # pooled row holding x_w[n, wi]
    eh = jax.nn.one_hot(q_h, n_pooled, dtype=jnp.float32)   # (N*H*W, N*(H+W))
    ew = jax.nn.one_hot(q_w, n_pooled, dtype=jnp.float32)
    pool = (eh / fw + ew / fh).T                             # (N*(H+W), N*H*W)
    return (pool.astype(jnp.bfloat16),
            eh.astype(jnp.bfloat16),
            ew.astype(jnp.bfloat16))


def _pooler_constants(batch, seg, hw, lmap):
    """Frame-selection matrices whose rows are already in SRU time-major order (t*B+b)."""
    r = jnp.arange(seg * batch)
    s, b = r // batch, r % batch
    n = b * seg + s                                          # frame feeding time-major row r
    frame_of_col = jnp.arange(batch * seg * hw) // hw
    sones = (n[:, None] == frame_of_col[None, :]).astype(jnp.float32)   # (T*B, N*HW)
    slrn = sones * jnp.tile(lmap, batch * seg)[None, :]
    return sones.astype(jnp.bfloat16), slrn.astype(jnp.bfloat16)


def init_recurrent_branch(key, in_dim, hidden, num_class):
    """One Recurrent_model: SRU(in_dim, hidden, num_layers=3) + Linear(hidden, num_class)."""
    ks = jax.random.split(key, 26)
    layers, d_in, idx = [], in_dim, 0
    for _ in range(3):
        n_gates = 4 if d_in != hidden else 3      # 4th gate = residual projection
        W = jnp.stack([_init(ks[idx + g], (d_in, hidden)) for g in range(n_gates)], 0)
        layers.append({'W':  W.astype(jnp.bfloat16),
                       'vf': _init(ks[idx + 4], (1, hidden)),
                       'vr': _init(ks[idx + 5], (1, hidden)),
                       'bf': _init(ks[idx + 6], (1, hidden)),
                       'br': _init(ks[idx + 7], (1, hidden))})
        idx += 8
        d_in = hidden
    fc_w = jnp.zeros((hidden, NUM_CLASS_PAD), jnp.float32)
    fc_w = fc_w.at[:, :num_class].set(_init(ks[24], (hidden, num_class)))
    fc_b = jnp.zeros((1, NUM_CLASS_PAD), jnp.float32)
    fc_b = fc_b.at[:, :num_class].set(_init(ks[25], (1, num_class)))
    return {'layers': layers, 'fc_w': fc_w.astype(jnp.bfloat16), 'fc_b': fc_b}


def stack_recurrent_branches(branches, d_pad, hidden):
    """Stack the 3 branches' weights along a leading axis for the grid=(3,) kernel."""
    def pad_w0(W):                                   # (4, d_in, H) -> (4, d_pad, H), zero rows
        g, d_in, h = W.shape
        if d_in == d_pad:
            return W
        return jnp.concatenate([W, jnp.zeros((g, d_pad - d_in, h), W.dtype)], axis=1)

    W0 = jnp.stack([pad_w0(b['layers'][0]['W']) for b in branches], 0)      # (3,4,d_pad,H) bf16
    W1 = jnp.stack([b['layers'][1]['W'] for b in branches], 0)              # (3,3,H,H) bf16
    W2 = jnp.stack([b['layers'][2]['W'] for b in branches], 0)              # (3,3,H,H) bf16
    vb = jnp.stack([jnp.concatenate(
        [jnp.concatenate([l['vf'], l['vr'], l['bf'], l['br']], 0) for l in b['layers']], 0)
        for b in branches], 0)                                              # (3,12,H) f32
    fcw = jnp.stack([b['fc_w'] for b in branches], 0)                       # (3,H,128) bf16
    fcb = jnp.stack([b['fc_b'] for b in branches], 0)                       # (3,1,128) f32
    return {'W0': W0, 'W1': W1, 'W2': W2, 'vb': vb, 'fc_w': fcw, 'fc_b': fcb}


def init_params(key):
    ks = jax.random.split(key, 16)
    p = {}
    # TODO(synk): stand-in for the pretrained torchvision resnet34 backbone.
    p['patch_w'] = _init(ks[0], (PATCH * PATCH * 3, IMG_DIM), 0.05).astype(jnp.bfloat16)
    # CoordAtt(IMG_DIM, IMG_DIM)
    p['ca_w1'] = _init(ks[1], (IMG_DIM, MIP)).astype(jnp.bfloat16)
    p['ca_b1'] = _init(ks[2], (1, MIP))
    gamma = 1.0 + _init(ks[3], (1, MIP))
    beta = _init(ks[4], (1, MIP))
    rmean = _init(ks[5], (1, MIP))
    rvar = jnp.abs(_init(ks[6], (1, MIP))) + 1.0
    scale = gamma / jnp.sqrt(rvar + 1e-5)            # fused eval-mode BatchNorm
    p['ca_bns'] = scale
    p['ca_bnb'] = beta - rmean * scale
    # conv_h / conv_w stacked into one lane-dense (MIP, 2*IMG_DIM) gate weight
    wh, bh = _init(ks[7], (MIP, IMG_DIM)), _init(ks[8], (1, IMG_DIM))
    ww, bw = _init(ks[9], (MIP, IMG_DIM)), _init(ks[10], (1, IMG_DIM))
    p['ca_whw'] = jnp.concatenate([wh, ww], axis=1).astype(jnp.bfloat16)
    p['ca_bhw'] = jnp.concatenate([bh, bw], axis=1)
    p['ca_pool'], p['ca_eh'], p['ca_ew'] = _coordatt_constants(N_FRAMES, GRID_HW, GRID_HW)
    # TODO(synk): learned spatial map stands in for Attention.Attention_learned.
    lmap = jax.nn.softmax(_init(ks[11], (HW,), 1.0))
    p['pool_ones'], p['pool_lrn'] = _pooler_constants(BATCH, SEG, HW, lmap)
    branches = [init_recurrent_branch(ks[12], IMG_DIM, HIDDEN, NUM_CLASS),       # reason_average
                init_recurrent_branch(ks[13], IMG_DIM * 2, HIDDEN, NUM_CLASS),   # reason_auto
                init_recurrent_branch(ks[14], IMG_DIM * 2, HIDDEN, NUM_CLASS)]   # reason_learned
    p['rec'] = stack_recurrent_branches(branches, REC_DIM, HIDDEN)
    return p


if __name__ == "__main__":
    key = jax.random.PRNGKey(0)
    pkey, xkey = jax.random.split(key)
    params = init_params(pkey)
    x = jax.random.normal(xkey, (BATCH * SEG, 3, IMG, IMG), dtype=jnp.float32)

    fwd = jax.jit(spatial_temporal_forward)
    outs = jax.block_until_ready(fwd(params, x))

    assert len(outs) == 4
    for o in outs:
        assert o.shape == (BATCH, NUM_CLASS), o.shape
        assert bool(jnp.all(jnp.isfinite(o)))
    print("KERNEL_OK")
</pallas_src>

<mosaic_0001>
module attributes {stable_mosaic.version = 11 : i64} {
  func.func @_spatial_kernel(%arg0: memref<64x192xf32, #tpu.memory_space<vmem>>, %arg1: memref<192x64xbf16, #tpu.memory_space<vmem>>, %arg2: memref<32x64xbf16, #tpu.memory_space<vmem>>, %arg3: memref<64x32xbf16, #tpu.memory_space<vmem>>, %arg4: memref<64x32xbf16, #tpu.memory_space<vmem>>, %arg5: memref<64x8xbf16, #tpu.memory_space<vmem>>, %arg6: memref<1x8xf32, #tpu.memory_space<vmem>>, %arg7: memref<1x8xf32, #tpu.memory_space<vmem>>, %arg8: memref<1x8xf32, #tpu.memory_space<vmem>>, %arg9: memref<8x128xbf16, #tpu.memory_space<vmem>>, %arg10: memref<1x128xf32, #tpu.memory_space<vmem>>, %arg11: memref<4x64xbf16, #tpu.memory_space<vmem>>, %arg12: memref<4x64xbf16, #tpu.memory_space<vmem>>, %arg13: memref<3x4x128xf32, #tpu.memory_space<vmem>>) attributes {dimension_semantics = [], scalar_prefetch = 0 : i64, scratch_operands = 0 : i64, tpu.core_type = #tpu.core_type<tc>} {
    %c0 = arith.constant 0 : index
    %c0_0 = arith.constant 0 : index
    %0 = vector.load %arg0[%c0, %c0_0] : memref<64x192xf32, #tpu.memory_space<vmem>>, vector<64x192xf32>
    %1 = arith.truncf %0 : vector<64x192xf32> to vector<64x192xbf16>
    %c0_1 = arith.constant 0 : index
    %c0_2 = arith.constant 0 : index
    %2 = vector.load %arg1[%c0_1, %c0_2] : memref<192x64xbf16, #tpu.memory_space<vmem>>, vector<192x64xbf16>
    %cst = arith.constant dense<0.000000e+00> : vector<64x64xf32>
    %3 = tpu.matmul %1, %2, %cst {dimension_numbers = #tpu.dot_dimension_numbers<[1], [0], [0], [1], [0, 0, 1, 1], [], []>} : vector<64x192xbf16>, vector<192x64xbf16>, vector<64x64xf32> -> vector<64x64xf32>
    %cst_3 = arith.constant 0.000000e+00 : f32
    %4 = vector.broadcast %cst_3 : f32 to vector<64x64xf32>
    %5 = arith.maximumf %3, %4 : vector<64x64xf32>
    %6 = arith.truncf %5 : vector<64x64xf32> to vector<64x64xbf16>
    %c0_4 = arith.constant 0 : index
    %c0_5 = arith.constant 0 : index
    %7 = vector.load %arg2[%c0_4, %c0_5] : memref<32x64xbf16, #tpu.memory_space<vmem>>, vector<32x64xbf16>
    %cst_6 = arith.constant dense<0.000000e+00> : vector<32x64xf32>
    %8 = tpu.matmul %7, %6, %cst_6 {dimension_numbers = #tpu.dot_dimension_numbers<[1], [0], [0], [1], [0, 0, 1, 1], [], []>} : vector<32x64xbf16>, vector<64x64xbf16>, vector<32x64xf32> -> vector<32x64xf32>
    %9 = arith.truncf %8 : vector<32x64xf32> to vector<32x64xbf16>
    %c0_7 = arith.constant 0 : index
    %c0_8 = arith.constant 0 : index
    %10 = vector.load %arg5[%c0_7, %c0_8] : memref<64x8xbf16, #tpu.memory_space<vmem>>, vector<64x8xbf16>
    %cst_9 = arith.constant dense<0.000000e+00> : vector<32x8xf32>
    %11 = tpu.matmul %9, %10, %cst_9 {dimension_numbers = #tpu.dot_dimension_numbers<[1], [0], [0], [1], [0, 0, 1, 1], [], []>} : vector<32x64xbf16>, vector<64x8xbf16>, vector<32x8xf32> -> vector<32x8xf32>
    %c0_10 = arith.constant 0 : index
    %c0_11 = arith.constant 0 : index
    %12 = vector.load %arg6[%c0_10, %c0_11] : memref<1x8xf32, #tpu.memory_space<vmem>>, vector<1x8xf32>
    %13 = vector.broadcast %12 : vector<1x8xf32> to vector<32x8xf32>
    %14 = arith.addf %11, %13 : vector<32x8xf32>
    %c0_12 = arith.constant 0 : index
    %c0_13 = arith.constant 0 : index
    %15 = vector.load %arg7[%c0_12, %c0_13] : memref<1x8xf32, #tpu.memory_space<vmem>>, vector<1x8xf32>
    %16 = vector.broadcast %15 : vector<1x8xf32> to vector<32x8xf32>
    %17 = arith.mulf %14, %16 : vector<32x8xf32>
    %c0_14 = arith.constant 0 : index
    %c0_15 = arith.constant 0 : index
    %18 = vector.load %arg8[%c0_14, %c0_15] : memref<1x8xf32, #tpu.memory_space<vmem>>, vector<1x8xf32>
    %19 = vector.broadcast %18 : vector<1x8xf32> to vector<32x8xf32>
    %20 = arith.addf %17, %19 : vector<32x8xf32>
    %cst_16 = arith.constant 3.000000e+00 : f32
    %21 = vector.broadcast %cst_16 : f32 to vector<32x8xf32>
    %22 = arith.addf %20, %21 : vector<32x8xf32>
    %cst_17 = arith.constant 0.000000e+00 : f32
    %cst_18 = arith.constant 6.000000e+00 : f32
    %23 = vector.broadcast %cst_17 : f32 to vector<32x8xf32>
    %24 = arith.maximumf %23, %22 : vector<32x8xf32>
    %25 = vector.broadcast %cst_18 : f32 to vector<32x8xf32>
    %26 = arith.minimumf %25, %24 : vector<32x8xf32>
    %27 = arith.mulf %20, %26 : vector<32x8xf32>
    %cst_19 = arith.constant 0.166666672 : f32
    %28 = vector.broadcast %cst_19 : f32 to vector<32x8xf32>
    %29 = arith.mulf %27, %28 : vector<32x8xf32>
    %30 = arith.truncf %29 : vector<32x8xf32> to vector<32x8xbf16>
    %c0_20 = arith.constant 0 : index
    %c0_21 = arith.constant 0 : index
    %31 = vector.load %arg9[%c0_20, %c0_21] : memref<8x128xbf16, #tpu.memory_space<vmem>>, vector<8x128xbf16>
    %cst_22 = arith.constant dense<0.000000e+00> : vector<32x128xf32>
    %32 = tpu.matmul %30, %31, %cst_22 {dimension_numbers = #tpu.dot_dimension_numbers<[1], [0], [0], [1], [0, 0, 1, 1], [], []>} : vector<32x8xbf16>, vector<8x128xbf16>, vector<32x128xf32> -> vector<32x128xf32>
    %c0_23 = arith.constant 0 : index
    %c0_24 = arith.constant 0 : index
    %33 = vector.load %arg10[%c0_23, %c0_24] : memref<1x128xf32, #tpu.memory_space<vmem>>, vector<1x128xf32>
    %34 = vector.broadcast %33 : vector<1x128xf32> to vector<32x128xf32>
    %35 = arith.addf %32, %34 : vector<32x128xf32>
    %36 = arith.negf %35 : vector<32x128xf32>
    %37 = math.exp %36 : vector<32x128xf32>
    %cst_25 = arith.constant 1.000000e+00 : f32
    %38 = vector.broadcast %cst_25 : f32 to vector<32x128xf32>
    %39 = arith.addf %38, %37 : vector<32x128xf32>
    %40 = arith.divf %38, %39 : vector<32x128xf32>
    %41 = arith.truncf %40 : vector<32x128xf32> to vector<32x128xbf16>
    %c0_26 = arith.constant 0 : index
    %c0_27 = arith.constant 0 : index
    %42 = vector.load %arg3[%c0_26, %c0_27] : memref<64x32xbf16, #tpu.memory_space<vmem>>, vector<64x32xbf16>
    %43 = vector.extract_strided_slice %41 {offsets = [0, 0], sizes = [32, 64], strides = [1, 1]} : vector<32x128xbf16> to vector<32x64xbf16>
    %cst_28 = arith.constant dense<0.000000e+00> : vector<64x64xf32>
    %44 = tpu.matmul %42, %43, %cst_28 {dimension_numbers = #tpu.dot_dimension_numbers<[1], [0], [0], [1], [0, 0, 1, 1], [], []>} : vector<64x32xbf16>, vector<32x64xbf16>, vector<64x64xf32> -> vector<64x64xf32>
    %c0_29 = arith.constant 0 : index
    %c0_30 = arith.constant 0 : index
    %45 = vector.load %arg4[%c0_29, %c0_30] : memref<64x32xbf16, #tpu.memory_space<vmem>>, vector<64x32xbf16>
    %46 = vector.extract_strided_slice %41 {offsets = [0, 64], sizes = [32, 64], strides = [1, 1]} : vector<32x128xbf16> to vector<32x64xbf16>
    %cst_31 = arith.constant dense<0.000000e+00> : vector<64x64xf32>
    %47 = tpu.matmul %45, %46, %cst_31 {dimension_numbers = #tpu.dot_dimension_numbers<[1], [0], [0], [1], [0, 0, 1, 1], [], []>} : vector<64x32xbf16>, vector<32x64xbf16>, vector<64x64xf32> -> vector<64x64xf32>
    %48 = arith.mulf %5, %44 : vector<64x64xf32>
    %49 = arith.mulf %48, %47 : vector<64x64xf32>
    %50 = arith.mulf %49, %5 : vector<64x64xf32>
    %51 = arith.truncf %50 : vector<64x64xf32> to vector<64x64xbf16>
    %c0_32 = arith.constant 0 : index
    %c0_33 = arith.constant 0 : index
    %52 = vector.load %arg11[%c0_32, %c0_33] : memref<4x64xbf16, #tpu.memory_space<vmem>>, vector<4x64xbf16>
    %cst_34 = arith.constant dense<0.000000e+00> : vector<4x64xf32>
    %53 = tpu.matmul %52, %51, %cst_34 {dimension_numbers = #tpu.dot_dimension_numbers<[1], [0], [0], [1], [0, 0, 1, 1], [], []>} : vector<4x64xbf16>, vector<64x64xbf16>, vector<4x64xf32> -> vector<4x64xf32>
    %cst_35 = arith.constant 6.250000e-02 : f32
    %54 = vector.broadcast %cst_35 : f32 to vector<4x64xf32>
    %55 = arith.mulf %53, %54 : vector<4x64xf32>
    %c0_36 = arith.constant 0 : index
    %c0_37 = arith.constant 0 : index
    %56 = vector.load %arg12[%c0_36, %c0_37] : memref<4x64xbf16, #tpu.memory_space<vmem>>, vector<4x64xbf16>
    %cst_38 = arith.constant dense<0.000000e+00> : vector<4x64xf32>
    %57 = tpu.matmul %56, %51, %cst_38 {dimension_numbers = #tpu.dot_dimension_numbers<[1], [0], [0], [1], [0, 0, 1, 1], [], []>} : vector<4x64xbf16>, vector<64x64xbf16>, vector<4x64xf32> -> vector<4x64xf32>
    %cst_39 = arith.constant dense<0.000000e+00> : vector<64xf32>
    %58 = vector.multi_reduction <add>, %50, %cst_39 [1] : vector<64x64xf32> to vector<64xf32>
    %59 = vector.shape_cast %58 : vector<64xf32> to vector<64x1xf32>
    %cst_40 = arith.constant 6.400000e+01 : f32
    %60 = vector.broadcast %cst_40 : f32 to vector<64x1xf32>
    %61 = arith.divf %59, %60 : vector<64x1xf32>
    %62 = vector.shape_cast %61 : vector<64x1xf32> to vector<1x64x1xf32>
    %cst_41 = arith.constant dense<0xFF800000> : vector<1xf32>
    %63 = vector.multi_reduction <maximumf>, %62, %cst_41 [1, 2] : vector<1x64x1xf32> to vector<1xf32>
    %64 = vector.shape_cast %63 : vector<1xf32> to vector<1x1x1xf32>
    %65 = vector.extract %64[0, 0, 0] : f32 from vector<1x1x1xf32>
    %66 = vector.broadcast %65 : f32 to vector<1x1xf32>
    %67 = vector.broadcast %66 : vector<1x1xf32> to vector<64x1xf32>
    %68 = arith.subf %61, %67 : vector<64x1xf32>
    %69 = math.exp %68 : vector<64x1xf32>
    %70 = arith.truncf %69 : vector<64x1xf32> to vector<64x1xbf16>
    %71 = vector.broadcast %70 : vector<64x1xbf16> to vector<64x64xbf16>
    %72 = arith.mulf %51, %71 : vector<64x64xbf16>
    %cst_42 = arith.constant dense<0.000000e+00> : vector<4x64xf32>
    %73 = tpu.matmul %52, %72, %cst_42 {dimension_numbers = #tpu.dot_dimension_numbers<[1], [0], [0], [1], [0, 0, 1, 1], [], []>} : vector<4x64xbf16>, vector<64x64xbf16>, vector<4x64xf32> -> vector<4x64xf32>
    %cst_43 = arith.constant dense<0.000000e+00> : vector<4x1xf32>
    %74 = tpu.matmul %52, %70, %cst_43 {dimension_numbers = #tpu.dot_dimension_numbers<[1], [0], [0], [1], [0, 0, 1, 1], [], []>} : vector<4x64xbf16>, vector<64x1xbf16>, vector<4x1xf32> -> vector<4x1xf32>
    %75 = vector.broadcast %74 : vector<4x1xf32> to vector<4x64xf32>
    %76 = arith.divf %73, %75 : vector<4x64xf32>
    %cst_44 = arith.constant 0.000000e+00 : f32
    %77 = vector.broadcast %cst_44 : f32 to vector<4x64xf32>
    %78 = tpu.concatenate %55, %77 in 1 : vector<4x64xf32>, vector<4x64xf32> -> vector<4x128xf32>
    %c0_45 = arith.constant 0 : index
    %c0_46 = arith.constant 0 : index
    %c0_47 = arith.constant 0 : index
    %79 = vector.load %arg13[%c0_45, %c0_46, %c0_47] : memref<3x4x128xf32, #tpu.memory_space<vmem>>, vector<1x4x128xf32>
    %80 = vector.shape_cast %79 : vector<1x4x128xf32> to vector<4x128xf32>
    %81 = vector.shape_cast %78 : vector<4x128xf32> to vector<1x4x128xf32>
    tpu.vector_store %arg13[%c0_45, %c0_46, %c0_47], %81 {strides = array<i32>} : memref<3x4x128xf32, #tpu.memory_space<vmem>>, vector<1x4x128xf32>,
    %82 = tpu.concatenate %55, %76 in 1 : vector<4x64xf32>, vector<4x64xf32> -> vector<4x128xf32>
    %c1 = arith.constant 1 : index
    %c0_48 = arith.constant 0 : index
    %c0_49 = arith.constant 0 : index
    %83 = vector.load %arg13[%c1, %c0_48, %c0_49] : memref<3x4x128xf32, #tpu.memory_space<vmem>>, vector<1x4x128xf32>
    %84 = vector.shape_cast %83 : vector<1x4x128xf32> to vector<4x128xf32>
    %85 = vector.shape_cast %82 : vector<4x128xf32> to vector<1x4x128xf32>
    tpu.vector_store %arg13[%c1, %c0_48, %c0_49], %85 {strides = array<i32>} : memref<3x4x128xf32, #tpu.memory_space<vmem>>, vector<1x4x128xf32>,
    %86 = tpu.concatenate %55, %57 in 1 : vector<4x64xf32>, vector<4x64xf32> -> vector<4x128xf32>
    %c2 = arith.constant 2 : index
    %c0_50 = arith.constant 0 : index
    %c0_51 = arith.constant 0 : index
    %87 = vector.load %arg13[%c2, %c0_50, %c0_51] : memref<3x4x128xf32, #tpu.memory_space<vmem>>, vector<1x4x128xf32>
    %88 = vector.shape_cast %87 : vector<1x4x128xf32> to vector<4x128xf32>
    %89 = vector.shape_cast %86 : vector<4x128xf32> to vector<1x4x128xf32>
    tpu.vector_store %arg13[%c2, %c0_50, %c0_51], %89 {strides = array<i32>} : memref<3x4x128xf32, #tpu.memory_space<vmem>>, vector<1x4x128xf32>,
    return
  }
}

module attributes {stable_mosaic.version = 11 : i64} {
  func.func @_recurrent_kernel(%arg0: i32, %arg1: memref<1x4x128xf32, #tpu.memory_space<vmem>>, %arg2: memref<1x4x128x32xbf16, #tpu.memory_space<vmem>>, %arg3: memref<1x3x32x32xbf16, #tpu.memory_space<vmem>>, %arg4: memref<1x3x32x32xbf16, #tpu.memory_space<vmem>>, %arg5: memref<1x12x32xf32, #tpu.memory_space<vmem>>, %arg6: memref<1x32x128xbf16, #tpu.memory_space<vmem>>, %arg7: memref<1x1x128xf32, #tpu.memory_space<vmem>>, %arg8: memref<1x1x128xf32, #tpu.memory_space<vmem>>) attributes {dimension_semantics = [#tpu.dimension_semantics<parallel>], iteration_bounds = array<i64: 3>, scalar_prefetch = 0 : i64, scratch_operands = 0 : i64, tpu.core_type = #tpu.core_type<tc>, window_params = [{transform_indices = @transform_0, window_bounds = array<i64: 1, 4, 128>}, {transform_indices = @transform_1, window_bounds = array<i64: 1, 4, 128, 32>}, {transform_indices = @transform_2, window_bounds = array<i64: 1, 3, 32, 32>}, {transform_indices = @transform_3, window_bounds = array<i64: 1, 3, 32, 32>}, {transform_indices = @transform_4, window_bounds = array<i64: 1, 12, 32>}, {transform_indices = @transform_5, window_bounds = array<i64: 1, 32, 128>}, {transform_indices = @transform_6, window_bounds = array<i64: 1, 1, 128>}, {transform_indices = @transform_7, window_bounds = array<i64: 1, 1, 128>}]} {
    %c0 = arith.constant 0 : index
    %c0_0 = arith.constant 0 : index
    %c0_1 = arith.constant 0 : index
    %0 = vector.load %arg1[%c0, %c0_0, %c0_1] : memref<1x4x128xf32, #tpu.memory_space<vmem>>, vector<1x4x128xf32>
    %1 = vector.shape_cast %0 : vector<1x4x128xf32> to vector<4x128xf32>
    %c0_2 = arith.constant 0 : index
    %c0_3 = arith.constant 0 : index
    %c0_4 = arith.constant 0 : index
    %2 = vector.load %arg5[%c0_2, %c0_3, %c0_4] : memref<1x12x32xf32, #tpu.memory_space<vmem>>, vector<1x12x32xf32>
    %3 = vector.shape_cast %2 : vector<1x12x32xf32> to vector<12x32xf32>
    %4 = arith.truncf %1 : vector<4x128xf32> to vector<4x128xbf16>
    %c0_5 = arith.constant 0 : index
    %c0_6 = arith.constant 0 : index
    %c0_7 = arith.constant 0 : index
    %c0_8 = arith.constant 0 : index
    %5 = vector.load %arg2[%c0_5, %c0_6, %c0_7, %c0_8] : memref<1x4x128x32xbf16, #tpu.memory_space<vmem>>, vector<1x1x128x32xbf16>
    %6 = vector.shape_cast %5 : vector<1x1x128x32xbf16> to vector<128x32xbf16>
    %cst = arith.constant dense<0.000000e+00> : vector<4x32xf32>
    %7 = tpu.matmul %4, %6, %cst {dimension_numbers = #tpu.dot_dimension_numbers<[1], [0], [0], [1], [0, 0, 1, 1], [], []>} : vector<4x128xbf16>, vector<128x32xbf16>, vector<4x32xf32> -> vector<4x32xf32>
    %c0_9 = arith.constant 0 : index
    %c1 = arith.constant 1 : index
    %c0_10 = arith.constant 0 : index
    %c0_11 = arith.constant 0 : index
    %8 = vector.load %arg2[%c0_9, %c1, %c0_10, %c0_11] : memref<1x4x128x32xbf16, #tpu.memory_space<vmem>>, vector<1x1x128x32xbf16>
    %9 = vector.shape_cast %8 : vector<1x1x128x32xbf16> to vector<128x32xbf16>
    %cst_12 = arith.constant dense<0.000000e+00> : vector<4x32xf32>
    %10 = tpu.matmul %4, %9, %cst_12 {dimension_numbers = #tpu.dot_dimension_numbers<[1], [0], [0], [1], [0, 0, 1, 1], [], []>} : vector<4x128xbf16>, vector<128x32xbf16>, vector<4x32xf32> -> vector<4x32xf32>
    %c0_13 = arith.constant 0 : index
    %c2 = arith.constant 2 : index
    %c0_14 = arith.constant 0 : index
    %c0_15 = arith.constant 0 : index
    %11 = vector.load %arg2[%c0_13, %c2, %c0_14, %c0_15] : memref<1x4x128x32xbf16, #tpu.memory_space<vmem>>, vector<1x1x128x32xbf16>
    %12 = vector.shape_cast %11 : vector<1x1x128x32xbf16> to vector<128x32xbf16>
    %cst_16 = arith.constant dense<0.000000e+00> : vector<4x32xf32>
    %13 = tpu.matmul %4, %12, %cst_16 {dimension_numbers = #tpu.dot_dimension_numbers<[1], [0], [0], [1], [0, 0, 1, 1], [], []>} : vector<4x128xbf16>, vector<128x32xbf16>, vector<4x32xf32> -> vector<4x32xf32>
    %c0_17 = arith.constant 0 : index
    %c3 = arith.constant 3 : index
    %c0_18 = arith.constant 0 : index
    %c0_19 = arith.constant 0 : index
    %14 = vector.load %arg2[%c0_17, %c3, %c0_18, %c0_19] : memref<1x4x128x32xbf16, #tpu.memory_space<vmem>>, vector<1x1x128x32xbf16>
    %15 = vector.shape_cast %14 : vector<1x1x128x32xbf16> to vector<128x32xbf16>
    %cst_20 = arith.constant dense<0.000000e+00> : vector<4x32xf32>
    %16 = tpu.matmul %4, %15, %cst_20 {dimension_numbers = #tpu.dot_dimension_numbers<[1], [0], [0], [1], [0, 0, 1, 1], [], []>} : vector<4x128xbf16>, vector<128x32xbf16>, vector<4x32xf32> -> vector<4x32xf32>
    %17 = vector.extract_strided_slice %3 {offsets = [0, 0], sizes = [1, 32], strides = [1, 1]} : vector<12x32xf32> to vector<1x32xf32>
    %18 = vector.extract_strided_slice %3 {offsets = [1, 0], sizes = [1, 32], strides = [1, 1]} : vector<12x32xf32> to vector<1x32xf32>
    %19 = vector.extract_strided_slice %3 {offsets = [2, 0], sizes = [1, 32], strides = [1, 1]} : vector<12x32xf32> to vector<1x32xf32>
    %20 = vector.extract_strided_slice %3 {offsets = [3, 0], sizes = [1, 32], strides = [1, 1]} : vector<12x32xf32> to vector<1x32xf32>
    %cst_21 = arith.constant 0.000000e+00 : f32
    %21 = vector.broadcast %cst_21 : f32 to vector<1x32xf32>
    %22 = vector.extract_strided_slice %10 {offsets = [0, 0], sizes = [1, 32], strides = [1, 1]} : vector<4x32xf32> to vector<1x32xf32>
    %23 = arith.mulf %17, %21 : vector<1x32xf32>
    %24 = arith.addf %22, %23 : vector<1x32xf32>
    %25 = arith.addf %24, %19 : vector<1x32xf32>
    %26 = arith.negf %25 : vector<1x32xf32>
    %27 = math.exp %26 : vector<1x32xf32>
    %cst_22 = arith.constant 1.000000e+00 : f32
    %28 = vector.broadcast %cst_22 : f32 to vector<1x32xf32>
    %29 = arith.addf %28, %27 : vector<1x32xf32>
    %30 = arith.divf %28, %29 : vector<1x32xf32>
    %31 = arith.mulf %30, %21 : vector<1x32xf32>
    %cst_23 = arith.constant 1.000000e+00 : f32
    %32 = vector.broadcast %cst_23 : f32 to vector<1x32xf32>
    %33 = arith.subf %32, %30 : vector<1x32xf32>
    %34 = vector.extract_strided_slice %7 {offsets = [0, 0], sizes = [1, 32], strides = [1, 1]} : vector<4x32xf32> to vector<1x32xf32>
    %35 = arith.mulf %33, %34 : vector<1x32xf32>
    %36 = arith.addf %31, %35 : vector<1x32xf32>
    %37 = vector.extract_strided_slice %13 {offsets = [0, 0], sizes = [1, 32], strides = [1, 1]} : vector<4x32xf32> to vector<1x32xf32>
    %38 = arith.mulf %18, %21 : vector<1x32xf32>
    %39 = arith.addf %37, %38 : vector<1x32xf32>
    %40 = arith.addf %39, %20 : vector<1x32xf32>
    %41 = arith.negf %40 : vector<1x32xf32>
    %42 = math.exp %41 : vector<1x32xf32>
    %cst_24 = arith.constant 1.000000e+00 : f32
    %43 = vector.broadcast %cst_24 : f32 to vector<1x32xf32>
    %44 = arith.addf %43, %42 : vector<1x32xf32>
    %45 = arith.divf %43, %44 : vector<1x32xf32>
    %46 = arith.mulf %45, %36 : vector<1x32xf32>
    %cst_25 = arith.constant 1.000000e+00 : f32
    %47 = vector.broadcast %cst_25 : f32 to vector<1x32xf32>
    %48 = arith.subf %47, %45 : vector<1x32xf32>
    %49 = vector.extract_strided_slice %16 {offsets = [0, 0], sizes = [1, 32], strides = [1, 1]} : vector<4x32xf32> to vector<1x32xf32>
    %50 = arith.mulf %48, %49 : vector<1x32xf32>
    %cst_26 = arith.constant 1.73205078 : f32
    %51 = vector.broadcast %cst_26 : f32 to vector<1x32xf32>
    %52 = arith.mulf %50, %51 : vector<1x32xf32>
    %53 = arith.addf %46, %52 : vector<1x32xf32>
    %54 = vector.extract_strided_slice %10 {offsets = [1, 0], sizes = [1, 32], strides = [1, 1]} : vector<4x32xf32> to vector<1x32xf32>
    %55 = arith.mulf %17, %36 : vector<1x32xf32>
    %56 = arith.addf %54, %55 : vector<1x32xf32>
    %57 = arith.addf %56, %19 : vector<1x32xf32>
    %58 = arith.negf %57 : vector<1x32xf32>
    %59 = math.exp %58 : vector<1x32xf32>
    %cst_27 = arith.constant 1.000000e+00 : f32
    %60 = vector.broadcast %cst_27 : f32 to vector<1x32xf32>
    %61 = arith.addf %60, %59 : vector<1x32xf32>
    %62 = arith.divf %60, %61 : vector<1x32xf32>
    %63 = arith.mulf %62, %36 : vector<1x32xf32>
    %cst_28 = arith.constant 1.000000e+00 : f32
    %64 = vector.broadcast %cst_28 : f32 to vector<1x32xf32>
    %65 = arith.subf %64, %62 : vector<1x32xf32>
    %66 = vector.extract_strided_slice %7 {offsets = [1, 0], sizes = [1, 32], strides = [1, 1]} : vector<4x32xf32> to vector<1x32xf32>
    %67 = arith.mulf %65, %66 : vector<1x32xf32>
    %68 = arith.addf %63, %67 : vector<1x32xf32>
    %69 = vector.extract_strided_slice %13 {offsets = [1, 0], sizes = [1, 32], strides = [1, 1]} : vector<4x32xf32> to vector<1x32xf32>
    %70 = arith.mulf %18, %36 : vector<1x32xf32>
    %71 = arith.addf %69, %70 : vector<1x32xf32>
    %72 = arith.addf %71, %20 : vector<1x32xf32>
    %73 = arith.negf %72 : vector<1x32xf32>
    %74 = math.exp %73 : vector<1x32xf32>
    %cst_29 = arith.constant 1.000000e+00 : f32
    %75 = vector.broadcast %cst_29 : f32 to vector<1x32xf32>
    %76 = arith.addf %75, %74 : vector<1x32xf32>
    %77 = arith.divf %75, %76 : vector<1x32xf32>
    %78 = arith.mulf %77, %68 : vector<1x32xf32>
    %cst_30 = arith.constant 1.000000e+00 : f32
    %79 = vector.broadcast %cst_30 : f32 to vector<1x32xf32>
    %80 = arith.subf %79, %77 : vector<1x32xf32>
    %81 = vector.extract_strided_slice %16 {offsets = [1, 0], sizes = [1, 32], strides = [1, 1]} : vector<4x32xf32> to vector<1x32xf32>
    %82 = arith.mulf %80, %81 : vector<1x32xf32>
    %cst_31 = arith.constant 1.73205078 : f32
    %83 = vector.broadcast %cst_31 : f32 to vector<1x32xf32>
    %84 = arith.mulf %82, %83 : vector<1x32xf32>
    %85 = arith.addf %78, %84 : vector<1x32xf32>
    %86 = vector.extract_strided_slice %10 {offsets = [2, 0], sizes = [1, 32], strides = [1, 1]} : vector<4x32xf32> to vector<1x32xf32>
    %87 = arith.mulf %17, %68 : vector<1x32xf32>
    %88 = arith.addf %86, %87 : vector<1x32xf32>
    %89 = arith.addf %88, %19 : vector<1x32xf32>
    %90 = arith.negf %89 : vector<1x32xf32>
    %91 = math.exp %90 : vector<1x32xf32>
    %cst_32 = arith.constant 1.000000e+00 : f32
    %92 = vector.broadcast %cst_32 : f32 to vector<1x32xf32>
    %93 = arith.addf %92, %91 : vector<1x32xf32>
    %94 = arith.divf %92, %93 : vector<1x32xf32>
    %95 = arith.mulf %94, %68 : vector<1x32xf32>
    %cst_33 = arith.constant 1.000000e+00 : f32
    %96 = vector.broadcast %cst_33 : f32 to vector<1x32xf32>
    %97 = arith.subf %96, %94 : vector<1x32xf32>
    %98 = vector.extract_strided_slice %7 {offsets = [2, 0], sizes = [1, 32], strides = [1, 1]} : vector<4x32xf32> to vector<1x32xf32>
    %99 = arith.mulf %97, %98 : vector<1x32xf32>
    %100 = arith.addf %95, %99 : vector<1x32xf32>
    %101 = vector.extract_strided_slice %13 {offsets = [2, 0], sizes = [1, 32], strides = [1, 1]} : vector<4x32xf32> to vector<1x32xf32>
    %102 = arith.mulf %18, %68 : vector<1x32xf32>
    %103 = arith.addf %101, %102 : vector<1x32xf32>
    %104 = arith.addf %103, %20 : vector<1x32xf32>
    %105 = arith.negf %104 : vector<1x32xf32>
    %106 = math.exp %105 : vector<1x32xf32>
    %cst_34 = arith.constant 1.000000e+00 : f32
    %107 = vector.broadcast %cst_34 : f32 to vector<1x32xf32>
    %108 = arith.addf %107, %106 : vector<1x32xf32>
    %109 = arith.divf %107, %108 : vector<1x32xf32>
    %110 = arith.mulf %109, %100 : vector<1x32xf32>
    %cst_35 = arith.constant 1.000000e+00 : f32
    %111 = vector.broadcast %cst_35 : f32 to vector<1x32xf32>
    %112 = arith.subf %111, %109 : vector<1x32xf32>
    %113 = vector.extract_strided_slice %16 {offsets = [2, 0], sizes = [1, 32], strides = [1, 1]} : vector<4x32xf32> to vector<1x32xf32>
    %114 = arith.mulf %112, %113 : vector<1x32xf32>
    %cst_36 = arith.constant 1.73205078 : f32
    %115 = vector.broadcast %cst_36 : f32 to vector<1x32xf32>
    %116 = arith.mulf %114, %115 : vector<1x32xf32>
    %117 = arith.addf %110, %116 : vector<1x32xf32>
    %118 = vector.extract_strided_slice %10 {offsets = [3, 0], sizes = [1, 32], strides = [1, 1]} : vector<4x32xf32> to vector<1x32xf32>
    %119 = arith.mulf %17, %100 : vector<1x32xf32>
    %120 = arith.addf %118, %119 : vector<1x32xf32>
    %121 = arith.addf %120, %19 : vector<1x32xf32>
    %122 = arith.negf %121 : vector<1x32xf32>
    %123 = math.exp %122 : vector<1x32xf32>
    %cst_37 = arith.constant 1.000000e+00 : f32
    %124 = vector.broadcast %cst_37 : f32 to vector<1x32xf32>
    %125 = arith.addf %124, %123 : vector<1x32xf32>
    %126 = arith.divf %124, %125 : vector<1x32xf32>
    %127 = arith.mulf %126, %100 : vector<1x32xf32>
    %cst_38 = arith.constant 1.000000e+00 : f32
    %128 = vector.broadcast %cst_38 : f32 to vector<1x32xf32>
    %129 = arith.subf %128, %126 : vector<1x32xf32>
    %130 = vector.extract_strided_slice %7 {offsets = [3, 0], sizes = [1, 32], strides = [1, 1]} : vector<4x32xf32> to vector<1x32xf32>
    %131 = arith.mulf %129, %130 : vector<1x32xf32>
    %132 = arith.addf %127, %131 : vector<1x32xf32>
    %133 = vector.extract_strided_slice %13 {offsets = [3, 0], sizes = [1, 32], strides = [1, 1]} : vector<4x32xf32> to vector<1x32xf32>
    %134 = arith.mulf %18, %100 : vector<1x32xf32>
    %135 = arith.addf %133, %134 : vector<1x32xf32>
    %136 = arith.addf %135, %20 : vector<1x32xf32>
    %137 = arith.negf %136 : vector<1x32xf32>
    %138 = math.exp %137 : vector<1x32xf32>
    %cst_39 = arith.constant 1.000000e+00 : f32
    %139 = vector.broadcast %cst_39 : f32 to vector<1x32xf32>
    %140 = arith.addf %139, %138 : vector<1x32xf32>
    %141 = arith.divf %139, %140 : vector<1x32xf32>
    %142 = arith.mulf %141, %132 : vector<1x32xf32>
    %cst_40 = arith.constant 1.000000e+00 : f32
    %143 = vector.broadcast %cst_40 : f32 to vector<1x32xf32>
    %144 = arith.subf %143, %141 : vector<1x32xf32>
    %145 = vector.extract_strided_slice %16 {offsets = [3, 0], sizes = [1, 32], strides = [1, 1]} : vector<4x32xf32> to vector<1x32xf32>
    %146 = arith.mulf %144, %145 : vector<1x32xf32>
    %cst_41 = arith.constant 1.73205078 : f32
    %147 = vector.broadcast %cst_41 : f32 to vector<1x32xf32>
    %148 = arith.mulf %146, %147 : vector<1x32xf32>
    %149 = arith.addf %142, %148 : vector<1x32xf32>
    %150 = tpu.concatenate %53, %85, %117, %149 in 0 : vector<1x32xf32>, vector<1x32xf32>, vector<1x32xf32>, vector<1x32xf32> -> vector<4x32xf32>
    %151 = arith.truncf %150 : vector<4x32xf32> to vector<4x32xbf16>
    %c0_42 = arith.constant 0 : index
    %c0_43 = arith.constant 0 : index
    %c0_44 = arith.constant 0 : index
    %c0_45 = arith.constant 0 : index
    %152 = vector.load %arg3[%c0_42, %c0_43, %c0_44, %c0_45] : memref<1x3x32x32xbf16, #tpu.memory_space<vmem>>, vector<1x1x32x32xbf16>
    %153 = vector.shape_cast %152 : vector<1x1x32x32xbf16> to vector<32x32xbf16>
    %cst_46 = arith.constant dense<0.000000e+00> : vector<4x32xf32>
    %154 = tpu.matmul %151, %153, %cst_46 {dimension_numbers = #tpu.dot_dimension_numbers<[1], [0], [0], [1], [0, 0, 1, 1], [], []>} : vector<4x32xbf16>, vector<32x32xbf16>, vector<4x32xf32> -> vector<4x32xf32>
    %c0_47 = arith.constant 0 : index
    %c1_48 = arith.constant 1 : index
    %c0_49 = arith.constant 0 : index
    %c0_50 = arith.constant 0 : index
    %155 = vector.load %arg3[%c0_47, %c1_48, %c0_49, %c0_50] : memref<1x3x32x32xbf16, #tpu.memory_space<vmem>>, vector<1x1x32x32xbf16>
    %156 = vector.shape_cast %155 : vector<1x1x32x32xbf16> to vector<32x32xbf16>
    %cst_51 = arith.constant dense<0.000000e+00> : vector<4x32xf32>
    %157 = tpu.matmul %151, %156, %cst_51 {dimension_numbers = #tpu.dot_dimension_numbers<[1], [0], [0], [1], [0, 0, 1, 1], [], []>} : vector<4x32xbf16>, vector<32x32xbf16>, vector<4x32xf32> -> vector<4x32xf32>
    %c0_52 = arith.constant 0 : index
    %c2_53 = arith.constant 2 : index
    %c0_54 = arith.constant 0 : index
    %c0_55 = arith.constant 0 : index
    %158 = vector.load %arg3[%c0_52, %c2_53, %c0_54, %c0_55] : memref<1x3x32x32xbf16, #tpu.memory_space<vmem>>, vector<1x1x32x32xbf16>
    %159 = vector.shape_cast %158 : vector<1x1x32x32xbf16> to vector<32x32xbf16>
    %cst_56 = arith.constant dense<0.000000e+00> : vector<4x32xf32>
    %160 = tpu.matmul %151, %159, %cst_56 {dimension_numbers = #tpu.dot_dimension_numbers<[1], [0], [0], [1], [0, 0, 1, 1], [], []>} : vector<4x32xbf16>, vector<32x32xbf16>, vector<4x32xf32> -> vector<4x32xf32>
    %161 = vector.extract_strided_slice %3 {offsets = [4, 0], sizes = [1, 32], strides = [1, 1]} : vector<12x32xf32> to vector<1x32xf32>
    %162 = vector.extract_strided_slice %3 {offsets = [5, 0], sizes = [1, 32], strides = [1, 1]} : vector<12x32xf32> to vector<1x32xf32>
    %163 = vector.extract_strided_slice %3 {offsets = [6, 0], sizes = [1, 32], strides = [1, 1]} : vector<12x32xf32> to vector<1x32xf32>
    %164 = vector.extract_strided_slice %3 {offsets = [7, 0], sizes = [1, 32], strides = [1, 1]} : vector<12x32xf32> to vector<1x32xf32>
    %cst_57 = arith.constant 0.000000e+00 : f32
    %165 = vector.broadcast %cst_57 : f32 to vector<1x32xf32>
    %166 = vector.extract_strided_slice %157 {offsets = [0, 0], sizes = [1, 32], strides = [1, 1]} : vector<4x32xf32> to vector<1x32xf32>
    %167 = arith.mulf %161, %165 : vector<1x32xf32>
    %168 = arith.addf %166, %167 : vector<1x32xf32>
    %169 = arith.addf %168, %163 : vector<1x32xf32>
    %170 = arith.negf %169 : vector<1x32xf32>
    %171 = math.exp %170 : vector<1x32xf32>
    %cst_58 = arith.constant 1.000000e+00 : f32
    %172 = vector.broadcast %cst_58 : f32 to vector<1x32xf32>
    %173 = arith.addf %172, %171 : vector<1x32xf32>
    %174 = arith.divf %172, %173 : vector<1x32xf32>
    %175 = arith.mulf %174, %165 : vector<1x32xf32>
    %cst_59 = arith.constant 1.000000e+00 : f32
    %176 = vector.broadcast %cst_59 : f32 to vector<1x32xf32>
    %177 = arith.subf %176, %174 : vector<1x32xf32>
    %178 = vector.extract_strided_slice %154 {offsets = [0, 0], sizes = [1, 32], strides = [1, 1]} : vector<4x32xf32> to vector<1x32xf32>
    %179 = arith.mulf %177, %178 : vector<1x32xf32>
    %180 = arith.addf %175, %179 : vector<1x32xf32>
    %181 = vector.extract_strided_slice %160 {offsets = [0, 0], sizes = [1, 32], strides = [1, 1]} : vector<4x32xf32> to vector<1x32xf32>
    %182 = arith.mulf %162, %165 : vector<1x32xf32>
    %183 = arith.addf %181, %182 : vector<1x32xf32>
    %184 = arith.addf %183, %164 : vector<1x32xf32>
    %185 = arith.negf %184 : vector<1x32xf32>
    %186 = math.exp %185 : vector<1x32xf32>
    %cst_60 = arith.constant 1.000000e+00 : f32
    %187 = vector.broadcast %cst_60 : f32 to vector<1x32xf32>
    %188 = arith.addf %187, %186 : vector<1x32xf32>
    %189 = arith.divf %187, %188 : vector<1x32xf32>
    %190 = arith.mulf %189, %180 : vector<1x32xf32>
    %cst_61 = arith.constant 1.000000e+00 : f32
    %191 = vector.broadcast %cst_61 : f32 to vector<1x32xf32>
    %192 = arith.subf %191, %189 : vector<1x32xf32>
    %193 = vector.extract_strided_slice %150 {offsets = [0, 0], sizes = [1, 32], strides = [1, 1]} : vector<4x32xf32> to vector<1x32xf32>
    %194 = arith.mulf %192, %193 : vector<1x32xf32>
    %cst_62 = arith.constant 1.73205078 : f32
    %195 = vector.broadcast %cst_62 : f32 to vector<1x32xf32>
    %196 = arith.mulf %194, %195 : vector<1x32xf32>
    %197 = arith.addf %190, %196 : vector<1x32xf32>
    %198 = vector.extract_strided_slice %157 {offsets = [1, 0], sizes = [1, 32], strides = [1, 1]} : vector<4x32xf32> to vector<1x32xf32>
    %199 = arith.mulf %161, %180 : vector<1x32xf32>
    %200 = arith.addf %198, %199 : vector<1x32xf32>
    %201 = arith.addf %200, %163 : vector<1x32xf32>
    %202 = arith.negf %201 : vector<1x32xf32>
    %203 = math.exp %202 : vector<1x32xf32>
    %cst_63 = arith.constant 1.000000e+00 : f32
    %204 = vector.broadcast %cst_63 : f32 to vector<1x32xf32>
    %205 = arith.addf %204, %203 : vector<1x32xf32>
    %206 = arith.divf %204, %205 : vector<1x32xf32>
    %207 = arith.mulf %206, %180 : vector<1x32xf32>
    %cst_64 = arith.constant 1.000000e+00 : f32
    %208 = vector.broadcast %cst_64 : f32 to vector<1x32xf32>
    %209 = arith.subf %208, %206 : vector<1x32xf32>
    %210 = vector.extract_strided_slice %154 {offsets = [1, 0], sizes = [1, 32], strides = [1, 1]} : vector<4x32xf32> to vector<1x32xf32>
    %211 = arith.mulf %209, %210 : vector<1x32xf32>
    %212 = arith.addf %207, %211 : vector<1x32xf32>
    %213 = vector.extract_strided_slice %160 {offsets = [1, 0], sizes = [1, 32], strides = [1, 1]} : vector<4x32xf32> to vector<1x32xf32>
    %214 = arith.mulf %162, %180 : vector<1x32xf32>
    %215 = arith.addf %213, %214 : vector<1x32xf32>
    %216 = arith.addf %215, %164 : vector<1x32xf32>
    %217 = arith.negf %216 : vector<1x32xf32>
    %218 = math.exp %217 : vector<1x32xf32>
    %cst_65 = arith.constant 1.000000e+00 : f32
    %219 = vector.broadcast %cst_65 : f32 to vector<1x32xf32>
    %220 = arith.addf %219, %218 : vector<1x32xf32>
    %221 = arith.divf %219, %220 : vector<1x32xf32>
    %222 = arith.mulf %221, %212 : vector<1x32xf32>
    %cst_66 = arith.constant 1.000000e+00 : f32
    %223 = vector.broadcast %cst_66 : f32 to vector<1x32xf32>
    %224 = arith.subf %223, %221 : vector<1x32xf32>
    %225 = vector.extract_strided_slice %150 {offsets = [1, 0], sizes = [1, 32], strides = [1, 1]} : vector<4x32xf32> to vector<1x32xf32>
    %226 = arith.mulf %224, %225 : vector<1x32xf32>
    %cst_67 = arith.constant 1.73205078 : f32
    %227 = vector.broadcast %cst_67 : f32 to vector<1x32xf32>
    %228 = arith.mulf %226, %227 : vector<1x32xf32>
    %229 = arith.addf %222, %228 : vector<1x32xf32>
    %230 = vector.extract_strided_slice %157 {offsets = [2, 0], sizes = [1, 32], strides = [1, 1]} : vector<4x32xf32> to vector<1x32xf32>
    %231 = arith.mulf %161, %212 : vector<1x32xf32>
    %232 = arith.addf %230, %231 : vector<1x32xf32>
    %233 = arith.addf %232, %163 : vector<1x32xf32>
    %234 = arith.negf %233 : vector<1x32xf32>
    %235 = math.exp %234 : vector<1x32xf32>
    %cst_68 = arith.constant 1.000000e+00 : f32
    %236 = vector.broadcast %cst_68 : f32 to vector<1x32xf32>
    %237 = arith.addf %236, %235 : vector<1x32xf32>
    %238 = arith.divf %236, %237 : vector<1x32xf32>
    %239 = arith.mulf %238, %212 : vector<1x32xf32>
    %cst_69 = arith.constant 1.000000e+00 : f32
    %240 = vector.broadcast %cst_69 : f32 to vector<1x32xf32>
    %241 = arith.subf %240, %238 : vector<1x32xf32>
    %242 = vector.extract_strided_slice %154 {offsets = [2, 0], sizes = [1, 32], strides = [1, 1]} : vector<4x32xf32> to vector<1x32xf32>
    %243 = arith.mulf %241, %242 : vector<1x32xf32>
    %244 = arith.addf %239, %243 : vector<1x32xf32>
    %245 = vector.extract_strided_slice %160 {offsets = [2, 0], sizes = [1, 32], strides = [1, 1]} : vector<4x32xf32> to vector<1x32xf32>
    %246 = arith.mulf %162, %212 : vector<1x32xf32>
    %247 = arith.addf %245, %246 : vector<1x32xf32>
    %248 = arith.addf %247, %164 : vector<1x32xf32>
    %249 = arith.negf %248 : vector<1x32xf32>
    %250 = math.exp %249 : vector<1x32xf32>
    %cst_70 = arith.constant 1.000000e+00 : f32
    %251 = vector.broadcast %cst_70 : f32 to vector<1x32xf32>
    %252 = arith.addf %251, %250 : vector<1x32xf32>
    %253 = arith.divf %251, %252 : vector<1x32xf32>
    %254 = arith.mulf %253, %244 : vector<1x32xf32>
    %cst_71 = arith.constant 1.000000e+00 : f32
    %255 = vector.broadcast %cst_71 : f32 to vector<1x32xf32>
    %256 = arith.subf %255, %253 : vector<1x32xf32>
    %257 = vector.extract_strided_slice %150 {offsets = [2, 0], sizes = [1, 32], strides = [1, 1]} : vector<4x32xf32> to vector<1x32xf32>
    %258 = arith.mulf %256, %257 : vector<1x32xf32>
    %cst_72 = arith.constant 1.73205078 : f32
    %259 = vector.broadcast %cst_72 : f32 to vector<1x32xf32>
    %260 = arith.mulf %258, %259 : vector<1x32xf32>
    %261 = arith.addf %254, %260 : vector<1x32xf32>
    %262 = vector.extract_strided_slice %157 {offsets = [3, 0], sizes = [1, 32], strides = [1, 1]} : vector<4x32xf32> to vector<1x32xf32>
    %263 = arith.mulf %161, %244 : vector<1x32xf32>
    %264 = arith.addf %262, %263 : vector<1x32xf32>
    %265 = arith.addf %264, %163 : vector<1x32xf32>
    %266 = arith.negf %265 : vector<1x32xf32>
    %267 = math.exp %266 : vector<1x32xf32>
    %cst_73 = arith.constant 1.000000e+00 : f32
    %268 = vector.broadcast %cst_73 : f32 to vector<1x32xf32>
    %269 = arith.addf %268, %267 : vector<1x32xf32>
    %270 = arith.divf %268, %269 : vector<1x32xf32>
    %271 = arith.mulf %270, %244 : vector<1x32xf32>
    %cst_74 = arith.constant 1.000000e+00 : f32
    %272 = vector.broadcast %cst_74 : f32 to vector<1x32xf32>
    %273 = arith.subf %272, %270 : vector<1x32xf32>
    %274 = vector.extract_strided_slice %154 {offsets = [3, 0], sizes = [1, 32], strides = [1, 1]} : vector<4x32xf32> to vector<1x32xf32>
    %275 = arith.mulf %273, %274 : vector<1x32xf32>
    %276 = arith.addf %271, %275 : vector<1x32xf32>
    %277 = vector.extract_strided_slice %160 {offsets = [3, 0], sizes = [1, 32], strides = [1, 1]} : vector<4x32xf32> to vector<1x32xf32>
    %278 = arith.mulf %162, %244 : vector<1x32xf32>
    %279 = arith.addf %277, %278 : vector<1x32xf32>
    %280 = arith.addf %279, %164 : vector<1x32xf32>
    %281 = arith.negf %280 : vector<1x32xf32>
    %282 = math.exp %281 : vector<1x32xf32>
    %cst_75 = arith.constant 1.000000e+00 : f32
    %283 = vector.broadcast %cst_75 : f32 to vector<1x32xf32>
    %284 = arith.addf %283, %282 : vector<1x32xf32>
    %285 = arith.divf %283, %284 : vector<1x32xf32>
    %286 = arith.mulf %285, %276 : vector<1x32xf32>
    %cst_76 = arith.constant 1.000000e+00 : f32
    %287 = vector.broadcast %cst_76 : f32 to vector<1x32xf32>
    %288 = arith.subf %287, %285 : vector<1x32xf32>
    %289 = vector.extract_strided_slice %150 {offsets = [3, 0], sizes = [1, 32], strides = [1, 1]} : vector<4x32xf32> to vector<1x32xf32>
    %290 = arith.mulf %288, %289 : vector<1x32xf32>
    %cst_77 = arith.constant 1.73205078 : f32
    %291 = vector.broadcast %cst_77 : f32 to vector<1x32xf32>
    %292 = arith.mulf %290, %291 : vector<1x32xf32>
    %293 = arith.addf %286, %292 : vector<1x32xf32>
    %294 = tpu.concatenate %197, %229, %261, %293 in 0 : vector<1x32xf32>, vector<1x32xf32>, vector<1x32xf32>, vector<1x32xf32> -> vector<4x32xf32>
    %295 = arith.truncf %294 : vector<4x32xf32> to vector<4x32xbf16>
    %c0_78 = arith.constant 0 : index
    %c0_79 = arith.constant 0 : index
    %c0_80 = arith.constant 0 : index
    %c0_81 = arith.constant 0 : index
    %296 = vector.load %arg4[%c0_78, %c0_79, %c0_80, %c0_81] : memref<1x3x32x32xbf16, #tpu.memory_space<vmem>>, vector<1x1x32x32xbf16>
    %297 = vector.shape_cast %296 : vector<1x1x32x32xbf16> to vector<32x32xbf16>
    %cst_82 = arith.constant dense<0.000000e+00> : vector<4x32xf32>
    %298 = tpu.matmul %295, %297, %cst_82 {dimension_numbers = #tpu.dot_dimension_numbers<[1], [0], [0], [1], [0, 0, 1, 1], [], []>} : vector<4x32xbf16>, vector<32x32xbf16>, vector<4x32xf32> -> vector<4x32xf32>
    %c0_83 = arith.constant 0 : index
    %c1_84 = arith.constant 1 : index
    %c0_85 = arith.constant 0 : index
    %c0_86 = arith.constant 0 : index
    %299 = vector.load %arg4[%c0_83, %c1_84, %c0_85, %c0_86] : memref<1x3x32x32xbf16, #tpu.memory_space<vmem>>, vector<1x1x32x32xbf16>
    %300 = vector.shape_cast %299 : vector<1x1x32x32xbf16> to vector<32x32xbf16>
    %cst_87 = arith.constant dense<0.000000e+00> : vector<4x32xf32>
    %301 = tpu.matmul %295, %300, %cst_87 {dimension_numbers = #tpu.dot_dimension_numbers<[1], [0], [0], [1], [0, 0, 1, 1], [], []>} : vector<4x32xbf16>, vector<32x32xbf16>, vector<4x32xf32> -> vector<4x32xf32>
    %c0_88 = arith.constant 0 : index
    %c2_89 = arith.constant 2 : index
    %c0_90 = arith.constant 0 : index
    %c0_91 = arith.constant 0 : index
    %302 = vector.load %arg4[%c0_88, %c2_89, %c0_90, %c0_91] : memref<1x3x32x32xbf16, #tpu.memory_space<vmem>>, vector<1x1x32x32xbf16>
    %303 = vector.shape_cast %302 : vector<1x1x32x32xbf16> to vector<32x32xbf16>
    %cst_92 = arith.constant dense<0.000000e+00> : vector<4x32xf32>
    %304 = tpu.matmul %295, %303, %cst_92 {dimension_numbers = #tpu.dot_dimension_numbers<[1], [0], [0], [1], [0, 0, 1, 1], [], []>} : vector<4x32xbf16>, vector<32x32xbf16>, vector<4x32xf32> -> vector<4x32xf32>
    %305 = vector.extract_strided_slice %3 {offsets = [8, 0], sizes = [1, 32], strides = [1, 1]} : vector<12x32xf32> to vector<1x32xf32>
    %306 = vector.extract_strided_slice %3 {offsets = [9, 0], sizes = [1, 32], strides = [1, 1]} : vector<12x32xf32> to vector<1x32xf32>
    %307 = vector.extract_strided_slice %3 {offsets = [10, 0], sizes = [1, 32], strides = [1, 1]} : vector<12x32xf32> to vector<1x32xf32>
    %308 = vector.extract_strided_slice %3 {offsets = [11, 0], sizes = [1, 32], strides = [1, 1]} : vector<12x32xf32> to vector<1x32xf32>
    %cst_93 = arith.constant 0.000000e+00 : f32
    %309 = vector.broadcast %cst_93 : f32 to vector<1x32xf32>
    %310 = vector.extract_strided_slice %301 {offsets = [0, 0], sizes = [1, 32], strides = [1, 1]} : vector<4x32xf32> to vector<1x32xf32>
    %311 = arith.mulf %305, %309 : vector<1x32xf32>
    %312 = arith.addf %310, %311 : vector<1x32xf32>
    %313 = arith.addf %312, %307 : vector<1x32xf32>
    %314 = arith.negf %313 : vector<1x32xf32>
    %315 = math.exp %314 : vector<1x32xf32>
    %cst_94 = arith.constant 1.000000e+00 : f32
    %316 = vector.broadcast %cst_94 : f32 to vector<1x32xf32>
    %317 = arith.addf %316, %315 : vector<1x32xf32>
    %318 = arith.divf %316, %317 : vector<1x32xf32>
    %319 = arith.mulf %318, %309 : vector<1x32xf32>
    %cst_95 = arith.constant 1.000000e+00 : f32
    %320 = vector.broadcast %cst_95 : f32 to vector<1x32xf32>
    %321 = arith.subf %320, %318 : vector<1x32xf32>
    %322 = vector.extract_strided_slice %298 {offsets = [0, 0], sizes = [1, 32], strides = [1, 1]} : vector<4x32xf32> to vector<1x32xf32>
    %323 = arith.mulf %321, %322 : vector<1x32xf32>
    %324 = arith.addf %319, %323 : vector<1x32xf32>
    %325 = vector.extract_strided_slice %304 {offsets = [0, 0], sizes = [1, 32], strides = [1, 1]} : vector<4x32xf32> to vector<1x32xf32>
    %326 = arith.mulf %306, %309 : vector<1x32xf32>
    %327 = arith.addf %325, %326 : vector<1x32xf32>
    %328 = arith.addf %327, %308 : vector<1x32xf32>
    %329 = arith.negf %328 : vector<1x32xf32>
    %330 = math.exp %329 : vector<1x32xf32>
    %cst_96 = arith.constant 1.000000e+00 : f32
    %331 = vector.broadcast %cst_96 : f32 to vector<1x32xf32>
    %332 = arith.addf %331, %330 : vector<1x32xf32>
    %333 = arith.divf %331, %332 : vector<1x32xf32>
    %334 = arith.mulf %333, %324 : vector<1x32xf32>
    %cst_97 = arith.constant 1.000000e+00 : f32
    %335 = vector.broadcast %cst_97 : f32 to vector<1x32xf32>
    %336 = arith.subf %335, %333 : vector<1x32xf32>
    %337 = vector.extract_strided_slice %294 {offsets = [0, 0], sizes = [1, 32], strides = [1, 1]} : vector<4x32xf32> to vector<1x32xf32>
    %338 = arith.mulf %336, %337 : vector<1x32xf32>
    %cst_98 = arith.constant 1.73205078 : f32
    %339 = vector.broadcast %cst_98 : f32 to vector<1x32xf32>
    %340 = arith.mulf %338, %339 : vector<1x32xf32>
    %341 = arith.addf %334, %340 : vector<1x32xf32>
    %342 = vector.extract_strided_slice %301 {offsets = [1, 0], sizes = [1, 32], strides = [1, 1]} : vector<4x32xf32> to vector<1x32xf32>
    %343 = arith.mulf %305, %324 : vector<1x32xf32>
    %344 = arith.addf %342, %343 : vector<1x32xf32>
    %345 = arith.addf %344, %307 : vector<1x32xf32>
    %346 = arith.negf %345 : vector<1x32xf32>
    %347 = math.exp %346 : vector<1x32xf32>
    %cst_99 = arith.constant 1.000000e+00 : f32
    %348 = vector.broadcast %cst_99 : f32 to vector<1x32xf32>
    %349 = arith.addf %348, %347 : vector<1x32xf32>
    %350 = arith.divf %348, %349 : vector<1x32xf32>
    %351 = arith.mulf %350, %324 : vector<1x32xf32>
    %cst_100 = arith.constant 1.000000e+00 : f32
    %352 = vector.broadcast %cst_100 : f32 to vector<1x32xf32>
    %353 = arith.subf %352, %350 : vector<1x32xf32>
    %354 = vector.extract_strided_slice %298 {offsets = [1, 0], sizes = [1, 32], strides = [1, 1]} : vector<4x32xf32> to vector<1x32xf32>
    %355 = arith.mulf %353, %354 : vector<1x32xf32>
    %356 = arith.addf %351, %355 : vector<1x32xf32>
    %357 = vector.extract_strided_slice %304 {offsets = [1, 0], sizes = [1, 32], strides = [1, 1]} : vector<4x32xf32> to vector<1x32xf32>
    %358 = arith.mulf %306, %324 : vector<1x32xf32>
    %359 = arith.addf %357, %358 : vector<1x32xf32>
    %360 = arith.addf %359, %308 : vector<1x32xf32>
    %361 = arith.negf %360 : vector<1x32xf32>
    %362 = math.exp %361 : vector<1x32xf32>
    %cst_101 = arith.constant 1.000000e+00 : f32
    %363 = vector.broadcast %cst_101 : f32 to vector<1x32xf32>
    %364 = arith.addf %363, %362 : vector<1x32xf32>
    %365 = arith.divf %363, %364 : vector<1x32xf32>
    %366 = arith.mulf %365, %356 : vector<1x32xf32>
    %cst_102 = arith.constant 1.000000e+00 : f32
    %367 = vector.broadcast %cst_102 : f32 to vector<1x32xf32>
    %368 = arith.subf %367, %365 : vector<1x32xf32>
    %369 = vector.extract_strided_slice %294 {offsets = [1, 0], sizes = [1, 32], strides = [1, 1]} : vector<4x32xf32> to vector<1x32xf32>
    %370 = arith.mulf %368, %369 : vector<1x32xf32>
    %cst_103 = arith.constant 1.73205078 : f32
    %371 = vector.broadcast %cst_103 : f32 to vector<1x32xf32>
    %372 = arith.mulf %370, %371 : vector<1x32xf32>
    %373 = arith.addf %366, %372 : vector<1x32xf32>
    %374 = vector.extract_strided_slice %301 {offsets = [2, 0], sizes = [1, 32], strides = [1, 1]} : vector<4x32xf32> to vector<1x32xf32>
    %375 = arith.mulf %305, %356 : vector<1x32xf32>
    %376 = arith.addf %374, %375 : vector<1x32xf32>
    %377 = arith.addf %376, %307 : vector<1x32xf32>
    %378 = arith.negf %377 : vector<1x32xf32>
    %379 = math.exp %378 : vector<1x32xf32>
    %cst_104 = arith.constant 1.000000e+00 : f32
    %380 = vector.broadcast %cst_104 : f32 to vector<1x32xf32>
    %381 = arith.addf %380, %379 : vector<1x32xf32>
    %382 = arith.divf %380, %381 : vector<1x32xf32>
    %383 = arith.mulf %382, %356 : vector<1x32xf32>
    %cst_105 = arith.constant 1.000000e+00 : f32
    %384 = vector.broadcast %cst_105 : f32 to vector<1x32xf32>
    %385 = arith.subf %384, %382 : vector<1x32xf32>
    %386 = vector.extract_strided_slice %298 {offsets = [2, 0], sizes = [1, 32], strides = [1, 1]} : vector<4x32xf32> to vector<1x32xf32>
    %387 = arith.mulf %385, %386 : vector<1x32xf32>
    %388 = arith.addf %383, %387 : vector<1x32xf32>
    %389 = vector.extract_strided_slice %304 {offsets = [2, 0], sizes = [1, 32], strides = [1, 1]} : vector<4x32xf32> to vector<1x32xf32>
    %390 = arith.mulf %306, %356 : vector<1x32xf32>
    %391 = arith.addf %389, %390 : vector<1x32xf32>
    %392 = arith.addf %391, %308 : vector<1x32xf32>
    %393 = arith.negf %392 : vector<1x32xf32>
    %394 = math.exp %393 : vector<1x32xf32>
    %cst_106 = arith.constant 1.000000e+00 : f32
    %395 = vector.broadcast %cst_106 : f32 to vector<1x32xf32>
    %396 = arith.addf %395, %394 : vector<1x32xf32>
    %397 = arith.divf %395, %396 : vector<1x32xf32>
    %398 = arith.mulf %397, %388 : vector<1x32xf32>
    %cst_107 = arith.constant 1.000000e+00 : f32
    %399 = vector.broadcast %cst_107 : f32 to vector<1x32xf32>
    %400 = arith.subf %399, %397 : vector<1x32xf32>
    %401 = vector.extract_strided_slice %294 {offsets = [2, 0], sizes = [1, 32], strides = [1, 1]} : vector<4x32xf32> to vector<1x32xf32>
    %402 = arith.mulf %400, %401 : vector<1x32xf32>
    %cst_108 = arith.constant 1.73205078 : f32
    %403 = vector.broadcast %cst_108 : f32 to vector<1x32xf32>
    %404 = arith.mulf %402, %403 : vector<1x32xf32>
    %405 = arith.addf %398, %404 : vector<1x32xf32>
    %406 = vector.extract_strided_slice %301 {offsets = [3, 0], sizes = [1, 32], strides = [1, 1]} : vector<4x32xf32> to vector<1x32xf32>
    %407 = arith.mulf %305, %388 : vector<1x32xf32>
    %408 = arith.addf %406, %407 : vector<1x32xf32>
    %409 = arith.addf %408, %307 : vector<1x32xf32>
    %410 = arith.negf %409 : vector<1x32xf32>
    %411 = math.exp %410 : vector<1x32xf32>
    %cst_109 = arith.constant 1.000000e+00 : f32
    %412 = vector.broadcast %cst_109 : f32 to vector<1x32xf32>
    %413 = arith.addf %412, %411 : vector<1x32xf32>
    %414 = arith.divf %412, %413 : vector<1x32xf32>
    %415 = arith.mulf %414, %388 : vector<1x32xf32>
    %cst_110 = arith.constant 1.000000e+00 : f32
    %416 = vector.broadcast %cst_110 : f32 to vector<1x32xf32>
    %417 = arith.subf %416, %414 : vector<1x32xf32>
    %418 = vector.extract_strided_slice %298 {offsets = [3, 0], sizes = [1, 32], strides = [1, 1]} : vector<4x32xf32> to vector<1x32xf32>
    %419 = arith.mulf %417, %418 : vector<1x32xf32>
    %420 = arith.addf %415, %419 : vector<1x32xf32>
    %421 = vector.extract_strided_slice %304 {offsets = [3, 0], sizes = [1, 32], strides = [1, 1]} : vector<4x32xf32> to vector<1x32xf32>
    %422 = arith.mulf %306, %388 : vector<1x32xf32>
    %423 = arith.addf %421, %422 : vector<1x32xf32>
    %424 = arith.addf %423, %308 : vector<1x32xf32>
    %425 = arith.negf %424 : vector<1x32xf32>
    %426 = math.exp %425 : vector<1x32xf32>
    %cst_111 = arith.constant 1.000000e+00 : f32
    %427 = vector.broadcast %cst_111 : f32 to vector<1x32xf32>
    %428 = arith.addf %427, %426 : vector<1x32xf32>
    %429 = arith.divf %427, %428 : vector<1x32xf32>
    %430 = arith.mulf %429, %420 : vector<1x32xf32>
    %cst_112 = arith.constant 1.000000e+00 : f32
    %431 = vector.broadcast %cst_112 : f32 to vector<1x32xf32>
    %432 = arith.subf %431, %429 : vector<1x32xf32>
    %433 = vector.extract_strided_slice %294 {offsets = [3, 0], sizes = [1, 32], strides = [1, 1]} : vector<4x32xf32> to vector<1x32xf32>
    %434 = arith.mulf %432, %433 : vector<1x32xf32>
    %cst_113 = arith.constant 1.73205078 : f32
    %435 = vector.broadcast %cst_113 : f32 to vector<1x32xf32>
    %436 = arith.mulf %434, %435 : vector<1x32xf32>
    %437 = arith.addf %430, %436 : vector<1x32xf32>
    %cst_114 = arith.constant 0.000000e+00 : f32
    %438 = vector.broadcast %cst_114 : f32 to vector<1x32xf32>
    %439 = arith.addf %438, %341 : vector<1x32xf32>
    %440 = arith.addf %439, %373 : vector<1x32xf32>
    %441 = arith.addf %440, %405 : vector<1x32xf32>
    %442 = arith.addf %441, %437 : vector<1x32xf32>
    %cst_115 = arith.constant 2.500000e-01 : f32
    %443 = vector.broadcast %cst_115 : f32 to vector<1x32xf32>
    %444 = arith.mulf %442, %443 : vector<1x32xf32>
    %445 = arith.truncf %444 : vector<1x32xf32> to vector<1x32xbf16>
    %c0_116 = arith.constant 0 : index
    %c0_117 = arith.constant 0 : index
    %c0_118 = arith.constant 0 : index
    %446 = vector.load %arg6[%c0_116, %c0_117, %c0_118] : memref<1x32x128xbf16, #tpu.memory_space<vmem>>, vector<1x32x128xbf16>
    %447 = vector.shape_cast %446 : vector<1x32x128xbf16> to vector<32x128xbf16>
    %cst_119 = arith.constant dense<0.000000e+00> : vector<1x128xf32>
    %448 = tpu.matmul %445, %447, %cst_119 {dimension_numbers = #tpu.dot_dimension_numbers<[1], [0], [0], [1], [0, 0, 1, 1], [], []>} : vector<1x32xbf16>, vector<32x128xbf16>, vector<1x128xf32> -> vector<1x128xf32>
    %c0_120 = arith.constant 0 : index
    %c0_121 = arith.constant 0 : index
    %c0_122 = arith.constant 0 : index
    %449 = vector.load %arg7[%c0_120, %c0_121, %c0_122] : memref<1x1x128xf32, #tpu.memory_space<vmem>>, vector<1x1x128xf32>
    %450 = vector.shape_cast %449 : vector<1x1x128xf32> to vector<1x128xf32>
    %451 = arith.addf %448, %450 : vector<1x128xf32>
    %c0_123 = arith.constant 0 : index
    %c0_124 = arith.constant 0 : index
    %c0_125 = arith.constant 0 : index
    %452 = vector.load %arg8[%c0_123, %c0_124, %c0_125] : memref<1x1x128xf32, #tpu.memory_space<vmem>>, vector<1x1x128xf32>
    %453 = vector.shape_cast %452 : vector<1x1x128xf32> to vector<1x128xf32>
    %454 = vector.shape_cast %451 : vector<1x128xf32> to vector<1x1x128xf32>
    tpu.vector_store %arg8[%c0_123, %c0_124, %c0_125], %454 {strides = array<i32>} : memref<1x1x128xf32, #tpu.memory_space<vmem>>, vector<1x1x128xf32>,
    return
  }
  func.func @transform_0(%arg0: i32) -> (i32, i32, i32) {
    %c0_i32 = arith.constant 0 : i32
    %c0_i32_0 = arith.constant 0 : i32
    %c0_i32_1 = arith.constant 0 : i32
    return %arg0, %c0_i32, %c0_i32_0 : i32, i32, i32
  }
  func.func @transform_1(%arg0: i32) -> (i32, i32, i32, i32) {
    %c0_i32 = arith.constant 0 : i32
    %c0_i32_0 = arith.constant 0 : i32
    %c0_i32_1 = arith.constant 0 : i32
    %c0_i32_2 = arith.constant 0 : i32
    return %arg0, %c0_i32, %c0_i32_0, %c0_i32_1 : i32, i32, i32, i32
  }
  func.func @transform_2(%arg0: i32) -> (i32, i32, i32, i32) {
    %c0_i32 = arith.constant 0 : i32
    %c0_i32_0 = arith.constant 0 : i32
    %c0_i32_1 = arith.constant 0 : i32
    %c0_i32_2 = arith.constant 0 : i32
    return %arg0, %c0_i32, %c0_i32_0, %c0_i32_1 : i32, i32, i32, i32
  }
  func.func @transform_3(%arg0: i32) -> (i32, i32, i32, i32) {
    %c0_i32 = arith.constant 0 : i32
    %c0_i32_0 = arith.constant 0 : i32
    %c0_i32_1 = arith.constant 0 : i32
    %c0_i32_2 = arith.constant 0 : i32
    return %arg0, %c0_i32, %c0_i32_0, %c0_i32_1 : i32, i32, i32, i32
  }
  func.func @transform_4(%arg0: i32) -> (i32, i32, i32) {
    %c0_i32 = arith.constant 0 : i32
    %c0_i32_0 = arith.constant 0 : i32
    %c0_i32_1 = arith.constant 0 : i32
    return %arg0, %c0_i32, %c0_i32_0 : i32, i32, i32
  }
  func.func @transform_5(%arg0: i32) -> (i32, i32, i32) {
    %c0_i32 = arith.constant 0 : i32
    %c0_i32_0 = arith.constant 0 : i32
    %c0_i32_1 = arith.constant 0 : i32
    return %arg0, %c0_i32, %c0_i32_0 : i32, i32, i32
  }
  func.func @transform_6(%arg0: i32) -> (i32, i32, i32) {
    %c0_i32 = arith.constant 0 : i32
    %c0_i32_0 = arith.constant 0 : i32
    %c0_i32_1 = arith.constant 0 : i32
    return %arg0, %c0_i32, %c0_i32_0 : i32, i32, i32
  }
  func.func @transform_7(%arg0: i32) -> (i32, i32, i32) {
    %c0_i32 = arith.constant 0 : i32
    %c0_i32_0 = arith.constant 0 : i32
    %c0_i32_1 = arith.constant 0 : i32
    return %arg0, %c0_i32, %c0_i32_0 : i32, i32, i32
  }
}

</mosaic_0001>

<llo_original>
// kernel: spatial_temporal_forward.2
$region0: #{spatial_temporal_forward.2}
  #allocation0 [shape = 'u32[]', space=smem, size = 0x4, offset = 0x4, fixed_abs, tag = 'smem constant byte address 0x4 - core index']
  #allocation1 [shape = 'u32[144,128]{1,0:T(1,128)}', space=vmem, size = 0x12000, scoped, tag = 'internal scratch']
  %s0 = inlined_call_operand.vmem [shape: f32[64,192], index: 0, kind: input, shape index: {}]
  %s1 = inlined_call_operand.vmem [shape: bf16[192,64], index: 1, kind: input, shape index: {}]
  %s2 = inlined_call_operand.vmem [shape: bf16[32,64], index: 2, kind: input, shape index: {}]
  %s3 = inlined_call_operand.vmem [shape: bf16[64,32], index: 3, kind: input, shape index: {}]
  %s4 = inlined_call_operand.vmem [shape: bf16[64,32], index: 4, kind: input, shape index: {}]
  %s5 = inlined_call_operand.vmem [shape: bf16[64,8], index: 5, kind: input, shape index: {}]
  %s6 = inlined_call_operand.vmem [shape: f32[1,8], index: 6, kind: input, shape index: {}]
  %s7 = inlined_call_operand.vmem [shape: f32[1,8], index: 7, kind: input, shape index: {}]
  %s8 = inlined_call_operand.vmem [shape: f32[1,8], index: 8, kind: input, shape index: {}]
  %s9 = inlined_call_operand.vmem [shape: bf16[8,128], index: 9, kind: input, shape index: {}]
  %s10 = inlined_call_operand.vmem [shape: f32[1,128], index: 10, kind: input, shape index: {}]
  %s11 = inlined_call_operand.vmem [shape: bf16[4,64], index: 11, kind: input, shape index: {}]
  %s12 = inlined_call_operand.vmem [shape: bf16[4,64], index: 12, kind: input, shape index: {}]
  %s13 = inlined_call_operand.vmem [shape: f32[3,4,128], index: 13, kind: output, shape index: {}]
  %s14 = sld [smem:[#allocation0]]
  $region62: #{spatial_temporal_forward.2} parent=0
    _
  %s16 = ssub.s32 1, %s14
  %s17 = scalar_select 0, %s16, %s14
  // Predicated region
  $region2: #{spatial_temporal_forward.2} parent=0 // pred_check
    _
  $region3: #{spatial_temporal_forward.2} parent=0 // pred_check_branch
    %19 = sbr.rel (0) target = $region5
  $region4: #{spatial_temporal_forward.2} parent=0 // pred_region
    _
  $region5: #{spatial_temporal_forward.2} parent=0 // pred_fallthru
    _
  // Predicated region
  $region6: #{spatial_temporal_forward.2} parent=0 // pred_check
    _
  $region7: #{spatial_temporal_forward.2} parent=0 // pred_check_branch
    %21 = sbr.rel (0) target = $region9
  $region8: #{spatial_temporal_forward.2} parent=0 // pred_region
    _
  $region9: #{spatial_temporal_forward.2} parent=0 // pred_fallthru
    _
  // Predicated region
  $region10: #{spatial_temporal_forward.2} parent=0 // pred_check
    _
  $region11: #{spatial_temporal_forward.2} parent=0 // pred_check_branch
    %23 = sbr.rel (0) target = $region13
  $region12: #{spatial_temporal_forward.2} parent=0 // pred_region
    _
  $region13: #{spatial_temporal_forward.2} parent=0 // pred_fallthru
    _
  // Predicated region
  $region14: #{spatial_temporal_forward.2} parent=0 // pred_check
    _
  $region15: #{spatial_temporal_forward.2} parent=0 // pred_check_branch
    %25 = sbr.rel (0) target = $region17
  $region16: #{spatial_temporal_forward.2} parent=0 // pred_region
    _
  $region17: #{spatial_temporal_forward.2} parent=0 // pred_fallthru
    _
  // Predicated region
  $region18: #{spatial_temporal_forward.2} parent=0 // pred_check
    _
  $region19: #{spatial_temporal_forward.2} parent=0 // pred_check_branch
    %27 = sbr.rel (0) target = $region21
  $region20: #{spatial_temporal_forward.2} parent=0 // pred_region
    _
  $region21: #{spatial_temporal_forward.2} parent=0 // pred_fallthru
    _
  // Predicated region
  $region22: #{spatial_temporal_forward.2} parent=0 // pred_check
    _
  $region23: #{spatial_temporal_forward.2} parent=0 // pred_check_branch
    %29 = sbr.rel (0) target = $region25
  $region24: #{spatial_temporal_forward.2} parent=0 // pred_region
    _
  $region25: #{spatial_temporal_forward.2} parent=0 // pred_fallthru
    _
  // Predicated region
  $region26: #{spatial_temporal_forward.2} parent=0 // pred_check
    _
  $region27: #{spatial_temporal_forward.2} parent=0 // pred_check_branch
    %31 = sbr.rel (0) target = $region29
  $region28: #{spatial_temporal_forward.2} parent=0 // pred_region
    _
  $region29: #{spatial_temporal_forward.2} parent=0 // pred_fallthru
    _
  // Predicated region
  $region30: #{spatial_temporal_forward.2} parent=0 // pred_check
    _
  $region31: #{spatial_temporal_forward.2} parent=0 // pred_check_branch
    %33 = sbr.rel (0) target = $region33
  $region32: #{spatial_temporal_forward.2} parent=0 // pred_region
    _
  $region33: #{spatial_temporal_forward.2} parent=0 // pred_fallthru
    _
  // Predicated region
  $region34: #{spatial_temporal_forward.2} parent=0 // pred_check
    _
  $region35: #{spatial_temporal_forward.2} parent=0 // pred_check_branch
    %35 = sbr.rel (0) target = $region37
  $region36: #{spatial_temporal_forward.2} parent=0 // pred_region
    _
  $region37: #{spatial_temporal_forward.2} parent=0 // pred_fallthru
    _
  // Predicated region
  $region38: #{spatial_temporal_forward.2} parent=0 // pred_check
    _
  $region39: #{spatial_temporal_forward.2} parent=0 // pred_check_branch
    %37 = sbr.rel (0) target = $region41
  $region40: #{spatial_temporal_forward.2} parent=0 // pred_region
    _
  $region41: #{spatial_temporal_forward.2} parent=0 // pred_fallthru
    _
  // Predicated region
  $region42: #{spatial_temporal_forward.2} parent=0 // pred_check
    _
  $region43: #{spatial_temporal_forward.2} parent=0 // pred_check_branch
    %39 = sbr.rel (0) target = $region45
  $region44: #{spatial_temporal_forward.2} parent=0 // pred_region
    _
  $region45: #{spatial_temporal_forward.2} parent=0 // pred_fallthru
    _
  // Predicated region
  $region46: #{spatial_temporal_forward.2} parent=0 // pred_check
    _
  $region47: #{spatial_temporal_forward.2} parent=0 // pred_check_branch
    %41 = sbr.rel (0) target = $region49
  $region48: #{spatial_temporal_forward.2} parent=0 // pred_region
    _
  $region49: #{spatial_temporal_forward.2} parent=0 // pred_fallthru
    _
  // Predicated region
  $region50: #{spatial_temporal_forward.2} parent=0 // pred_check
    _
  $region51: #{spatial_temporal_forward.2} parent=0 // pred_check_branch
    %43 = sbr.rel (0) target = $region53
  $region52: #{spatial_temporal_forward.2} parent=0 // pred_region
    _
  $region53: #{spatial_temporal_forward.2} parent=0 // pred_fallthru
    _
  %v45 = vld [vmem:[%s0] sm:$0xff]
  %v46 = vld [vmem:[%s0 + $0x8] sm:$0xff]
  %v47 = vld [vmem:[%s0 + $0x10] sm:$0xff]
  %v48 = vld [vmem:[%s0 + $0x18] sm:$0xff]
  %v49 = vld [vmem:[%s0 + $0x20] sm:$0xff]
  %v50 = vld [vmem:[%s0 + $0x28] sm:$0xff]
  %v51 = vld [vmem:[%s0 + $0x30] sm:$0xff]
  %v52 = vld [vmem:[%s0 + $0x38] sm:$0xff]
  %v53 = vld [vmem:[%s0 + $0x40] sm:$0xff]
  %v54 = vld [vmem:[%s0 + $0x48] sm:$0xff]
  %v55 = vld [vmem:[%s0 + $0x50] sm:$0xff]
  %v56 = vld [vmem:[%s0 + $0x58] sm:$0xff]
  %v57 = vld [vmem:[%s0 + $0x60] sm:$0xff]
  %v58 = vld [vmem:[%s0 + $0x68] sm:$0xff]
  %v59 = vld [vmem:[%s0 + $0x70] sm:$0xff]
  %v60 = vld [vmem:[%s0 + $0x78] sm:$0xff]
  %v61 = vpack.c.bf16 %v47, %v45
  %v62 = vpack.c.bf16 %v48, %v46
  %v63 = vpack.c.bf16 %v51, %v49
  %v64 = vpack.c.bf16 %v52, %v50
  %v65 = vpack.c.bf16 %v55, %v53
  %v66 = vpack.c.bf16 %v56, %v54
  %v67 = vpack.c.bf16 %v59, %v57
  %v68 = vpack.c.bf16 %v60, %v58
  %v69 = vld [vmem:[%s1] sm:$0xf]
  %v70 = vld [vmem:[%s1 + $0x4] sm:$0xf]
  %v71 = vld [vmem:[%s1 + $0x8] sm:$0xf]
  %v72 = vld [vmem:[%s1 + $0xc] sm:$0xf]
  %v73 = vld [vmem:[%s1 + $0x10] sm:$0xf]
  %v74 = vld [vmem:[%s1 + $0x14] sm:$0xf]
  %v75 = vld [vmem:[%s1 + $0x18] sm:$0xf]
  %v76 = vld [vmem:[%s1 + $0x1c] sm:$0xf]
  %v77 = vld [vmem:[%s1 + $0x20] sm:$0xf]
  %v78 = vld [vmem:[%s1 + $0x24] sm:$0xf]
  %v79 = vld [vmem:[%s1 + $0x28] sm:$0xf]
  %v80 = vld [vmem:[%s1 + $0x2c] sm:$0xf]
  %v81 = vld [vmem:[%s1 + $0x30] sm:$0xf]
  %v82 = vld [vmem:[%s1 + $0x34] sm:$0xf]
  %v83 = vld [vmem:[%s1 + $0x38] sm:$0xf]
  %v84 = vld [vmem:[%s1 + $0x3c] sm:$0xf]
  %v85 = vld [vmem:[%s1 + $0x40] sm:$0xf]
  %v86 = vld [vmem:[%s1 + $0x44] sm:$0xf]
  %v87 = vld [vmem:[%s1 + $0x48] sm:$0xf]
  %v88 = vld [vmem:[%s1 + $0x4c] sm:$0xf]
  %v89 = vld [vmem:[%s1 + $0x50] sm:$0xf]
  %v90 = vld [vmem:[%s1 + $0x54] sm:$0xf]
  %v91 = vld [vmem:[%s1 + $0x58] sm:$0xf]
  %v92 = vld [vmem:[%s1 + $0x5c] sm:$0xf]
  %v117 = vunpack.c.l.b16 %v69
  %v118 = vunpack.c.l.b16 %v70
  %v119 = vunpack.c.l.b16 %v71
  %v120 = vunpack.c.l.b16 %v72
  %v121 = vunpack.c.l.b16 %v73
  %v122 = vunpack.c.l.b16 %v74
  %v123 = vunpack.c.l.b16 %v75
  %v124 = vunpack.c.l.b16 %v76
  %v125 = vunpack.c.l.b16 %v77
  %v126 = vunpack.c.l.b16 %v78
  %v127 = vunpack.c.l.b16 %v79
  %v128 = vunpack.c.l.b16 %v80
  %v129 = vunpack.c.l.b16 %v81
  %v130 = vunpack.c.l.b16 %v82
  %v131 = vunpack.c.l.b16 %v83
  %v132 = vunpack.c.l.b16 %v84
  %v133 = vunpack.c.l.b16 %v85
  %v134 = vunpack.c.l.b16 %v86
  %v135 = vunpack.c.l.b16 %v87
  %v136 = vunpack.c.l.b16 %v88
  %v137 = vunpack.c.l.b16 %v89
  %v138 = vunpack.c.l.b16 %v90
  %v139 = vunpack.c.l.b16 %v91
  %v140 = vunpack.c.l.b16 %v92
  %v141 = vpack.c.b16 %v118, %v117
  %v142 = vpack.c.b16 %v120, %v119
  %v143 = vpack.c.b16 %v122, %v121
  %v144 = vpack.c.b16 %v124, %v123
  %v145 = vpack.c.b16 %v126, %v125
  %v146 = vpack.c.b16 %v128, %v127
  %v147 = vpack.c.b16 %v130, %v129
  %v148 = vpack.c.b16 %v132, %v131
  %v149 = vpack.c.b16 %v134, %v133
  %v150 = vpack.c.b16 %v136, %v135
  %v151 = vpack.c.b16 %v138, %v137
  %v152 = vpack.c.b16 %v140, %v139
  %vm165 = vcmask 523264
  %v167 = vsel %vm165, %v62, 0
  %v170 = vsel %vm165, %v64, 0
  %v173 = vsel %vm165, %v66, 0
  %v176 = vsel %vm165, %v68, 0
  %178 = vmatprep.subr.bf16.mxu0 0
  %179 = vmatpush1.bf16.msra.mxu0 %v148
  %180 = vmatprep.subr.bf16.mxu0 0
  %181 = vmatpush1.bf16.msra.mxu0 %v147
  %182 = vmatprep.subr.bf16.mxu0 0
  %183 = vmatpush1.bf16.msra.mxu0 %v146
  %184 = vmatprep.subr.bf16.mxu0 0
  %185 = vmatpush1.bf16.msra.mxu0 %v145
  %186 = vmatprep.subr.bf16.mxu0 0
  %187 = vmatpush1.bf16.msra.mxu0 %v144
  %188 = vmatprep.subr.bf16.mxu0 0
  %189 = vmatpush1.bf16.msra.mxu0 %v143
  %190 = vmatprep.subr.bf16.mxu0 0
  %191 = vmatpush1.bf16.msra.mxu0 %v142
  %192 = vmatprep.subr.bf16.mxu0 0
  %193 = vmatpush1.bf16.msra.mxu0 %v141
  %194 = vmatprep.subr.bf16.mxu0 0
  %195 = vmatpush2.bf16.msra.mxu0 0
  %196 = vmatprep.subr.bf16.mxu0 0
  %197 = vmatpush2.bf16.msra.mxu0 0
  %198 = vmatprep.subr.bf16.mxu0 0
  %199 = vmatpush2.bf16.msra.mxu0 0
  %200 = vmatprep.subr.bf16.mxu0 0
  %201 = vmatpush2.bf16.msra.mxu0 0
  %202 = vmatprep.subr.bf16.mxu0 0
  %203 = vmatpush2.bf16.msra.mxu0 %v152
  %204 = vmatprep.subr.bf16.mxu0 0
  %205 = vmatpush2.bf16.msra.mxu0 %v151
  %206 = vmatprep.subr.bf16.mxu0 0
  %207 = vmatpush2.bf16.msra.mxu0 %v150
  %208 = vmatprep.subr.bf16.mxu0 0
  %209 = vmatpush2.bf16.msra.mxu0 %v149
  %210 = vmatprep.mubr.bf16.mxu0 %v167
  %211 = vmatmul.mubr.bf16.gmra.mxu0 %v61
  %v212 = vpop.f32.mrf.mxu0
  %v213 = vadd.f32 0.0, %v212
  %v214 = vpop.f32.mrf.mxu0
  %v215 = vpop.f32.mrf.mxu0
  %v216 = vadd.f32 0.0, %v215
  %v217 = vpop.f32.mrf.mxu0
  %218 = vmatprep.mubr.bf16.mxu0 %v170
  %219 = vmatmul.mubr.bf16.gmra.mxu0 %v63
  %v220 = vpop.f32.mrf.mxu0
  %v221 = vadd.f32 0.0, %v220
  %v222 = vpop.f32.mrf.mxu0
  %v223 = vpop.f32.mrf.mxu0
  %v224 = vadd.f32 0.0, %v223
  %v225 = vpop.f32.mrf.mxu0
  %226 = vmatprep.mubr.bf16.mxu0 %v173
  %227 = vmatmul.mubr.bf16.gmra.mxu0 %v65
  %v228 = vpop.f32.mrf.mxu0
  %v229 = vadd.f32 0.0, %v228
  %v230 = vpop.f32.mrf.mxu0
  %v231 = vpop.f32.mrf.mxu0
  %v232 = vadd.f32 0.0, %v231
  %v233 = vpop.f32.mrf.mxu0
  %234 = vmatprep.mubr.bf16.mxu0 %v176
  %235 = vmatmul.mubr.bf16.gmra.mxu0 %v67
  %v236 = vpop.f32.mrf.mxu0
  %v237 = vadd.f32 0.0, %v236
  %v238 = vpop.f32.mrf.mxu0
  %v239 = vpop.f32.mrf.mxu0
  %v240 = vadd.f32 0.0, %v239
  %v241 = vpop.f32.mrf.mxu0
  %242 = vdwg.mxu0
  %v243 = vmax.f32 %v213, 0.0
  %v244 = vmax.f32 %v216, 0.0
  %v245 = vmax.f32 %v221, 0.0
  %v246 = vmax.f32 %v224, 0.0
  %v247 = vmax.f32 %v229, 0.0
  %v248 = vmax.f32 %v232, 0.0
  %v249 = vmax.f32 %v237, 0.0
  %v250 = vmax.f32 %v240, 0.0
  %v251 = vpack.c.bf16 %v244, %v243
  %v252 = vpack.c.bf16 %v246, %v245
  %v253 = vpack.c.bf16 %v248, %v247
  %v254 = vpack.c.bf16 %v250, %v249
  %v255 = vld [vmem:[%s2] sm:$0xf]
  %v256 = vld [vmem:[%s2 + $0x4] sm:$0xf]
  %v257 = vld [vmem:[%s2 + $0x8] sm:$0xf]
  %v258 = vld [vmem:[%s2 + $0xc] sm:$0xf]
  %v263 = vunpack.c.l.b16 %v255
  %v264 = vunpack.c.l.b16 %v256
  %v265 = vunpack.c.l.b16 %v257
  %v266 = vunpack.c.l.b16 %v258
  %v267 = vpack.c.b16 %v264, %v263
  %v268 = vpack.c.b16 %v266, %v265
  %v270 = vsel %vm165, %v267, 0
  %v273 = vsel %vm165, %v268, 0
  %275 = vmatprep.subr.bf16.mxu0 0
  %276 = vmatpush1.bf16.msra.mxu0 0
  %277 = vmatprep.subr.bf16.mxu0 0
  %278 = vmatpush1.bf16.msra.mxu0 0
  %279 = vmatprep.subr.bf16.mxu0 0
  %280 = vmatpush1.bf16.msra.mxu0 0
  %281 = vmatprep.subr.bf16.mxu0 0
  %282 = vmatpush1.bf16.msra.mxu0 0
  %283 = vmatprep.subr.bf16.mxu0 0
  %284 = vmatpush1.bf16.msra.mxu0 %v254
  %285 = vmatprep.subr.bf16.mxu0 0
  %286 = vmatpush1.bf16.msra.mxu0 %v253
  %287 = vmatprep.subr.bf16.mxu0 0
  %288 = vmatpush1.bf16.msra.mxu0 %v252
  %289 = vmatprep.subr.bf16.mxu0 0
  %290 = vmatpush1.bf16.msra.mxu0 %v251
  %291 = vmatprep.subr.bf16.mxu0 0
  %292 = vmatpush2.bf16.msra.mxu0 0
  %293 = vmatprep.subr.bf16.mxu0 0
  %294 = vmatpush2.bf16.msra.mxu0 0
  %295 = vmatprep.subr.bf16.mxu0 0
  %296 = vmatpush2.bf16.msra.mxu0 0
  %297 = vmatprep.subr.bf16.mxu0 0
  %298 = vmatpush2.bf16.msra.mxu0 0
  %299 = vmatprep.subr.bf16.mxu0 0
  %300 = vmatpush2.bf16.msra.mxu0 0
  %301 = vmatprep.subr.bf16.mxu0 0
  %302 = vmatpush2.bf16.msra.mxu0 0
  %303 = vmatprep.subr.bf16.mxu0 0
  %304 = vmatpush2.bf16.msra.mxu0 0
  %305 = vmatprep.subr.bf16.mxu0 0
  %306 = vmatpush2.bf16.msra.mxu0 0
  %307 = vmatprep.mubr.bf16.mxu0 0
  %308 = vmatmul.mubr.bf16.gmra.mxu0 %v270
  %v309 = vpop.f32.mrf.mxu0
  %v310 = vadd.f32 0.0, %v309
  %v311 = vpop.f32.mrf.mxu0
  %v312 = vpop.f32.mrf.mxu0
  %v313 = vadd.f32 0.0, %v312
  %v314 = vpop.f32.mrf.mxu0
  %315 = vmatprep.mubr.bf16.mxu0 0
  %316 = vmatmul.mubr.bf16.gmra.mxu0 %v273
  %v317 = vpop.f32.mrf.mxu0
  %v318 = vadd.f32 0.0, %v317
  %v319 = vpop.f32.mrf.mxu0
  %v320 = vpop.f32.mrf.mxu0
  %v321 = vadd.f32 0.0, %v320
  %v322 = vpop.f32.mrf.mxu0
  %323 = vdwg.mxu0
  %v324 = vpack.c.bf16 %v313, %v310
  %v325 = vpack.c.bf16 %v321, %v318
  %v326 = vld [vmem:[%s5] sm:$0xf]
  %v327 = vld [vmem:[%s5 + $0x4] sm:$0xf]
  %v328 = vld [vmem:[%s5 + $0x8] sm:$0xf]
  %v329 = vld [vmem:[%s5 + $0xc] sm:$0xf]
  %v330 = vld [vmem:[%s5 + $0x10] sm:$0xf]
  %v331 = vld [vmem:[%s5 + $0x14] sm:$0xf]
  %v332 = vld [vmem:[%s5 + $0x18] sm:$0xf]
  %v333 = vld [vmem:[%s5 + $0x1c] sm:$0xf]
  %v334 = vld [vmem:[%s6] sm:$0x1]
  %v336 = vlaneseq
  %v337 = vshrl.u32 %v336, 7
  %v338 = vsub.s32 0, %v337
  %v339 = vrot.slane %v334, %v338
  %v349 = vunpack.c.l.b16 %v326
  %v350 = vunpack.c.l.b16 %v327
  %v351 = vunpack.c.l.b16 %v328
  %v352 = vunpack.c.l.b16 %v329
  %v353 = vunpack.c.l.b16 %v330
  %v354 = vunpack.c.l.b16 %v331
  %v355 = vunpack.c.l.b16 %v332
  %v356 = vunpack.c.l.b16 %v333
  %v357 = vpack.c.b16 %v350, %v349
  %v358 = vpack.c.b16 %v352, %v351
  %v359 = vpack.c.b16 %v354, %v353
  %v360 = vpack.c.b16 %v356, %v355
  %v366 = vsel %vm165, %v324, 0
  %v369 = vsel %vm165, %v325, 0
  %371 = vmatprep.subr.bf16.mxu0 0
  %372 = vmatpush1.bf16.msra.mxu0 0
  %373 = vmatprep.subr.bf16.mxu0 0
  %374 = vmatpush1.bf16.msra.mxu0 0
  %375 = vmatprep.subr.bf16.mxu0 0
  %376 = vmatpush1.bf16.msra.mxu0 0
  %377 = vmatprep.subr.bf16.mxu0 0
  %378 = vmatpush1.bf16.msra.mxu0 0
  %379 = vmatprep.subr.bf16.mxu0 0
  %380 = vmatpush1.bf16.msra.mxu0 %v360
  %381 = vmatprep.subr.bf16.mxu0 0
  %382 = vmatpush1.bf16.msra.mxu0 %v359
  %383 = vmatprep.subr.bf16.mxu0 0
  %384 = vmatpush1.bf16.msra.mxu0 %v358
  %385 = vmatprep.subr.bf16.mxu0 0
  %386 = vmatpush1.bf16.msra.mxu0 %v357
  %387 = vmatprep.subr.bf16.mxu0 0
  %388 = vmatpush2.bf16.msra.mxu0 0
  %389 = vmatprep.subr.bf16.mxu0 0
  %390 = vmatpush2.bf16.msra.mxu0 0
  %391 = vmatprep.subr.bf16.mxu0 0
  %392 = vmatpush2.bf16.msra.mxu0 0
  %393 = vmatprep.subr.bf16.mxu0 0
  %394 = vmatpush2.bf16.msra.mxu0 0
  %395 = vmatprep.subr.bf16.mxu0 0
  %396 = vmatpush2.bf16.msra.mxu0 0
  %397 = vmatprep.subr.bf16.mxu0 0
  %398 = vmatpush2.bf16.msra.mxu0 0
  %399 = vmatprep.subr.bf16.mxu0 0
  %400 = vmatpush2.bf16.msra.mxu0 0
  %401 = vmatprep.subr.bf16.mxu0 0
  %402 = vmatpush2.bf16.msra.mxu0 0
  %403 = vmatprep.mubr.bf16.mxu0 0
  %404 = vmatmul.mubr.bf16.gmra.mxu0 %v366
  %v405 = vpop.f32.mrf.mxu0
  %v406 = vadd.f32 %v339, %v405
  %v407 = vpop.f32.mrf.mxu0
  %v408 = vpop.f32.mrf.mxu0
  %v409 = vadd.f32 %v339, %v408
  %v410 = vpop.f32.mrf.mxu0
  %411 = vmatprep.mubr.bf16.mxu0 0
  %412 = vmatmul.mubr.bf16.gmra.mxu0 %v369
  %v413 = vpop.f32.mrf.mxu0
  %v414 = vadd.f32 %v339, %v413
  %v415 = vpop.f32.mrf.mxu0
  %v416 = vpop.f32.mrf.mxu0
  %v417 = vadd.f32 %v339, %v416
  %v418 = vpop.f32.mrf.mxu0
  %419 = vdwg.mxu0
  %v420 = vld [vmem:[%s7] sm:$0x1]
  %v422 = vlaneseq
  %v423 = vshrl.u32 %v422, 7
  %v424 = vsub.s32 0, %v423
  %v425 = vrot.slane %v420, %v424
  %v427 = vmul.f32 %v406, %v425
  %v428 = vmul.f32 %v409, %v425
  %v429 = vmul.f32 %v414, %v425
  %v430 = vmul.f32 %v417, %v425
  %v431 = vld [vmem:[%s8] sm:$0x1]
  %v433 = vlaneseq
  %v434 = vshrl.u32 %v433, 7
  %v435 = vsub.s32 0, %v434
  %v436 = vrot.slane %v431, %v435
  %v438 = vadd.f32 %v427, %v436
  %v439 = vadd.f32 %v428, %v436
  %v440 = vadd.f32 %v429, %v436
  %v441 = vadd.f32 %v430, %v436
  %v442 = vadd.f32 %v438, 3.0
  %v443 = vadd.f32 %v439, 3.0
  %v444 = vadd.f32 %v440, 3.0
  %v445 = vadd.f32 %v441, 3.0
  %v446 = vmax.f32 %v442, 0.0
  %v447 = vmax.f32 %v443, 0.0
  %v448 = vmax.f32 %v444, 0.0
  %v449 = vmax.f32 %v445, 0.0
  %v450 = vmin.f32 %v446, 6.0
  %v451 = vmin.f32 %v447, 6.0
  %v452 = vmin.f32 %v448, 6.0
  %v453 = vmin.f32 %v449, 6.0
  %v454 = vmul.f32 %v438, %v450
  %v455 = vmul.f32 %v439, %v451
  %v456 = vmul.f32 %v440, %v452
  %v457 = vmul.f32 %v441, %v453
  %v458 = vmul.f32 %v454, 0.16666667
  %v459 = vmul.f32 %v455, 0.16666667
  %v460 = vmul.f32 %v456, 0.16666667
  %v461 = vmul.f32 %v457, 0.16666667
  %v462 = vpack.c.bf16 %v459, %v458
  %v463 = vpack.c.bf16 %v461, %v460
  %v464 = vld [vmem:[%s9] sm:$0xf]
  %v465 = vld [vmem:[%s10] sm:$0x1]
  %v467 = vlaneseq
  %v468 = vshrl.u32 %v467, 7
  %v469 = vsub.s32 0, %v468
  %v470 = vrot.slane %v465, %v469
  %vm472 = vcmask 64512
  %v474 = vsel %vm472, %v462, 0
  %v477 = vsel %vm472, %v463, 0
  %vm479 = vcmask 1043456
  %v481 = vsel %vm479, %v464, 0
  %483 = vmatprep.subr.bf16.mxu0 0
  %484 = vmatpush1.bf16.msra.mxu0 0
  %485 = vmatprep.subr.bf16.mxu0 0
  %486 = vmatpush1.bf16.msra.mxu0 0
  %487 = vmatprep.subr.bf16.mxu0 0
  %488 = vmatpush1.bf16.msra.mxu0 0
  %489 = vmatprep.subr.bf16.mxu0 0
  %490 = vmatpush1.bf16.msra.mxu0 0
  %491 = vmatprep.subr.bf16.mxu0 0
  %492 = vmatpush1.bf16.msra.mxu0 0
  %493 = vmatprep.subr.bf16.mxu0 0
  %494 = vmatpush1.bf16.msra.mxu0 0
  %495 = vmatprep.subr.bf16.mxu0 0
  %496 = vmatpush1.bf16.msra.mxu0 0
  %497 = vmatprep.subr.bf16.mxu0 0
  %498 = vmatpush1.bf16.msra.mxu0 %v481
  %499 = vmatprep.subr.bf16.mxu0 0
  %500 = vmatpush2.bf16.msra.mxu0 0
  %501 = vmatprep.subr.bf16.mxu0 0
  %502 = vmatpush2.bf16.msra.mxu0 0
  %503 = vmatprep.subr.bf16.mxu0 0
  %504 = vmatpush2.bf16.msra.mxu0 0
  %505 = vmatprep.subr.bf16.mxu0 0
  %506 = vmatpush2.bf16.msra.mxu0 0
  %507 = vmatprep.subr.bf16.mxu0 0
  %508 = vmatpush2.bf16.msra.mxu0 0
  %509 = vmatprep.subr.bf16.mxu0 0
  %510 = vmatpush2.bf16.msra.mxu0 0
  %511 = vmatprep.subr.bf16.mxu0 0
  %512 = vmatpush2.bf16.msra.mxu0 0
  %513 = vmatprep.subr.bf16.mxu0 0
  %514 = vmatpush2.bf16.msra.mxu0 0
  %515 = vmatprep.mubr.bf16.mxu0 0
  %516 = vmatmul.mubr.bf16.gmra.mxu0 %v474
  %v517 = vpop.f32.mrf.mxu0
  %v518 = vadd.f32 %v470, %v517
  %v519 = vpop.f32.mrf.mxu0
  %v520 = vpop.f32.mrf.mxu0
  %v521 = vadd.f32 %v470, %v520
  %v522 = vpop.f32.mrf.mxu0
  %523 = vmatprep.mubr.bf16.mxu0 0
  %524 = vmatmul.mubr.bf16.gmra.mxu0 %v477
  %v525 = vpop.f32.mrf.mxu0
  %v526 = vadd.f32 %v470, %v525
  %v527 = vpop.f32.mrf.mxu0
  %v528 = vpop.f32.mrf.mxu0
  %v529 = vadd.f32 %v470, %v528
  %v530 = vpop.f32.mrf.mxu0
  %531 = vdwg.mxu0
  %v532 = vxor.u32 %v518, 2147483648
  %v533 = vxor.u32 %v521, 2147483648
  %v534 = vxor.u32 %v526, 2147483648
  %v535 = vxor.u32 %v529, 2147483648
  %v536 = vmul.f32 %v532, 1.442695
  %v537 = vpow.pop %v536
  %v538 = vmul.f32 %v533, 1.442695
  %v539 = vpow.pop %v538
  %v540 = vmul.f32 %v534, 1.442695
  %v541 = vpow.pop %v540
  %v542 = vmul.f32 %v535, 1.442695
  %v543 = vpow.pop %v542
  %v544 = vadd.f32 %v537, 1.0
  %v545 = vadd.f32 %v539, 1.0
  %v546 = vadd.f32 %v541, 1.0
  %v547 = vadd.f32 %v543, 1.0
  %v548 = vrcp.pop %v544
  %v549 = vmul.f32 1.0, %v548
  %v550 = vrcp.pop %v545
  %v551 = vmul.f32 1.0, %v550
  %v552 = vrcp.pop %v546
  %v553 = vmul.f32 1.0, %v552
  %v554 = vrcp.pop %v547
  %v555 = vmul.f32 1.0, %v554
  %v556 = vpack.c.bf16 %v551, %v549
  %v557 = vpack.c.bf16 %v555, %v553
  %v558 = vld [vmem:[%s3] sm:$0xf]
  %v559 = vld [vmem:[%s3 + $0x4] sm:$0xf]
  %v560 = vld [vmem:[%s3 + $0x8] sm:$0xf]
  %v561 = vld [vmem:[%s3 + $0xc] sm:$0xf]
  %v562 = vld [vmem:[%s3 + $0x10] sm:$0xf]
  %v563 = vld [vmem:[%s3 + $0x14] sm:$0xf]
  %v564 = vld [vmem:[%s3 + $0x18] sm:$0xf]
  %v565 = vld [vmem:[%s3 + $0x1c] sm:$0xf]
  %v574 = vunpack.c.l.b16 %v558
  %v575 = vunpack.c.l.b16 %v559
  %v576 = vunpack.c.l.b16 %v560
  %v577 = vunpack.c.l.b16 %v561
  %v578 = vunpack.c.l.b16 %v562
  %v579 = vunpack.c.l.b16 %v563
  %v580 = vunpack.c.l.b16 %v564
  %v581 = vunpack.c.l.b16 %v565
  %v582 = vpack.c.b16 %v575, %v574
  %v583 = vpack.c.b16 %v577, %v576
  %v584 = vpack.c.b16 %v579, %v578
  %v585 = vpack.c.b16 %v581, %v580
  %vm586 = vcmask 261120
  %v588 = vsel %vm586, %v582, 0
  %v591 = vsel %vm586, %v583, 0
  %v594 = vsel %vm586, %v584, 0
  %v597 = vsel %vm586, %v585, 0
  %599 = vmatprep.subr.bf16.mxu0 0
  %600 = vmatpush1.bf16.msra.mxu0 0
  %601 = vmatprep.subr.bf16.mxu0 0
  %602 = vmatpush1.bf16.msra.mxu0 0
  %603 = vmatprep.subr.bf16.mxu0 0
  %604 = vmatpush1.bf16.msra.mxu0 0
  %605 = vmatprep.subr.bf16.mxu0 0
  %606 = vmatpush1.bf16.msra.mxu0 0
  %607 = vmatprep.subr.bf16.mxu0 0
  %608 = vmatpush1.bf16.msra.mxu0 0
  %609 = vmatprep.subr.bf16.mxu0 0
  %610 = vmatpush1.bf16.msra.mxu0 0
  %611 = vmatprep.subr.bf16.mxu0 0
  %612 = vmatpush1.bf16.msra.mxu0 %v557
  %613 = vmatprep.subr.bf16.mxu0 0
  %614 = vmatpush1.bf16.msra.mxu0 %v556
  %615 = vmatprep.subr.bf16.mxu0 0
  %616 = vmatpush2.bf16.msra.mxu0 0
  %617 = vmatprep.subr.bf16.mxu0 0
  %618 = vmatpush2.bf16.msra.mxu0 0
  %619 = vmatprep.subr.bf16.mxu0 0
  %620 = vmatpush2.bf16.msra.mxu0 0
  %621 = vmatprep.subr.bf16.mxu0 0
  %622 = vmatpush2.bf16.msra.mxu0 0
  %623 = vmatprep.subr.bf16.mxu0 0
  %624 = vmatpush2.bf16.msra.mxu0 0
  %625 = vmatprep.subr.bf16.mxu0 0
  %626 = vmatpush2.bf16.msra.mxu0 0
  %627 = vmatprep.subr.bf16.mxu0 0
  %628 = vmatpush2.bf16.msra.mxu0 0
  %629 = vmatprep.subr.bf16.mxu0 0
  %630 = vmatpush2.bf16.msra.mxu0 0
  %631 = vmatprep.mubr.bf16.mxu0 0
  %632 = vmatmul.mubr.bf16.gmra.mxu0 %v588
  %v633 = vpop.f32.mrf.mxu0
  %v634 = vadd.f32 0.0, %v633
  %v635 = vpop.f32.mrf.mxu0
  %v636 = vpop.f32.mrf.mxu0
  %v637 = vadd.f32 0.0, %v636
  %v638 = vpop.f32.mrf.mxu0
  %639 = vmatprep.mubr.bf16.mxu0 0
  %640 = vmatmul.mubr.bf16.gmra.mxu0 %v591
  %v641 = vpop.f32.mrf.mxu0
  %v642 = vadd.f32 0.0, %v641
  %v643 = vpop.f32.mrf.mxu0
  %v644 = vpop.f32.mrf.mxu0
  %v645 = vadd.f32 0.0, %v644
  %v646 = vpop.f32.mrf.mxu0
  %647 = vmatprep.mubr.bf16.mxu0 0
  %648 = vmatmul.mubr.bf16.gmra.mxu0 %v594
  %v649 = vpop.f32.mrf.mxu0
  %v650 = vadd.f32 0.0, %v649
  %v651 = vpop.f32.mrf.mxu0
  %v652 = vpop.f32.mrf.mxu0
  %v653 = vadd.f32 0.0, %v652
  %v654 = vpop.f32.mrf.mxu0
  %655 = vmatprep.mubr.bf16.mxu0 0
  %656 = vmatmul.mubr.bf16.gmra.mxu0 %v597
  %v657 = vpop.f32.mrf.mxu0
  %v658 = vadd.f32 0.0, %v657
  %v659 = vpop.f32.mrf.mxu0
  %v660 = vpop.f32.mrf.mxu0
  %v661 = vadd.f32 0.0, %v660
  %v662 = vpop.f32.mrf.mxu0
  %663 = vdwg.mxu0
  %v664 = vld [vmem:[%s4] sm:$0xf]
  %v665 = vld [vmem:[%s4 + $0x4] sm:$0xf]
  %v666 = vld [vmem:[%s4 + $0x8] sm:$0xf]
  %v667 = vld [vmem:[%s4 + $0xc] sm:$0xf]
  %v668 = vld [vmem:[%s4 + $0x10] sm:$0xf]
  %v669 = vld [vmem:[%s4 + $0x14] sm:$0xf]
  %v670 = vld [vmem:[%s4 + $0x18] sm:$0xf]
  %v671 = vld [vmem:[%s4 + $0x1c] sm:$0xf]
  %v680 = vunpack.c.l.b16 %v664
  %v681 = vunpack.c.l.b16 %v665
  %v682 = vunpack.c.l.b16 %v666
  %v683 = vunpack.c.l.b16 %v667
  %v684 = vunpack.c.l.b16 %v668
  %v685 = vunpack.c.l.b16 %v669
  %v686 = vunpack.c.l.b16 %v670
  %v687 = vunpack.c.l.b16 %v671
  %v688 = vpack.c.b16 %v681, %v680
  %v689 = vpack.c.b16 %v683, %v682
  %v690 = vpack.c.b16 %v685, %v684
  %v691 = vpack.c.b16 %v687, %v686
  %694 = vrot.lane.b32.xlu0 %v556, 64
  %v695 = vpop.permute.xlu0 %694
  %696 = vrot.lane.b32.xlu0 %v557, 64
  %v697 = vpop.permute.xlu0 %696
  %v701 = vsel %vm586, %v688, 0
  %v704 = vsel %vm586, %v689, 0
  %v707 = vsel %vm586, %v690, 0
  %v710 = vsel %vm586, %v691, 0
  %712 = vmatprep.subr.bf16.mxu0 0
  %713 = vmatpush1.bf16.msra.mxu0 0
  %714 = vmatprep.subr.bf16.mxu0 0
  %715 = vmatpush1.bf16.msra.mxu0 0
  %716 = vmatprep.subr.bf16.mxu0 0
  %717 = vmatpush1.bf16.msra.mxu0 0
  %718 = vmatprep.subr.bf16.mxu0 0
  %719 = vmatpush1.bf16.msra.mxu0 0
  %720 = vmatprep.subr.bf16.mxu0 0
  %721 = vmatpush1.bf16.msra.mxu0 0
  %722 = vmatprep.subr.bf16.mxu0 0
  %723 = vmatpush1.bf16.msra.mxu0 0
  %724 = vmatprep.subr.bf16.mxu0 0
  %725 = vmatpush1.bf16.msra.mxu0 %v697
  %726 = vmatprep.subr.bf16.mxu0 0
  %727 = vmatpush1.bf16.msra.mxu0 %v695
  %728 = vmatprep.subr.bf16.mxu0 0
  %729 = vmatpush2.bf16.msra.mxu0 0
  %730 = vmatprep.subr.bf16.mxu0 0
  %731 = vmatpush2.bf16.msra.mxu0 0
  %732 = vmatprep.subr.bf16.mxu0 0
  %733 = vmatpush2.bf16.msra.mxu0 0
  %734 = vmatprep.subr.bf16.mxu0 0
  %735 = vmatpush2.bf16.msra.mxu0 0
  %736 = vmatprep.subr.bf16.mxu0 0
  %737 = vmatpush2.bf16.msra.mxu0 0
  %738 = vmatprep.subr.bf16.mxu0 0
  %739 = vmatpush2.bf16.msra.mxu0 0
  %740 = vmatprep.subr.bf16.mxu0 0
  %741 = vmatpush2.bf16.msra.mxu0 0
  %742 = vmatprep.subr.bf16.mxu0 0
  %743 = vmatpush2.bf16.msra.mxu0 0
  %744 = vmatprep.mubr.bf16.mxu0 0
  %745 = vmatmul.mubr.bf16.gmra.mxu0 %v701
  %v746 = vpop.f32.mrf.mxu0
  %v747 = vadd.f32 0.0, %v746
  %v748 = vpop.f32.mrf.mxu0
  %v749 = vpop.f32.mrf.mxu0
  %v750 = vadd.f32 0.0, %v749
  %v751 = vpop.f32.mrf.mxu0
  %752 = vmatprep.mubr.bf16.mxu0 0
  %753 = vmatmul.mubr.bf16.gmra.mxu0 %v704
  %v754 = vpop.f32.mrf.mxu0
  %v755 = vadd.f32 0.0, %v754
  %v756 = vpop.f32.mrf.mxu0
  %v757 = vpop.f32.mrf.mxu0
  %v758 = vadd.f32 0.0, %v757
  %v759 = vpop.f32.mrf.mxu0
  %760 = vmatprep.mubr.bf16.mxu0 0
  %761 = vmatmul.mubr.bf16.gmra.mxu0 %v707
  %v762 = vpop.f32.mrf.mxu0
  %v763 = vadd.f32 0.0, %v762
  %v764 = vpop.f32.mrf.mxu0
  %v765 = vpop.f32.mrf.mxu0
  %v766 = vadd.f32 0.0, %v765
  %v767 = vpop.f32.mrf.mxu0
  %768 = vmatprep.mubr.bf16.mxu0 0
  %769 = vmatmul.mubr.bf16.gmra.mxu0 %v710
  %v770 = vpop.f32.mrf.mxu0
  %v771 = vadd.f32 0.0, %v770
  %v772 = vpop.f32.mrf.mxu0
  %v773 = vpop.f32.mrf.mxu0
  %v774 = vadd.f32 0.0, %v773
  %v775 = vpop.f32.mrf.mxu0
  %776 = vdwg.mxu0
  %v777 = vmul.f32 %v243, %v634
  %v778 = vmul.f32 %v244, %v637
  %v779 = vmul.f32 %v245, %v642
  %v780 = vmul.f32 %v246, %v645
  %v781 = vmul.f32 %v247, %v650
  %v782 = vmul.f32 %v248, %v653
  %v783 = vmul.f32 %v249, %v658
  %v784 = vmul.f32 %v250, %v661
  %v785 = vmul.f32 %v777, %v747
  %v786 = vmul.f32 %v778, %v750
  %v787 = vmul.f32 %v779, %v755
  %v788 = vmul.f32 %v780, %v758
  %v789 = vmul.f32 %v781, %v763
  %v790 = vmul.f32 %v782, %v766
  %v791 = vmul.f32 %v783, %v771
  %v792 = vmul.f32 %v784, %v774
  %v793 = vmul.f32 %v785, %v243
  %v794 = vmul.f32 %v786, %v244
  %v795 = vmul.f32 %v787, %v245
  %v796 = vmul.f32 %v788, %v246
  %v797 = vmul.f32 %v789, %v247
  %v798 = vmul.f32 %v790, %v248
  %v799 = vmul.f32 %v791, %v249
  %v800 = vmul.f32 %v792, %v250
  %v801 = vpack.c.bf16 %v794, %v793
  %v802 = vpack.c.bf16 %v796, %v795
  %v803 = vpack.c.bf16 %v798, %v797
  %v804 = vpack.c.bf16 %v800, %v799
  %v805 = vld [vmem:[%s11] sm:$0x3]
  %v807 = vsel %vm165, %v805, 0
  %809 = vmatprep.subr.bf16.mxu0 0
  %810 = vmatpush1.bf16.msra.mxu0 0
  %811 = vmatprep.subr.bf16.mxu0 0
  %812 = vmatpush1.bf16.msra.mxu0 0
  %813 = vmatprep.subr.bf16.mxu0 0
  %814 = vmatpush1.bf16.msra.mxu0 0
  %815 = vmatprep.subr.bf16.mxu0 0
  %816 = vmatpush1.bf16.msra.mxu0 0
  %817 = vmatprep.subr.bf16.mxu0 0
  %818 = vmatpush1.bf16.msra.mxu0 %v804
  %819 = vmatprep.subr.bf16.mxu0 0
  %820 = vmatpush1.bf16.msra.mxu0 %v803
  %821 = vmatprep.subr.bf16.mxu0 0
  %822 = vmatpush1.bf16.msra.mxu0 %v802
  %823 = vmatprep.subr.bf16.mxu0 0
  %824 = vmatpush1.bf16.msra.mxu0 %v801
  %825 = vmatprep.subr.bf16.mxu0 0
  %826 = vmatpush2.bf16.msra.mxu0 0
  %827 = vmatprep.subr.bf16.mxu0 0
  %828 = vmatpush2.bf16.msra.mxu0 0
  %829 = vmatprep.subr.bf16.mxu0 0
  %830 = vmatpush2.bf16.msra.mxu0 0
  %831 = vmatprep.subr.bf16.mxu0 0
  %832 = vmatpush2.bf16.msra.mxu0 0
  %833 = vmatprep.subr.bf16.mxu0 0
  %834 = vmatpush2.bf16.msra.mxu0 0
  %835 = vmatprep.subr.bf16.mxu0 0
  %836 = vmatpush2.bf16.msra.mxu0 0
  %837 = vmatprep.subr.bf16.mxu0 0
  %838 = vmatpush2.bf16.msra.mxu0 0
  %839 = vmatprep.subr.bf16.mxu0 0
  %840 = vmatpush2.bf16.msra.mxu0 0
  %841 = vmatprep.mubr.bf16.mxu0 0
  %842 = vmatmul.mubr.bf16.gmra.mxu0 %v807
  %v843 = vpop.f32.mrf.mxu0
  %v844 = vadd.f32 0.0, %v843
  %v845 = vpop.f32.mrf.mxu0
  %v846 = vpop.f32.mrf.mxu0
  %v847 = vpop.f32.mrf.mxu0
  %848 = vdwg.mxu0
  %v849 = vmul.f32 %v844, 0.0625
  %v850 = vld [vmem:[%s12] sm:$0x3]
  %v852 = vsel %vm165, %v850, 0
  %854 = vmatprep.subr.bf16.mxu0 0
  %855 = vmatpush1.bf16.msra.mxu0 0
  %856 = vmatprep.subr.bf16.mxu0 0
  %857 = vmatpush1.bf16.msra.mxu0 0
  %858 = vmatprep.subr.bf16.mxu0 0
  %859 = vmatpush1.bf16.msra.mxu0 0
  %860 = vmatprep.subr.bf16.mxu0 0
  %861 = vmatpush1.bf16.msra.mxu0 0
  %862 = vmatprep.subr.bf16.mxu0 0
  %863 = vmatpush1.bf16.msra.mxu0 %v804
  %864 = vmatprep.subr.bf16.mxu0 0
  %865 = vmatpush1.bf16.msra.mxu0 %v803
  %866 = vmatprep.subr.bf16.mxu0 0
  %867 = vmatpush1.bf16.msra.mxu0 %v802
  %868 = vmatprep.subr.bf16.mxu0 0
  %869 = vmatpush1.bf16.msra.mxu0 %v801
  %870 = vmatprep.subr.bf16.mxu0 0
  %871 = vmatpush2.bf16.msra.mxu0 0
  %872 = vmatprep.subr.bf16.mxu0 0
  %873 = vmatpush2.bf16.msra.mxu0 0
  %874 = vmatprep.subr.bf16.mxu0 0
  %875 = vmatpush2.bf16.msra.mxu0 0
  %876 = vmatprep.subr.bf16.mxu0 0
  %877 = vmatpush2.bf16.msra.mxu0 0
  %878 = vmatprep.subr.bf16.mxu0 0
  %879 = vmatpush2.bf16.msra.mxu0 0
  %880 = vmatprep.subr.bf16.mxu0 0
  %881 = vmatpush2.bf16.msra.mxu0 0
  %882 = vmatprep.subr.bf16.mxu0 0
  %883 = vmatpush2.bf16.msra.mxu0 0
  %884 = vmatprep.subr.bf16.mxu0 0
  %885 = vmatpush2.bf16.msra.mxu0 0
  %886 = vmatprep.mubr.bf16.mxu0 0
  %887 = vmatmul.mubr.bf16.gmra.mxu0 %v852
  %v888 = vpop.f32.mrf.mxu0
  %v889 = vadd.f32 0.0, %v888
  %v890 = vpop.f32.mrf.mxu0
  %v891 = vpop.f32.mrf.mxu0
  %v892 = vpop.f32.mrf.mxu0
  %893 = vdwg.mxu0
  %v894 = vsel %vm165, %v793, 0.0
  %895 = vadd.xlane.f32.xlu0 %v894
  %v896 = vpop.xlane.xlu0 %895
  %v897 = vsel %vm165, %v794, 0.0
  %898 = vadd.xlane.f32.xlu0 %v897
  %v899 = vpop.xlane.xlu0 %898
  %v900 = vsel %vm165, %v795, 0.0
  %901 = vadd.xlane.f32.xlu0 %v900
  %v902 = vpop.xlane.xlu0 %901
  %v903 = vsel %vm165, %v796, 0.0
  %904 = vadd.xlane.f32.xlu0 %v903
  %v905 = vpop.xlane.xlu0 %904
  %v906 = vsel %vm165, %v797, 0.0
  %907 = vadd.xlane.f32.xlu0 %v906
  %v908 = vpop.xlane.xlu0 %907
  %v909 = vsel %vm165, %v798, 0.0
  %910 = vadd.xlane.f32.xlu0 %v909
  %v911 = vpop.xlane.xlu0 %910
  %v912 = vsel %vm165, %v799, 0.0
  %913 = vadd.xlane.f32.xlu0 %v912
  %v914 = vpop.xlane.xlu0 %913
  %v915 = vsel %vm165, %v800, 0.0
  %916 = vadd.xlane.f32.xlu0 %v915
  %v917 = vpop.xlane.xlu0 %916
  %v918 = vrcp.pop 64.0
  %v919 = vmul.f32 %v896, %v918
  %v920 = vmul.f32 %v899, %v918
  %v921 = vmul.f32 %v902, %v918
  %v922 = vmul.f32 %v905, %v918
  %v923 = vmul.f32 %v908, %v918
  %v924 = vmul.f32 %v911, %v918
  %v925 = vmul.f32 %v914, %v918
  %v926 = vmul.f32 %v917, %v918
  %v927 = vmax.f32 %v919, %v923
  %v928 = vmax.f32 %v920, %v924
  %v929 = vmax.f32 %v921, %v925
  %v930 = vmax.f32 %v922, %v926
  %v931 = vmax.f32 %v927, %v928
  %v932 = vmax.f32 %v929, %v930
  %v933 = vmax.f32 %v931, %v932
  %v934 = vrot.slane %v933, 4
  %v935 = vmax.f32 %v933, %v934
  %v936 = vrot.slane %v935, 2
  %v937 = vmax.f32 %v935, %v936
  %v938 = vrot.slane %v937, 1
  %v939 = vmax.f32 %v937, %v938
  %s940 = vtos %v939
  %v941 = vstv %s940
  %v942 = vsub.f32 %v919, %v941
  %v943 = vsub.f32 %v920, %v941
  %v944 = vsub.f32 %v921, %v941
  %v945 = vsub.f32 %v922, %v941
  %v946 = vsub.f32 %v923, %v941
  %v947 = vsub.f32 %v924, %v941
  %v948 = vsub.f32 %v925, %v941
  %v949 = vsub.f32 %v926, %v941
  %v950 = vmul.f32 %v942, 1.442695
  %v951 = vpow.pop %v950
  %v952 = vmul.f32 %v943, 1.442695
  %v953 = vpow.pop %v952
  %v954 = vmul.f32 %v944, 1.442695
  %v955 = vpow.pop %v954
  %v956 = vmul.f32 %v945, 1.442695
  %v957 = vpow.pop %v956
  %v958 = vmul.f32 %v946, 1.442695
  %v959 = vpow.pop %v958
  %v960 = vmul.f32 %v947, 1.442695
  %v961 = vpow.pop %v960
  %v962 = vmul.f32 %v948, 1.442695
  %v963 = vpow.pop %v962
  %v964 = vmul.f32 %v949, 1.442695
  %v965 = vpow.pop %v964
  %v966 = vpack.c.bf16 %v953, %v951
  %v967 = vpack.c.bf16 %v957, %v955
  %v968 = vpack.c.bf16 %v961, %v959
  %v969 = vpack.c.bf16 %v965, %v963
  %v970 = vmul.bf16 %v801, %v966
  %v971 = vmul.bf16 %v802, %v967
  %v972 = vmul.bf16 %v803, %v968
  %v973 = vmul.bf16 %v804, %v969
  %974 = vmatprep.subr.bf16.mxu0 0
  %975 = vmatpush1.bf16.msra.mxu0 0
  %976 = vmatprep.subr.bf16.mxu0 0
  %977 = vmatpush1.bf16.msra.mxu0 0
  %978 = vmatprep.subr.bf16.mxu0 0
  %979 = vmatpush1.bf16.msra.mxu0 0
  %980 = vmatprep.subr.bf16.mxu0 0
  %981 = vmatpush1.bf16.msra.mxu0 0
  %982 = vmatprep.subr.bf16.mxu0 0
  %983 = vmatpush1.bf16.msra.mxu0 %v973
  %984 = vmatprep.subr.bf16.mxu0 0
  %985 = vmatpush1.bf16.msra.mxu0 %v972
  %986 = vmatprep.subr.bf16.mxu0 0
  %987 = vmatpush1.bf16.msra.mxu0 %v971
  %988 = vmatprep.subr.bf16.mxu0 0
  %989 = vmatpush1.bf16.msra.mxu0 %v970
  %990 = vmatprep.subr.bf16.mxu0 0
  %991 = vmatpush2.bf16.msra.mxu0 0
  %992 = vmatprep.subr.bf16.mxu0 0
  %993 = vmatpush2.bf16.msra.mxu0 0
  %994 = vmatprep.subr.bf16.mxu0 0
  %995 = vmatpush2.bf16.msra.mxu0 0
  %996 = vmatprep.subr.bf16.mxu0 0
  %997 = vmatpush2.bf16.msra.mxu0 0
  %998 = vmatprep.subr.bf16.mxu0 0
  %999 = vmatpush2.bf16.msra.mxu0 0
  %1000 = vmatprep.subr.bf16.mxu0 0
  %1001 = vmatpush2.bf16.msra.mxu0 0
  %1002 = vmatprep.subr.bf16.mxu0 0
  %1003 = vmatpush2.bf16.msra.mxu0 0
  %1004 = vmatprep.subr.bf16.mxu0 0
  %1005 = vmatpush2.bf16.msra.mxu0 0
  %1006 = vmatprep.mubr.bf16.mxu0 0
  %1007 = vmatmul.mubr.bf16.gmra.mxu0 %v807
  %v1008 = vpop.f32.mrf.mxu0
  %v1009 = vadd.f32 0.0, %v1008
  %v1010 = vpop.f32.mrf.mxu0
  %v1011 = vpop.f32.mrf.mxu0
  %v1012 = vpop.f32.mrf.mxu0
  %1013 = vdwg.mxu0
  %1014 = vmatprep.subr.bf16.mxu0 0
  %1015 = vmatpush1.bf16.msra.mxu0 0
  %1016 = vmatprep.subr.bf16.mxu0 0
  %1017 = vmatpush1.bf16.msra.mxu0 0
  %1018 = vmatprep.subr.bf16.mxu0 0
  %1019 = vmatpush1.bf16.msra.mxu0 0
  %1020 = vmatprep.subr.bf16.mxu0 0
  %1021 = vmatpush1.bf16.msra.mxu0 0
  %1022 = vmatprep.subr.bf16.mxu0 0
  %1023 = vmatpush1.bf16.msra.mxu0 %v969
  %1024 = vmatprep.subr.bf16.mxu0 0
  %1025 = vmatpush1.bf16.msra.mxu0 %v968
  %1026 = vmatprep.subr.bf16.mxu0 0
  %1027 = vmatpush1.bf16.msra.mxu0 %v967
  %1028 = vmatprep.subr.bf16.mxu0 0
  %1029 = vmatpush1.bf16.msra.mxu0 %v966
  %1030 = vmatprep.subr.bf16.mxu0 0
  %1031 = vmatpush2.bf16.msra.mxu0 0
  %1032 = vmatprep.subr.bf16.mxu0 0
  %1033 = vmatpush2.bf16.msra.mxu0 0
  %1034 = vmatprep.subr.bf16.mxu0 0
  %1035 = vmatpush2.bf16.msra.mxu0 0
  %1036 = vmatprep.subr.bf16.mxu0 0
  %1037 = vmatpush2.bf16.msra.mxu0 0
  %1038 = vmatprep.subr.bf16.mxu0 0
  %1039 = vmatpush2.bf16.msra.mxu0 0
  %1040 = vmatprep.subr.bf16.mxu0 0
  %1041 = vmatpush2.bf16.msra.mxu0 0
  %1042 = vmatprep.subr.bf16.mxu0 0
  %1043 = vmatpush2.bf16.msra.mxu0 0
  %1044 = vmatprep.subr.bf16.mxu0 0
  %1045 = vmatpush2.bf16.msra.mxu0 0
  %1046 = vmatprep.mubr.bf16.mxu0 0
  %1047 = vmatmul.mubr.bf16.gmra.mxu0 %v807
  %v1048 = vpop.f32.mrf.mxu0
  %v1049 = vadd.f32 0.0, %v1048
  %v1050 = vpop.f32.mrf.mxu0
  %v1051 = vpop.f32.mrf.mxu0
  %v1052 = vpop.f32.mrf.mxu0
  %1053 = vdwg.mxu0
  %1055 = vset.pattern.permute.xlu0 0
  %1056 = vperm.xlu0 %1055, %v1049
  %v1057 = vpop.permute.xlu0 %1056
  %v1059 = vrcp.pop %v1057
  %v1060 = vmul.f32 %v1009, %v1059
  %v1061 = vsel %vm165, %v849, 0.0
  %1062 = vst [vmem:[%s13] sm:$0xf] %v1061
  %1064 = vrot.lane.b32.xlu0 %v1060, 64
  %v1065 = vpop.permute.xlu0 %1064
  %v1067 = vsel %vm165, %v849, %v1065
  %s1068 = scalar_lea.vmem %s13, 4
  %1069 = vst [vmem:[%s1068] sm:$0xf] %v1067
  %1071 = vrot.lane.b32.xlu0 %v889, 64
  %v1072 = vpop.permute.xlu0 %1071
  %v1074 = vsel %vm165, %v849, %v1072
  %s1075 = scalar_lea.vmem %s13, 8
  %1076 = vst [vmem:[%s1075] sm:$0xf] %v1074
  // Predicated region
  $region54: #{spatial_temporal_forward.2} parent=0 // pred_check
    _
  $region55: #{spatial_temporal_forward.2} parent=0 // pred_check_branch
    %1078 = sbr.rel (0) target = $region57
  $region56: #{spatial_temporal_forward.2} parent=0 // pred_region
    _
  $region57: #{spatial_temporal_forward.2} parent=0 // pred_fallthru
    _
  // Predicated region
  $region58: #{spatial_temporal_forward.2} parent=0 // pred_check
    _
  $region59: #{spatial_temporal_forward.2} parent=0 // pred_check_branch
    %1080 = sbr.rel (0) target = $region61
  $region60: #{spatial_temporal_forward.2} parent=0 // pred_region
    _
  $region61: #{spatial_temporal_forward.2} parent=0 // pred_fallthru
    _

// kernel: spatial_temporal_forward.3
$region0: #{spatial_temporal_forward.3}
  #allocation0 [shape = 'u32[]', space=smem, size = 0x4, offset = 0x4, fixed_abs, tag = 'smem constant byte address 0x4 - core index']
  #allocation1 [shape = 'u32[144,128]{1,0:T(1,128)}', space=vmem, size = 0x12000, scoped, tag = 'internal scratch']
  %s0 = inlined_call_operand.vmem [shape: f32[3,4,128], index: 0, kind: input, shape index: {}]
  %s1 = inlined_call_operand.vmem [shape: bf16[3,4,128,32], index: 1, kind: input, shape index: {}]
  %s2 = inlined_call_operand.vmem [shape: bf16[3,3,32,32], index: 2, kind: input, shape index: {}]
  %s3 = inlined_call_operand.vmem [shape: bf16[3,3,32,32], index: 3, kind: input, shape index: {}]
  %s4 = inlined_call_operand.vmem [shape: f32[3,12,32], index: 4, kind: input, shape index: {}]
  %s5 = inlined_call_operand.vmem [shape: bf16[3,32,128], index: 5, kind: input, shape index: {}]
  %s6 = inlined_call_operand.vmem [shape: f32[3,1,128], index: 6, kind: input, shape index: {}]
  %s7 = inlined_call_operand.vmem [shape: f32[3,1,128], index: 7, kind: output, shape index: {}]
  %s8 = sld [smem:[#allocation0]]
  $region61: #{spatial_temporal_forward.3} parent=0
    _
  %s10 = ssub.s32 1, %s8
  %s11 = scalar_select 0, %s10, %s8
  loop: start=0, step=1, limit=5
  $region2: #{spatial_temporal_forward.3} parent=0 // loop_pre_header
    _
  $region3: #{spatial_temporal_forward.3} parent=0 // loop_header
    %s13 = sphi 0, %s17
    %p14 = scmp.ge.s32.totalorder %s13, 5
    %s23 = sphi 0, %s25
    %s26 = sphi 0, %s23
    %s27 = sphi 0, %s26
    %s43 = sphi 0, %s27
    %s49 = sphi 0, %s51
    %s52 = sphi 0, %s49
    %s53 = sphi 0, %s52
    %s69 = sphi 0, %s53
    %s75 = sphi 0, %s77
    %s78 = sphi 0, %s75
    %s79 = sphi 0, %s78
    %s95 = sphi 0, %s79
    %s101 = sphi 0, %s103
    %s104 = sphi 0, %s101
    %s105 = sphi 0, %s104
    %s121 = sphi 0, %s105
    %s127 = sphi 0, %s129
    %s130 = sphi 0, %s127
    %s131 = sphi 0, %s130
    %s147 = sphi 0, %s131
    %s153 = sphi 0, %s155
    %s156 = sphi 0, %s153
    %s157 = sphi 0, %s156
    %s173 = sphi 0, %s157
    %s179 = sphi 0, %s181
    %s182 = sphi 0, %s179
    %s183 = sphi 0, %s182
    %s199 = sphi 0, %s183
    %s205 = sphi 0, %s207
    %s208 = sphi 0, %s205
    %s209 = sphi 0, %s208
    %s225 = sphi 0, %s209
  $region4: #{spatial_temporal_forward.3} parent=0 // loop_header_branch
    %16 = sbr.rel (%p14) target = $region8
  $region5: #{spatial_temporal_forward.3} parent=0 // loop_body
    %s18 = ssub.s32 %s13, 1
    %s19 = ssub.s32 %s13, 2
    %s20 = sadd.s32 %s13, 1
    %s21 = ssub.s32 %s13, %s20
    %p22 = scmp.eq.s32.totalorder %s21, 0
    %s24 = sadd.s32 %s23, 1
    %s25 = scalar_select %p22, %s23, %s24
    %p28 = pneg %p22
    %p29 = scmp.eq.s32.totalorder %s13, 2
    %p30 = por %p28, %p29
    %p31 = scmp.ne.s32.totalorder %s23, %s26
    %p32 = scmp.eq.s32.totalorder %s13, 0
    %p33 = por %p31, %p32
    %p34 = scmp.ne.s32.totalorder %s23, %s26
    %p35 = scmp.eq.s32.totalorder %s18, 2
    %p36 = por %p34, %p35
    %p37 = scmp.ne.s32.totalorder %s26, %s27
    %p38 = scmp.eq.s32.totalorder %s18, 0
    %p39 = por %p37, %p38
    %p40 = scmp.ne.s32.totalorder %s26, %s27
    %p41 = scmp.eq.s32.totalorder %s19, 2
    %p42 = por %p40, %p41
    %p44 = scmp.ne.s32.totalorder %s27, %s43
    %p45 = scmp.eq.s32.totalorder %s19, 0
    %p46 = por %p44, %p45
    %s47 = ssub.s32 %s13, %s20
    %p48 = scmp.eq.s32.totalorder %s47, 0
    %s50 = sadd.s32 %s49, 1
    %s51 = scalar_select %p48, %s49, %s50
    %p54 = pneg %p48
    %p55 = scmp.eq.s32.totalorder %s13, 2
    %p56 = por %p54, %p55
    %p57 = scmp.ne.s32.totalorder %s49, %s52
    %p58 = scmp.eq.s32.totalorder %s13, 0
    %p59 = por %p57, %p58
    %p60 = scmp.ne.s32.totalorder %s49, %s52
    %p61 = scmp.eq.s32.totalorder %s18, 2
    %p62 = por %p60, %p61
    %p63 = scmp.ne.s32.totalorder %s52, %s53
    %p64 = scmp.eq.s32.totalorder %s18, 0
    %p65 = por %p63, %p64
    %p66 = scmp.ne.s32.totalorder %s52, %s53
    %p67 = scmp.eq.s32.totalorder %s19, 2
    %p68 = por %p66, %p67
    %p70 = scmp.ne.s32.totalorder %s53, %s69
    %p71 = scmp.eq.s32.totalorder %s19, 0
    %p72 = por %p70, %p71
    %s73 = ssub.s32 %s13, %s20
    %p74 = scmp.eq.s32.totalorder %s73, 0
    %s76 = sadd.s32 %s75, 1
    %s77 = scalar_select %p74, %s75, %s76
    %p80 = pneg %p74
    %p81 = scmp.eq.s32.totalorder %s13, 2
    %p82 = por %p80, %p81
    %p83 = scmp.ne.s32.totalorder %s75, %s78
    %p84 = scmp.eq.s32.totalorder %s13, 0
    %p85 = por %p83, %p84
    %p86 = scmp.ne.s32.totalorder %s75, %s78
    %p87 = scmp.eq.s32.totalorder %s18, 2
    %p88 = por %p86, %p87
    %p89 = scmp.ne.s32.totalorder %s78, %s79
    %p90 = scmp.eq.s32.totalorder %s18, 0
    %p91 = por %p89, %p90
    %p92 = scmp.ne.s32.totalorder %s78, %s79
    %p93 = scmp.eq.s32.totalorder %s19, 2
    %p94 = por %p92, %p93
    %p96 = scmp.ne.s32.totalorder %s79, %s95
    %p97 = scmp.eq.s32.totalorder %s19, 0
    %p98 = por %p96, %p97
    %s99 = ssub.s32 %s13, %s20
    %p100 = scmp.eq.s32.totalorder %s99, 0
    %s102 = sadd.s32 %s101, 1
    %s103 = scalar_select %p100, %s101, %s102
    %p106 = pneg %p100
    %p107 = scmp.eq.s32.totalorder %s13, 2
    %p108 = por %p106, %p107
    %p109 = scmp.ne.s32.totalorder %s101, %s104
    %p110 = scmp.eq.s32.totalorder %s13, 0
    %p111 = por %p109, %p110
    %p112 = scmp.ne.s32.totalorder %s101, %s104
    %p113 = scmp.eq.s32.totalorder %s18, 2
    %p114 = por %p112, %p113
    %p115 = scmp.ne.s32.totalorder %s104, %s105
    %p116 = scmp.eq.s32.totalorder %s18, 0
    %p117 = por %p115, %p116
    %p118 = scmp.ne.s32.totalorder %s104, %s105
    %p119 = scmp.eq.s32.totalorder %s19, 2
    %p120 = por %p118, %p119
    %p122 = scmp.ne.s32.totalorder %s105, %s121
    %p123 = scmp.eq.s32.totalorder %s19, 0
    %p124 = por %p122, %p123
    %s125 = ssub.s32 %s13, %s20
    %p126 = scmp.eq.s32.totalorder %s125, 0
    %s128 = sadd.s32 %s127, 1
    %s129 = scalar_select %p126, %s127, %s128
    %p132 = pneg %p126
    %p133 = scmp.eq.s32.totalorder %s13, 2
    %p134 = por %p132, %p133
    %p135 = scmp.ne.s32.totalorder %s127, %s130
    %p136 = scmp.eq.s32.totalorder %s13, 0
    %p137 = por %p135, %p136
    %p138 = scmp.ne.s32.totalorder %s127, %s130
    %p139 = scmp.eq.s32.totalorder %s18, 2
    %p140 = por %p138, %p139
    %p141 = scmp.ne.s32.totalorder %s130, %s131
    %p142 = scmp.eq.s32.totalorder %s18, 0
    %p143 = por %p141, %p142
    %p144 = scmp.ne.s32.totalorder %s130, %s131
    %p145 = scmp.eq.s32.totalorder %s19, 2
    %p146 = por %p144, %p145
    %p148 = scmp.ne.s32.totalorder %s131, %s147
    %p149 = scmp.eq.s32.totalorder %s19, 0
    %p150 = por %p148, %p149
    %s151 = ssub.s32 %s13, %s20
    %p152 = scmp.eq.s32.totalorder %s151, 0
    %s154 = sadd.s32 %s153, 1
    %s155 = scalar_select %p152, %s153, %s154
    %p158 = pneg %p152
    %p159 = scmp.eq.s32.totalorder %s13, 2
    %p160 = por %p158, %p159
    %p161 = scmp.ne.s32.totalorder %s153, %s156
    %p162 = scmp.eq.s32.totalorder %s13, 0
    %p163 = por %p161, %p162
    %p164 = scmp.ne.s32.totalorder %s153, %s156
    %p165 = scmp.eq.s32.totalorder %s18, 2
    %p166 = por %p164, %p165
    %p167 = scmp.ne.s32.totalorder %s156, %s157
    %p168 = scmp.eq.s32.totalorder %s18, 0
    %p169 = por %p167, %p168
    %p170 = scmp.ne.s32.totalorder %s156, %s157
    %p171 = scmp.eq.s32.totalorder %s19, 2
    %p172 = por %p170, %p171
    %p174 = scmp.ne.s32.totalorder %s157, %s173
    %p175 = scmp.eq.s32.totalorder %s19, 0
    %p176 = por %p174, %p175
    %s177 = ssub.s32 %s13, %s20
    %p178 = scmp.eq.s32.totalorder %s177, 0
    %s180 = sadd.s32 %s179, 1
    %s181 = scalar_select %p178, %s179, %s180
    %p184 = pneg %p178
    %p185 = scmp.eq.s32.totalorder %s13, 2
    %p186 = por %p184, %p185
    %p187 = scmp.ne.s32.totalorder %s179, %s182
    %p188 = scmp.eq.s32.totalorder %s13, 0
    %p189 = por %p187, %p188
    %p190 = scmp.ne.s32.totalorder %s179, %s182
    %p191 = scmp.eq.s32.totalorder %s18, 2
    %p192 = por %p190, %p191
    %p193 = scmp.ne.s32.totalorder %s182, %s183
    %p194 = scmp.eq.s32.totalorder %s18, 0
    %p195 = por %p193, %p194
    %p196 = scmp.ne.s32.totalorder %s182, %s183
    %p197 = scmp.eq.s32.totalorder %s19, 2
    %p198 = por %p196, %p197
    %p200 = scmp.ne.s32.totalorder %s183, %s199
    %p201 = scmp.eq.s32.totalorder %s19, 0
    %p202 = por %p200, %p201
    %s203 = ssub.s32 %s13, %s20
    %p204 = scmp.eq.s32.totalorder %s203, 0
    %s206 = sadd.s32 %s205, 1
    %s207 = scalar_select %p204, %s205, %s206
    %p210 = pneg %p204
    %p211 = scmp.eq.s32.totalorder %s13, 2
    %p212 = por %p210, %p211
    %p213 = scmp.ne.s32.totalorder %s205, %s208
    %p214 = scmp.eq.s32.totalorder %s13, 0
    %p215 = por %p213, %p214
    %p216 = scmp.ne.s32.totalorder %s205, %s208
    %p217 = scmp.eq.s32.totalorder %s18, 2
    %p218 = por %p216, %p217
    %p219 = scmp.ne.s32.totalorder %s208, %s209
    %p220 = scmp.eq.s32.totalorder %s18, 0
    %p221 = por %p219, %p220
    %p222 = scmp.ne.s32.totalorder %s208, %s209
    %p223 = scmp.eq.s32.totalorder %s19, 2
    %p224 = por %p222, %p223
    %p226 = scmp.ne.s32.totalorder %s209, %s225
    %p227 = scmp.eq.s32.totalorder %s19, 0
    %p228 = por %p226, %p227
    %p229 = scmp.le.s32.totalorder 1, %s13
    %p230 = scmp.lt.s32.totalorder %s13, 4
    %p231 = pnand %p229, %p230
    %p232 = pneg %p231
    // Predicated region
    $region9: #{spatial_temporal_forward.3} parent=5 // pred_check
      _
    $region10: #{spatial_temporal_forward.3} parent=5 // pred_check_branch
      %234 = sbr.rel (%p231) target = $region12
    $region11: #{spatial_temporal_forward.3} parent=5 // pred_region
      %s235 = ssub.s32 %s13, 1
    $region12: #{spatial_temporal_forward.3} parent=5 // pred_fallthru
      _
    %p236 = scmp.lt.s32.totalorder %s13, 3
    // Predicated region
    $region13: #{spatial_temporal_forward.3} parent=5 // pred_check
      %p237 = pneg %p236
    $region14: #{spatial_temporal_forward.3} parent=5 // pred_check_branch
      %239 = sbr.rel (%p237) target = $region16
    $region15: #{spatial_temporal_forward.3} parent=5 // pred_region
      // Predicated region
      $region17: #{spatial_temporal_forward.3} parent=15 // pred_check
        %p240 = pneg %p33
      $region18: #{spatial_temporal_forward.3} parent=15 // pred_check_branch
        %242 = sbr.rel (%p240) target = $region20
      $region19: #{spatial_temporal_forward.3} parent=15 // pred_region
        %p243 = scmp.lt.s32.totalorder %s13, 2
        %s244 = scalar_select %p243, %s13, 2
        %s245 = smul.addr %s244, 4
        %s246 = scalar_lea.vmem %s0, %s245
      $region20: #{spatial_temporal_forward.3} parent=15 // pred_fallthru
        _
      // Predicated region
      $region21: #{spatial_temporal_forward.3} parent=15 // pred_check
        %p247 = pneg %p59
      $region22: #{spatial_temporal_forward.3} parent=15 // pred_check_branch
        %249 = sbr.rel (%p247) target = $region24
      $region23: #{spatial_temporal_forward.3} parent=15 // pred_region
        %p250 = scmp.lt.s32.totalorder %s13, 2
        %s251 = scalar_select %p250, %s13, 2
        %s252 = smul.addr %s251, 64
        %s253 = smul.addr %s252, 4
        %s254 = scalar_lea.vmem %s1, %s253
      $region24: #{spatial_temporal_forward.3} parent=15 // pred_fallthru
        _
      // Predicated region
      $region25: #{spatial_temporal_forward.3} parent=15 // pred_check
        %p255 = pneg %p85
      $region26: #{spatial_temporal_forward.3} parent=15 // pred_check_branch
        %257 = sbr.rel (%p255) target = $region28
      $region27: #{spatial_temporal_forward.3} parent=15 // pred_region
        %p258 = scmp.lt.s32.totalorder %s13, 2
        %s259 = scalar_select %p258, %s13, 2
        %s260 = smul.addr %s259, 12
        %s261 = smul.addr %s260, 4
        %s262 = scalar_lea.vmem %s2, %s261
      $region28: #{spatial_temporal_forward.3} parent=15 // pred_fallthru
        _
      // Predicated region
      $region29: #{spatial_temporal_forward.3} parent=15 // pred_check
        %p263 = pneg %p111
      $region30: #{spatial_temporal_forward.3} parent=15 // pred_check_branch
        %265 = sbr.rel (%p263) target = $region32
      $region31: #{spatial_temporal_forward.3} parent=15 // pred_region
        %p266 = scmp.lt.s32.totalorder %s13, 2
        %s267 = scalar_select %p266, %s13, 2
        %s268 = smul.addr %s267, 12
        %s269 = smul.addr %s268, 4
        %s270 = scalar_lea.vmem %s3, %s269
      $region32: #{spatial_temporal_forward.3} parent=15 // pred_fallthru
        _
      // Predicated region
      $region33: #{spatial_temporal_forward.3} parent=15 // pred_check
        %p271 = pneg %p137
      $region34: #{spatial_temporal_forward.3} parent=15 // pred_check_branch
        %273 = sbr.rel (%p271) target = $region36
      $region35: #{spatial_temporal_forward.3} parent=15 // pred_region
        %p274 = scmp.lt.s32.totalorder %s13, 2
        %s275 = scalar_select %p274, %s13, 2
        %s276 = smul.addr %s275, 2
        %s277 = smul.addr %s276, 8
        %s278 = scalar_lea.vmem %s4, %s277
      $region36: #{spatial_temporal_forward.3} parent=15 // pred_fallthru
        _
      // Predicated region
      $region37: #{spatial_temporal_forward.3} parent=15 // pred_check
        %p279 = pneg %p163
      $region38: #{spatial_temporal_forward.3} parent=15 // pred_check_branch
        %281 = sbr.rel (%p279) target = $region40
      $region39: #{spatial_temporal_forward.3} parent=15 // pred_region
        %p282 = scmp.lt.s32.totalorder %s13, 2
        %s283 = scalar_select %p282, %s13, 2
        %s284 = smul.addr %s283, 4
        %s285 = smul.addr %s284, 4
        %s286 = scalar_lea.vmem %s5, %s285
      $region40: #{spatial_temporal_forward.3} parent=15 // pred_fallthru
        _
      // Predicated region
      $region41: #{spatial_temporal_forward.3} parent=15 // pred_check
        %p287 = pneg %p189
      $region42: #{spatial_temporal_forward.3} parent=15 // pred_check_branch
        %289 = sbr.rel (%p287) target = $region44
      $region43: #{spatial_temporal_forward.3} parent=15 // pred_region
        %p290 = scmp.lt.s32.totalorder %s13, 2
        %s291 = scalar_select %p290, %s13, 2
        %s292 = scalar_lea.vmem %s6, %s291
      $region44: #{spatial_temporal_forward.3} parent=15 // pred_fallthru
        _
    $region16: #{spatial_temporal_forward.3} parent=5 // pred_fallthru
      _
    %p293 = scmp.le.s32.totalorder 1, %s13
    %p294 = scmp.lt.s32.totalorder %s13, 4
    %p295 = pnand %p293, %p294
    %p296 = pneg %p295
    // Predicated region
    $region45: #{spatial_temporal_forward.3} parent=5 // pred_check
      _
    $region46: #{spatial_temporal_forward.3} parent=5 // pred_check_branch
      %298 = sbr.rel (%p295) target = $region48
    $region47: #{spatial_temporal_forward.3} parent=5 // pred_region
      %s299 = ssub.s32 %s13, 1
      %p300 = scmp.lt.s32.totalorder %s18, 2
      %s301 = scalar_select %p300, %s18, 2
      %s302 = smul.addr %s301, 4
      %s303 = scalar_lea.vmem %s0, %s302
      %p304 = pneg %p39
      %p305 = pneg %p36
      %p306 = scmp.lt.s32.totalorder %s18, 2
      %s307 = scalar_select %p306, %s18, 2
      %s308 = smul.addr %s307, 64
      %s309 = smul.addr %s308, 4
      %s310 = scalar_lea.vmem %s1, %s309
      %p311 = pneg %p65
      %p312 = pneg %p62
      %p313 = scmp.lt.s32.totalorder %s18, 2
      %s314 = scalar_select %p313, %s18, 2
      %s315 = smul.addr %s314, 12
      %s316 = smul.addr %s315, 4
      %s317 = scalar_lea.vmem %s2, %s316
      %p318 = pneg %p91
      %p319 = pneg %p88
      %p320 = scmp.lt.s32.totalorder %s18, 2
      %s321 = scalar_select %p320, %s18, 2
      %s322 = smul.addr %s321, 12
      %s323 = smul.addr %s322, 4
      %s324 = scalar_lea.vmem %s3, %s323
      %p325 = pneg %p117
      %p326 = pneg %p114
      %p327 = scmp.lt.s32.totalorder %s18, 2
      %s328 = scalar_select %p327, %s18, 2
      %s329 = smul.addr %s328, 2
      %s330 = smul.addr %s329, 8
      %s331 = scalar_lea.vmem %s4, %s330
      %p332 = pneg %p143
      %p333 = pneg %p140
      %p334 = scmp.lt.s32.totalorder %s18, 2
      %s335 = scalar_select %p334, %s18, 2
      %s336 = smul.addr %s335, 4
      %s337 = smul.addr %s336, 4
      %s338 = scalar_lea.vmem %s5, %s337
      %p339 = pneg %p169
      %p340 = pneg %p166
      %p341 = scmp.lt.s32.totalorder %s18, 2
      %s342 = scalar_select %p341, %s18, 2
      %s343 = scalar_lea.vmem %s6, %s342
      %p344 = pneg %p195
      %p345 = pneg %p192
      %p346 = pneg %p221
      %p347 = pneg %p218
      %p348 = scmp.lt.s32.totalorder %s18, 2
      %s349 = scalar_select %p348, %s18, 2
      %s350 = scalar_lea.vmem %s7, %s349
      %p351 = scmp.lt.s32.totalorder %s18, 2
      %s352 = scalar_select %p351, %s18, 2
      %s353 = smul.addr %s352, 4
      %s354 = scalar_lea.vmem %s0, %s353
      %p355 = scmp.lt.s32.totalorder %s18, 2
      %s356 = scalar_select %p355, %s18, 2
      %s357 = smul.addr %s356, 64
      %s358 = smul.addr %s357, 4
      %s359 = scalar_lea.vmem %s1, %s358
      %p360 = scmp.lt.s32.totalorder %s18, 2
      %s361 = scalar_select %p360, %s18, 2
      %s362 = smul.addr %s361, 12
      %s363 = smul.addr %s362, 4
      %s364 = scalar_lea.vmem %s2, %s363
      %p365 = scmp.lt.s32.totalorder %s18, 2
      %s366 = scalar_select %p365, %s18, 2
      %s367 = smul.addr %s366, 12
      %s368 = smul.addr %s367, 4
      %s369 = scalar_lea.vmem %s3, %s368
      %p370 = scmp.lt.s32.totalorder %s18, 2
      %s371 = scalar_select %p370, %s18, 2
      %s372 = smul.addr %s371, 2
      %s373 = smul.addr %s372, 8
      %s374 = scalar_lea.vmem %s4, %s373
      %p375 = scmp.lt.s32.totalorder %s18, 2
      %s376 = scalar_select %p375, %s18, 2
      %s377 = smul.addr %s376, 4
      %s378 = smul.addr %s377, 4
      %s379 = scalar_lea.vmem %s5, %s378
      %p380 = scmp.lt.s32.totalorder %s18, 2
      %s381 = scalar_select %p380, %s18, 2
      %s382 = scalar_lea.vmem %s6, %s381
      %p383 = scmp.lt.s32.totalorder %s18, 2
      %s384 = scalar_select %p383, %s18, 2
      %s385 = scalar_lea.vmem %s7, %s384
      %v387 = vld [vmem:[%s354] sm:$0xf]
      %v388 = vld [vmem:[%s374] sm:$0xff]
      %v389 = vld [vmem:[%s374 + $0x8] sm:$0xf]
      %v390 = vpack.c.bf16 %v387, %v387
      %v391 = vld [vmem:[%s359] sm:$0xf]
      %v392 = vld [vmem:[%s359 + $0x4] sm:$0xf]
      %v393 = vld [vmem:[%s359 + $0x8] sm:$0xf]
      %v394 = vld [vmem:[%s359 + $0xc] sm:$0xf]
      %v395 = vld [vmem:[%s359 + $0x10] sm:$0xf]
      %v396 = vld [vmem:[%s359 + $0x14] sm:$0xf]
      %v397 = vld [vmem:[%s359 + $0x18] sm:$0xf]
      %v398 = vld [vmem:[%s359 + $0x1c] sm:$0xf]
      %v399 = vld [vmem:[%s359 + $0x20] sm:$0xf]
      %v400 = vld [vmem:[%s359 + $0x24] sm:$0xf]
      %v401 = vld [vmem:[%s359 + $0x28] sm:$0xf]
      %v402 = vld [vmem:[%s359 + $0x2c] sm:$0xf]
      %v403 = vld [vmem:[%s359 + $0x30] sm:$0xf]
      %v404 = vld [vmem:[%s359 + $0x34] sm:$0xf]
      %v405 = vld [vmem:[%s359 + $0x38] sm:$0xf]
      %v406 = vld [vmem:[%s359 + $0x3c] sm:$0xf]
      %v423 = vunpack.c.l.b16 %v391
      %v424 = vunpack.c.l.b16 %v392
      %v425 = vunpack.c.l.b16 %v393
      %v426 = vunpack.c.l.b16 %v394
      %v427 = vunpack.c.l.b16 %v395
      %v428 = vunpack.c.l.b16 %v396
      %v429 = vunpack.c.l.b16 %v397
      %v430 = vunpack.c.l.b16 %v398
      %v431 = vunpack.c.l.b16 %v399
      %v432 = vunpack.c.l.b16 %v400
      %v433 = vunpack.c.l.b16 %v401
      %v434 = vunpack.c.l.b16 %v402
      %v435 = vunpack.c.l.b16 %v403
      %v436 = vunpack.c.l.b16 %v404
      %v437 = vunpack.c.l.b16 %v405
      %v438 = vunpack.c.l.b16 %v406
      %v439 = vpack.c.b16 %v424, %v423
      %v440 = vpack.c.b16 %v426, %v425
      %v441 = vpack.c.b16 %v428, %v427
      %v442 = vpack.c.b16 %v430, %v429
      %v443 = vpack.c.b16 %v432, %v431
      %v444 = vpack.c.b16 %v434, %v433
      %v445 = vpack.c.b16 %v436, %v435
      %v446 = vpack.c.b16 %v438, %v437
      %455 = vmatprep.subr.bf16.mxu0 0
      %456 = vmatpush1.bf16.msra.mxu0 %v446
      %457 = vmatprep.subr.bf16.mxu0 0
      %458 = vmatpush1.bf16.msra.mxu0 %v445
      %459 = vmatprep.subr.bf16.mxu0 0
      %460 = vmatpush1.bf16.msra.mxu0 %v444
      %461 = vmatprep.subr.bf16.mxu0 0
      %462 = vmatpush1.bf16.msra.mxu0 %v443
      %463 = vmatprep.subr.bf16.mxu0 0
      %464 = vmatpush1.bf16.msra.mxu0 %v442
      %465 = vmatprep.subr.bf16.mxu0 0
      %466 = vmatpush1.bf16.msra.mxu0 %v441
      %467 = vmatprep.subr.bf16.mxu0 0
      %468 = vmatpush1.bf16.msra.mxu0 %v440
      %469 = vmatprep.subr.bf16.mxu0 0
      %470 = vmatpush1.bf16.msra.mxu0 %v439
      %471 = vmatprep.subr.bf16.mxu0 0
      %472 = vmatpush2.bf16.msra.mxu0 0
      %473 = vmatprep.subr.bf16.mxu0 0
      %474 = vmatpush2.bf16.msra.mxu0 0
      %475 = vmatprep.subr.bf16.mxu0 0
      %476 = vmatpush2.bf16.msra.mxu0 0
      %477 = vmatprep.subr.bf16.mxu0 0
      %478 = vmatpush2.bf16.msra.mxu0 0
      %479 = vmatprep.subr.bf16.mxu0 0
      %480 = vmatpush2.bf16.msra.mxu0 0
      %481 = vmatprep.subr.bf16.mxu0 0
      %482 = vmatpush2.bf16.msra.mxu0 0
      %483 = vmatprep.subr.bf16.mxu0 0
      %484 = vmatpush2.bf16.msra.mxu0 0
      %485 = vmatprep.subr.bf16.mxu0 0
      %486 = vmatpush2.bf16.msra.mxu0 0
      %487 = vmatprep.mubr.bf16.mxu0 0
      %488 = vmatmul.mubr.bf16.gmra.mxu0 %v390
      %v489 = vpop.f32.mrf.mxu0
      %v490 = vadd.f32 0.0, %v489
      %v491 = vpop.f32.mrf.mxu0
      %v492 = vpop.f32.mrf.mxu0
      %v493 = vpop.f32.mrf.mxu0
      %494 = vdwg.mxu0
      %s495 = scalar_lea.vmem %s359, 64
      %v496 = vld [vmem:[%s495] sm:$0xf]
      %v497 = vld [vmem:[%s495 + $0x4] sm:$0xf]
      %v498 = vld [vmem:[%s495 + $0x8] sm:$0xf]
      %v499 = vld [vmem:[%s495 + $0xc] sm:$0xf]
      %v500 = vld [vmem:[%s495 + $0x10] sm:$0xf]
      %v501 = vld [vmem:[%s495 + $0x14] sm:$0xf]
      %v502 = vld [vmem:[%s495 + $0x18] sm:$0xf]
      %v503 = vld [vmem:[%s495 + $0x1c] sm:$0xf]
      %v504 = vld [vmem:[%s495 + $0x20] sm:$0xf]
      %v505 = vld [vmem:[%s495 + $0x24] sm:$0xf]
      %v506 = vld [vmem:[%s495 + $0x28] sm:$0xf]
      %v507 = vld [vmem:[%s495 + $0x2c] sm:$0xf]
      %v508 = vld [vmem:[%s495 + $0x30] sm:$0xf]
      %v509 = vld [vmem:[%s495 + $0x34] sm:$0xf]
      %v510 = vld [vmem:[%s495 + $0x38] sm:$0xf]
      %v511 = vld [vmem:[%s495 + $0x3c] sm:$0xf]
      %v528 = vunpack.c.l.b16 %v496
      %v529 = vunpack.c.l.b16 %v497
      %v530 = vunpack.c.l.b16 %v498
      %v531 = vunpack.c.l.b16 %v499
      %v532 = vunpack.c.l.b16 %v500
      %v533 = vunpack.c.l.b16 %v501
      %v534 = vunpack.c.l.b16 %v502
      %v535 = vunpack.c.l.b16 %v503
      %v536 = vunpack.c.l.b16 %v504
      %v537 = vunpack.c.l.b16 %v505
      %v538 = vunpack.c.l.b16 %v506
      %v539 = vunpack.c.l.b16 %v507
      %v540 = vunpack.c.l.b16 %v508
      %v541 = vunpack.c.l.b16 %v509
      %v542 = vunpack.c.l.b16 %v510
      %v543 = vunpack.c.l.b16 %v511
      %v544 = vpack.c.b16 %v529, %v528
      %v545 = vpack.c.b16 %v531, %v530
      %v546 = vpack.c.b16 %v533, %v532
      %v547 = vpack.c.b16 %v535, %v534
      %v548 = vpack.c.b16 %v537, %v536
      %v549 = vpack.c.b16 %v539, %v538
      %v550 = vpack.c.b16 %v541, %v540
      %v551 = vpack.c.b16 %v543, %v542
      %560 = vmatprep.subr.bf16.mxu0 0
      %561 = vmatpush1.bf16.msra.mxu0 %v551
      %562 = vmatprep.subr.bf16.mxu0 0
      %563 = vmatpush1.bf16.msra.mxu0 %v550
      %564 = vmatprep.subr.bf16.mxu0 0
      %565 = vmatpush1.bf16.msra.mxu0 %v549
      %566 = vmatprep.subr.bf16.mxu0 0
      %567 = vmatpush1.bf16.msra.mxu0 %v548
      %568 = vmatprep.subr.bf16.mxu0 0
      %569 = vmatpush1.bf16.msra.mxu0 %v547
      %570 = vmatprep.subr.bf16.mxu0 0
      %571 = vmatpush1.bf16.msra.mxu0 %v546
      %572 = vmatprep.subr.bf16.mxu0 0
      %573 = vmatpush1.bf16.msra.mxu0 %v545
      %574 = vmatprep.subr.bf16.mxu0 0
      %575 = vmatpush1.bf16.msra.mxu0 %v544
      %576 = vmatprep.subr.bf16.mxu0 0
      %577 = vmatpush2.bf16.msra.mxu0 0
      %578 = vmatprep.subr.bf16.mxu0 0
      %579 = vmatpush2.bf16.msra.mxu0 0
      %580 = vmatprep.subr.bf16.mxu0 0
      %581 = vmatpush2.bf16.msra.mxu0 0
      %582 = vmatprep.subr.bf16.mxu0 0
      %583 = vmatpush2.bf16.msra.mxu0 0
      %584 = vmatprep.subr.bf16.mxu0 0
      %585 = vmatpush2.bf16.msra.mxu0 0
      %586 = vmatprep.subr.bf16.mxu0 0
      %587 = vmatpush2.bf16.msra.mxu0 0
      %588 = vmatprep.subr.bf16.mxu0 0
      %589 = vmatpush2.bf16.msra.mxu0 0
      %590 = vmatprep.subr.bf16.mxu0 0
      %591 = vmatpush2.bf16.msra.mxu0 0
      %592 = vmatprep.mubr.bf16.mxu0 0
      %593 = vmatmul.mubr.bf16.gmra.mxu0 %v390
      %v594 = vpop.f32.mrf.mxu0
      %v595 = vadd.f32 0.0, %v594
      %v596 = vpop.f32.mrf.mxu0
      %v597 = vpop.f32.mrf.mxu0
      %v598 = vpop.f32.mrf.mxu0
      %599 = vdwg.mxu0
      %s600 = scalar_lea.vmem %s359, 128
      %v601 = vld [vmem:[%s600] sm:$0xf]
      %v602 = vld [vmem:[%s600 + $0x4] sm:$0xf]
      %v603 = vld [vmem:[%s600 + $0x8] sm:$0xf]
      %v604 = vld [vmem:[%s600 + $0xc] sm:$0xf]
      %v605 = vld [vmem:[%s600 + $0x10] sm:$0xf]
      %v606 = vld [vmem:[%s600 + $0x14] sm:$0xf]
      %v607 = vld [vmem:[%s600 + $0x18] sm:$0xf]
      %v608 = vld [vmem:[%s600 + $0x1c] sm:$0xf]
      %v609 = vld [vmem:[%s600 + $0x20] sm:$0xf]
      %v610 = vld [vmem:[%s600 + $0x24] sm:$0xf]
      %v611 = vld [vmem:[%s600 + $0x28] sm:$0xf]
      %v612 = vld [vmem:[%s600 + $0x2c] sm:$0xf]
      %v613 = vld [vmem:[%s600 + $0x30] sm:$0xf]
      %v614 = vld [vmem:[%s600 + $0x34] sm:$0xf]
      %v615 = vld [vmem:[%s600 + $0x38] sm:$0xf]
      %v616 = vld [vmem:[%s600 + $0x3c] sm:$0xf]
      %v633 = vunpack.c.l.b16 %v601
      %v634 = vunpack.c.l.b16 %v602
      %v635 = vunpack.c.l.b16 %v603
      %v636 = vunpack.c.l.b16 %v604
      %v637 = vunpack.c.l.b16 %v605
      %v638 = vunpack.c.l.b16 %v606
      %v639 = vunpack.c.l.b16 %v607
      %v640 = vunpack.c.l.b16 %v608
      %v641 = vunpack.c.l.b16 %v609
      %v642 = vunpack.c.l.b16 %v610
      %v643 = vunpack.c.l.b16 %v611
      %v644 = vunpack.c.l.b16 %v612
      %v645 = vunpack.c.l.b16 %v613
      %v646 = vunpack.c.l.b16 %v614
      %v647 = vunpack.c.l.b16 %v615
      %v648 = vunpack.c.l.b16 %v616
      %v649 = vpack.c.b16 %v634, %v633
      %v650 = vpack.c.b16 %v636, %v635
      %v651 = vpack.c.b16 %v638, %v637
      %v652 = vpack.c.b16 %v640, %v639
      %v653 = vpack.c.b16 %v642, %v641
      %v654 = vpack.c.b16 %v644, %v643
      %v655 = vpack.c.b16 %v646, %v645
      %v656 = vpack.c.b16 %v648, %v647
      %665 = vmatprep.subr.bf16.mxu0 0
      %666 = vmatpush1.bf16.msra.mxu0 %v656
      %667 = vmatprep.subr.bf16.mxu0 0
      %668 = vmatpush1.bf16.msra.mxu0 %v655
      %669 = vmatprep.subr.bf16.mxu0 0
      %670 = vmatpush1.bf16.msra.mxu0 %v654
      %671 = vmatprep.subr.bf16.mxu0 0
      %672 = vmatpush1.bf16.msra.mxu0 %v653
      %673 = vmatprep.subr.bf16.mxu0 0
      %674 = vmatpush1.bf16.msra.mxu0 %v652
      %675 = vmatprep.subr.bf16.mxu0 0
      %676 = vmatpush1.bf16.msra.mxu0 %v651
      %677 = vmatprep.subr.bf16.mxu0 0
      %678 = vmatpush1.bf16.msra.mxu0 %v650
      %679 = vmatprep.subr.bf16.mxu0 0
      %680 = vmatpush1.bf16.msra.mxu0 %v649
      %681 = vmatprep.subr.bf16.mxu0 0
      %682 = vmatpush2.bf16.msra.mxu0 0
      %683 = vmatprep.subr.bf16.mxu0 0
      %684 = vmatpush2.bf16.msra.mxu0 0
      %685 = vmatprep.subr.bf16.mxu0 0
      %686 = vmatpush2.bf16.msra.mxu0 0
      %687 = vmatprep.subr.bf16.mxu0 0
      %688 = vmatpush2.bf16.msra.mxu0 0
      %689 = vmatprep.subr.bf16.mxu0 0
      %690 = vmatpush2.bf16.msra.mxu0 0
      %691 = vmatprep.subr.bf16.mxu0 0
      %692 = vmatpush2.bf16.msra.mxu0 0
      %693 = vmatprep.subr.bf16.mxu0 0
      %694 = vmatpush2.bf16.msra.mxu0 0
      %695 = vmatprep.subr.bf16.mxu0 0
      %696 = vmatpush2.bf16.msra.mxu0 0
      %697 = vmatprep.mubr.bf16.mxu0 0
      %698 = vmatmul.mubr.bf16.gmra.mxu0 %v390
      %v699 = vpop.f32.mrf.mxu0
      %v700 = vadd.f32 0.0, %v699
      %v701 = vpop.f32.mrf.mxu0
      %v702 = vpop.f32.mrf.mxu0
      %v703 = vpop.f32.mrf.mxu0
      %704 = vdwg.mxu0
      %s705 = scalar_lea.vmem %s359, 192
      %v706 = vld [vmem:[%s705] sm:$0xf]
      %v707 = vld [vmem:[%s705 + $0x4] sm:$0xf]
      %v708 = vld [vmem:[%s705 + $0x8] sm:$0xf]
      %v709 = vld [vmem:[%s705 + $0xc] sm:$0xf]
      %v710 = vld [vmem:[%s705 + $0x10] sm:$0xf]
      %v711 = vld [vmem:[%s705 + $0x14] sm:$0xf]
      %v712 = vld [vmem:[%s705 + $0x18] sm:$0xf]
      %v713 = vld [vmem:[%s705 + $0x1c] sm:$0xf]
      %v714 = vld [vmem:[%s705 + $0x20] sm:$0xf]
      %v715 = vld [vmem:[%s705 + $0x24] sm:$0xf]
      %v716 = vld [vmem:[%s705 + $0x28] sm:$0xf]
      %v717 = vld [vmem:[%s705 + $0x2c] sm:$0xf]
      %v718 = vld [vmem:[%s705 + $0x30] sm:$0xf]
      %v719 = vld [vmem:[%s705 + $0x34] sm:$0xf]
      %v720 = vld [vmem:[%s705 + $0x38] sm:$0xf]
      %v721 = vld [vmem:[%s705 + $0x3c] sm:$0xf]
      %v738 = vunpack.c.l.b16 %v706
      %v739 = vunpack.c.l.b16 %v707
      %v740 = vunpack.c.l.b16 %v708
      %v741 = vunpack.c.l.b16 %v709
      %v742 = vunpack.c.l.b16 %v710
      %v743 = vunpack.c.l.b16 %v711
      %v744 = vunpack.c.l.b16 %v712
      %v745 = vunpack.c.l.b16 %v713
      %v746 = vunpack.c.l.b16 %v714
      %v747 = vunpack.c.l.b16 %v715
      %v748 = vunpack.c.l.b16 %v716
      %v749 = vunpack.c.l.b16 %v717
      %v750 = vunpack.c.l.b16 %v718
      %v751 = vunpack.c.l.b16 %v719
      %v752 = vunpack.c.l.b16 %v720
      %v753 = vunpack.c.l.b16 %v721
      %v754 = vpack.c.b16 %v739, %v738
      %v755 = vpack.c.b16 %v741, %v740
      %v756 = vpack.c.b16 %v743, %v742
      %v757 = vpack.c.b16 %v745, %v744
      %v758 = vpack.c.b16 %v747, %v746
      %v759 = vpack.c.b16 %v749, %v748
      %v760 = vpack.c.b16 %v751, %v750
      %v761 = vpack.c.b16 %v753, %v752
      %770 = vmatprep.subr.bf16.mxu0 0
      %771 = vmatpush1.bf16.msra.mxu0 %v761
      %772 = vmatprep.subr.bf16.mxu0 0
      %773 = vmatpush1.bf16.msra.mxu0 %v760
      %774 = vmatprep.subr.bf16.mxu0 0
      %775 = vmatpush1.bf16.msra.mxu0 %v759
      %776 = vmatprep.subr.bf16.mxu0 0
      %777 = vmatpush1.bf16.msra.mxu0 %v758
      %778 = vmatprep.subr.bf16.mxu0 0
      %779 = vmatpush1.bf16.msra.mxu0 %v757
      %780 = vmatprep.subr.bf16.mxu0 0
      %781 = vmatpush1.bf16.msra.mxu0 %v756
      %782 = vmatprep.subr.bf16.mxu0 0
      %783 = vmatpush1.bf16.msra.mxu0 %v755
      %784 = vmatprep.subr.bf16.mxu0 0
      %785 = vmatpush1.bf16.msra.mxu0 %v754
      %786 = vmatprep.subr.bf16.mxu0 0
      %787 = vmatpush2.bf16.msra.mxu0 0
      %788 = vmatprep.subr.bf16.mxu0 0
      %789 = vmatpush2.bf16.msra.mxu0 0
      %790 = vmatprep.subr.bf16.mxu0 0
      %791 = vmatpush2.bf16.msra.mxu0 0
      %792 = vmatprep.subr.bf16.mxu0 0
      %793 = vmatpush2.bf16.msra.mxu0 0
      %794 = vmatprep.subr.bf16.mxu0 0
      %795 = vmatpush2.bf16.msra.mxu0 0
      %796 = vmatprep.subr.bf16.mxu0 0
      %797 = vmatpush2.bf16.msra.mxu0 0
      %798 = vmatprep.subr.bf16.mxu0 0
      %799 = vmatpush2.bf16.msra.mxu0 0
      %800 = vmatprep.subr.bf16.mxu0 0
      %801 = vmatpush2.bf16.msra.mxu0 0
      %802 = vmatprep.mubr.bf16.mxu0 0
      %803 = vmatmul.mubr.bf16.gmra.mxu0 %v390
      %v804 = vpop.f32.mrf.mxu0
      %v805 = vadd.f32 0.0, %v804
      %v806 = vpop.f32.mrf.mxu0
      %v807 = vpop.f32.mrf.mxu0
      %v808 = vpop.f32.mrf.mxu0
      %809 = vdwg.mxu0
      %v810 = vmul.f32 %v388, 0.0
      %v811 = vadd.f32 %v595, %v810
      %v813 = vrot.slane %v388, 2
      %v815 = vadd.f32 %v811, %v813
      %v816 = vxor.u32 %v815, 2147483648
      %v817 = vmul.f32 %v816, 1.442695
      %v818 = vpow.pop %v817
      %v819 = vadd.f32 %v818, 1.0
      %v820 = vrcp.pop %v819
      %v821 = vmul.f32 1.0, %v820
      %v822 = vmul.f32 %v821, 0.0
      %v823 = vsub.f32 1.0, %v821
      %v824 = vmul.f32 %v823, %v490
      %v825 = vadd.f32 %v822, %v824
      %v827 = vrot.slane %v810, 1
      %v829 = vadd.f32 %v700, %v827
      %v830 = vrot.slane %v388, 3
      %v832 = vadd.f32 %v829, %v830
      %v833 = vxor.u32 %v832, 2147483648
      %v834 = vmul.f32 %v833, 1.442695
      %v835 = vpow.pop %v834
      %v836 = vadd.f32 %v835, 1.0
      %v837 = vrcp.pop %v836
      %v838 = vmul.f32 1.0, %v837
      %v839 = vmul.f32 %v838, %v825
      %v840 = vsub.f32 1.0, %v838
      %v841 = vmul.f32 %v840, %v805
      %v842 = vmul.f32 %v841, 1.7320508
      %v843 = vadd.f32 %v839, %v842
      %v844 = vmul.f32 %v388, %v825
      %v846 = vrot.slane %v844, 7
      %v848 = vadd.f32 %v595, %v846
      %v849 = vrot.slane %v388, 1
      %v851 = vadd.f32 %v848, %v849
      %v852 = vxor.u32 %v851, 2147483648
      %v853 = vmul.f32 %v852, 1.442695
      %v854 = vpow.pop %v853
      %v855 = vadd.f32 %v854, 1.0
      %v856 = vrcp.pop %v855
      %v857 = vmul.f32 1.0, %v856
      %v859 = vrot.slane %v825, 7
      %v861 = vmul.f32 %v857, %v859
      %v862 = vsub.f32 1.0, %v857
      %v863 = vmul.f32 %v862, %v490
      %v864 = vadd.f32 %v861, %v863
      %v865 = vmul.f32 %v388, %v859
      %v866 = vadd.f32 %v700, %v865
      %v867 = vadd.f32 %v866, %v813
      %v868 = vxor.u32 %v867, 2147483648
      %v869 = vmul.f32 %v868, 1.442695
      %v870 = vpow.pop %v869
      %v871 = vadd.f32 %v870, 1.0
      %v872 = vrcp.pop %v871
      %v873 = vmul.f32 1.0, %v872
      %v874 = vmul.f32 %v873, %v864
      %v875 = vsub.f32 1.0, %v873
      %v876 = vmul.f32 %v875, %v805
      %v877 = vmul.f32 %v876, 1.7320508
      %v878 = vadd.f32 %v874, %v877
      %v880 = vrot.slane %v864, 1
      %v882 = vmul.f32 %v388, %v880
      %v884 = vrot.slane %v882, 6
      %v886 = vadd.f32 %v595, %v884
      %v887 = vadd.f32 %v886, %v388
      %v888 = vxor.u32 %v887, 2147483648
      %v889 = vmul.f32 %v888, 1.442695
      %v890 = vpow.pop %v889
      %v891 = vadd.f32 %v890, 1.0
      %v892 = vrcp.pop %v891
      %v893 = vmul.f32 1.0, %v892
      %v894 = vrot.slane %v864, 7
      %v896 = vmul.f32 %v893, %v894
      %v897 = vsub.f32 1.0, %v893
      %v898 = vmul.f32 %v897, %v490
      %v899 = vadd.f32 %v896, %v898
      %v900 = vmul.f32 %v388, %v864
      %v902 = vrot.slane %v900, 7
      %v904 = vadd.f32 %v700, %v902
      %v905 = vadd.f32 %v904, %v849
      %v906 = vxor.u32 %v905, 2147483648
      %v907 = vmul.f32 %v906, 1.442695
      %v908 = vpow.pop %v907
      %v909 = vadd.f32 %v908, 1.0
      %v910 = vrcp.pop %v909
      %v911 = vmul.f32 1.0, %v910
      %v912 = vmul.f32 %v911, %v899
      %v913 = vsub.f32 1.0, %v911
      %v914 = vmul.f32 %v913, %v805
      %v915 = vmul.f32 %v914, 1.7320508
      %v916 = vadd.f32 %v912, %v915
      %v918 = vrot.slane %v899, 2
      %v920 = vmul.f32 %v388, %v918
      %v922 = vrot.slane %v920, 5
      %v924 = vadd.f32 %v595, %v922
      %v925 = vrot.slane %v388, 7
      %v927 = vadd.f32 %v924, %v925
      %v928 = vxor.u32 %v927, 2147483648
      %v929 = vmul.f32 %v928, 1.442695
      %v930 = vpow.pop %v929
      %v931 = vadd.f32 %v930, 1.0
      %v932 = vrcp.pop %v931
      %v933 = vmul.f32 1.0, %v932
      %v934 = vrot.slane %v899, 7
      %v936 = vmul.f32 %v933, %v934
      %v937 = vsub.f32 1.0, %v933
      %v938 = vmul.f32 %v937, %v490
      %v939 = vadd.f32 %v936, %v938
      %v940 = vrot.slane %v899, 1
      %v942 = vmul.f32 %v388, %v940
      %v944 = vrot.slane %v942, 6
      %v946 = vadd.f32 %v700, %v944
      %v947 = vadd.f32 %v946, %v388
      %v948 = vxor.u32 %v947, 2147483648
      %v949 = vmul.f32 %v948, 1.442695
      %v950 = vpow.pop %v949
      %v951 = vadd.f32 %v950, 1.0
      %v952 = vrcp.pop %v951
      %v953 = vmul.f32 1.0, %v952
      %v954 = vmul.f32 %v953, %v939
      %v955 = vsub.f32 1.0, %v953
      %v956 = vmul.f32 %v955, %v805
      %v957 = vmul.f32 %v956, 1.7320508
      %v958 = vadd.f32 %v954, %v957
      %vm959 = vcmask 1040384
      %v960 = vsel %vm959, %v843, %v878
      %vm961 = vcmask 1041408
      %v962 = vsel %vm961, %v960, %v916
      %vm963 = vcmask 1042432
      %v964 = vsel %vm963, %v962, %v958
      %v965 = vpack.c.bf16 %v964, %v964
      %v966 = vld [vmem:[%s364] sm:$0xf]
      %v967 = vld [vmem:[%s364 + $0x4] sm:$0xf]
      %v968 = vld [vmem:[%s364 + $0x8] sm:$0xf]
      %v969 = vld [vmem:[%s364 + $0xc] sm:$0xf]
      %v974 = vunpack.c.l.b16 %v966
      %v975 = vunpack.c.l.b16 %v967
      %v976 = vunpack.c.l.b16 %v968
      %v977 = vunpack.c.l.b16 %v969
      %v978 = vpack.c.b16 %v975, %v974
      %v979 = vpack.c.b16 %v977, %v976
      %vm982 = vcmask 261120
      %v984 = vsel %vm982, %v965, 0
      %986 = vmatprep.subr.bf16.mxu0 0
      %987 = vmatpush1.bf16.msra.mxu0 0
      %988 = vmatprep.subr.bf16.mxu0 0
      %989 = vmatpush1.bf16.msra.mxu0 0
      %990 = vmatprep.subr.bf16.mxu0 0
      %991 = vmatpush1.bf16.msra.mxu0 0
      %992 = vmatprep.subr.bf16.mxu0 0
      %993 = vmatpush1.bf16.msra.mxu0 0
      %994 = vmatprep.subr.bf16.mxu0 0
      %995 = vmatpush1.bf16.msra.mxu0 0
      %996 = vmatprep.subr.bf16.mxu0 0
      %997 = vmatpush1.bf16.msra.mxu0 0
      %998 = vmatprep.subr.bf16.mxu0 0
      %999 = vmatpush1.bf16.msra.mxu0 %v979
      %1000 = vmatprep.subr.bf16.mxu0 0
      %1001 = vmatpush1.bf16.msra.mxu0 %v978
      %1002 = vmatprep.subr.bf16.mxu0 0
      %1003 = vmatpush2.bf16.msra.mxu0 0
      %1004 = vmatprep.subr.bf16.mxu0 0
      %1005 = vmatpush2.bf16.msra.mxu0 0
      %1006 = vmatprep.subr.bf16.mxu0 0
      %1007 = vmatpush2.bf16.msra.mxu0 0
      %1008 = vmatprep.subr.bf16.mxu0 0
      %1009 = vmatpush2.bf16.msra.mxu0 0
      %1010 = vmatprep.subr.bf16.mxu0 0
      %1011 = vmatpush2.bf16.msra.mxu0 0
      %1012 = vmatprep.subr.bf16.mxu0 0
      %1013 = vmatpush2.bf16.msra.mxu0 0
      %1014 = vmatprep.subr.bf16.mxu0 0
      %1015 = vmatpush2.bf16.msra.mxu0 0
      %1016 = vmatprep.subr.bf16.mxu0 0
      %1017 = vmatpush2.bf16.msra.mxu0 0
      %1018 = vmatprep.mubr.bf16.mxu0 0
      %1019 = vmatmul.mubr.bf16.gmra.mxu0 %v984
      %v1020 = vpop.f32.mrf.mxu0
      %v1021 = vadd.f32 0.0, %v1020
      %v1022 = vpop.f32.mrf.mxu0
      %v1023 = vpop.f32.mrf.mxu0
      %v1024 = vpop.f32.mrf.mxu0
      %1025 = vdwg.mxu0
      %s1026 = scalar_lea.vmem %s364, 16
      %v1027 = vld [vmem:[%s1026] sm:$0xf]
      %v1028 = vld [vmem:[%s1026 + $0x4] sm:$0xf]
      %v1029 = vld [vmem:[%s1026 + $0x8] sm:$0xf]
      %v1030 = vld [vmem:[%s1026 + $0xc] sm:$0xf]
      %v1035 = vunpack.c.l.b16 %v1027
      %v1036 = vunpack.c.l.b16 %v1028
      %v1037 = vunpack.c.l.b16 %v1029
      %v1038 = vunpack.c.l.b16 %v1030
      %v1039 = vpack.c.b16 %v1036, %v1035
      %v1040 = vpack.c.b16 %v1038, %v1037
      %1043 = vmatprep.subr.bf16.mxu0 0
      %1044 = vmatpush1.bf16.msra.mxu0 0
      %1045 = vmatprep.subr.bf16.mxu0 0
      %1046 = vmatpush1.bf16.msra.mxu0 0
      %1047 = vmatprep.subr.bf16.mxu0 0
      %1048 = vmatpush1.bf16.msra.mxu0 0
      %1049 = vmatprep.subr.bf16.mxu0 0
      %1050 = vmatpush1.bf16.msra.mxu0 0
      %1051 = vmatprep.subr.bf16.mxu0 0
      %1052 = vmatpush1.bf16.msra.mxu0 0
      %1053 = vmatprep.subr.bf16.mxu0 0
      %1054 = vmatpush1.bf16.msra.mxu0 0
      %1055 = vmatprep.subr.bf16.mxu0 0
      %1056 = vmatpush1.bf16.msra.mxu0 %v1040
      %1057 = vmatprep.subr.bf16.mxu0 0
      %1058 = vmatpush1.bf16.msra.mxu0 %v1039
      %1059 = vmatprep.subr.bf16.mxu0 0
      %1060 = vmatpush2.bf16.msra.mxu0 0
      %1061 = vmatprep.subr.bf16.mxu0 0
      %1062 = vmatpush2.bf16.msra.mxu0 0
      %1063 = vmatprep.subr.bf16.mxu0 0
      %1064 = vmatpush2.bf16.msra.mxu0 0
      %1065 = vmatprep.subr.bf16.mxu0 0
      %1066 = vmatpush2.bf16.msra.mxu0 0
      %1067 = vmatprep.subr.bf16.mxu0 0
      %1068 = vmatpush2.bf16.msra.mxu0 0
      %1069 = vmatprep.subr.bf16.mxu0 0
      %1070 = vmatpush2.bf16.msra.mxu0 0
      %1071 = vmatprep.subr.bf16.mxu0 0
      %1072 = vmatpush2.bf16.msra.mxu0 0
      %1073 = vmatprep.subr.bf16.mxu0 0
      %1074 = vmatpush2.bf16.msra.mxu0 0
      %1075 = vmatprep.mubr.bf16.mxu0 0
      %1076 = vmatmul.mubr.bf16.gmra.mxu0 %v984
      %v1077 = vpop.f32.mrf.mxu0
      %v1078 = vadd.f32 0.0, %v1077
      %v1079 = vpop.f32.mrf.mxu0
      %v1080 = vpop.f32.mrf.mxu0
      %v1081 = vpop.f32.mrf.mxu0
      %1082 = vdwg.mxu0
      %s1083 = scalar_lea.vmem %s364, 32
      %v1084 = vld [vmem:[%s1083] sm:$0xf]
      %v1085 = vld [vmem:[%s1083 + $0x4] sm:$0xf]
      %v1086 = vld [vmem:[%s1083 + $0x8] sm:$0xf]
      %v1087 = vld [vmem:[%s1083 + $0xc] sm:$0xf]
      %v1092 = vunpack.c.l.b16 %v1084
      %v1093 = vunpack.c.l.b16 %v1085
      %v1094 = vunpack.c.l.b16 %v1086
      %v1095 = vunpack.c.l.b16 %v1087
      %v1096 = vpack.c.b16 %v1093, %v1092
      %v1097 = vpack.c.b16 %v1095, %v1094
      %1100 = vmatprep.subr.bf16.mxu0 0
      %1101 = vmatpush1.bf16.msra.mxu0 0
      %1102 = vmatprep.subr.bf16.mxu0 0
      %1103 = vmatpush1.bf16.msra.mxu0 0
      %1104 = vmatprep.subr.bf16.mxu0 0
      %1105 = vmatpush1.bf16.msra.mxu0 0
      %1106 = vmatprep.subr.bf16.mxu0 0
      %1107 = vmatpush1.bf16.msra.mxu0 0
      %1108 = vmatprep.subr.bf16.mxu0 0
      %1109 = vmatpush1.bf16.msra.mxu0 0
      %1110 = vmatprep.subr.bf16.mxu0 0
      %1111 = vmatpush1.bf16.msra.mxu0 0
      %1112 = vmatprep.subr.bf16.mxu0 0
      %1113 = vmatpush1.bf16.msra.mxu0 %v1097
      %1114 = vmatprep.subr.bf16.mxu0 0
      %1115 = vmatpush1.bf16.msra.mxu0 %v1096
      %1116 = vmatprep.subr.bf16.mxu0 0
      %1117 = vmatpush2.bf16.msra.mxu0 0
      %1118 = vmatprep.subr.bf16.mxu0 0
      %1119 = vmatpush2.bf16.msra.mxu0 0
      %1120 = vmatprep.subr.bf16.mxu0 0
      %1121 = vmatpush2.bf16.msra.mxu0 0
      %1122 = vmatprep.subr.bf16.mxu0 0
      %1123 = vmatpush2.bf16.msra.mxu0 0
      %1124 = vmatprep.subr.bf16.mxu0 0
      %1125 = vmatpush2.bf16.msra.mxu0 0
      %1126 = vmatprep.subr.bf16.mxu0 0
      %1127 = vmatpush2.bf16.msra.mxu0 0
      %1128 = vmatprep.subr.bf16.mxu0 0
      %1129 = vmatpush2.bf16.msra.mxu0 0
      %1130 = vmatprep.subr.bf16.mxu0 0
      %1131 = vmatpush2.bf16.msra.mxu0 0
      %1132 = vmatprep.mubr.bf16.mxu0 0
      %1133 = vmatmul.mubr.bf16.gmra.mxu0 %v984
      %v1134 = vpop.f32.mrf.mxu0
      %v1135 = vadd.f32 0.0, %v1134
      %v1136 = vpop.f32.mrf.mxu0
      %v1137 = vpop.f32.mrf.mxu0
      %v1138 = vpop.f32.mrf.mxu0
      %1139 = vdwg.mxu0
      %v1140 = vrot.slane %v810, 4
      %v1142 = vadd.f32 %v1078, %v1140
      %v1143 = vrot.slane %v388, 6
      %v1145 = vadd.f32 %v1142, %v1143
      %v1146 = vxor.u32 %v1145, 2147483648
      %v1147 = vmul.f32 %v1146, 1.442695
      %v1148 = vpow.pop %v1147
      %v1149 = vadd.f32 %v1148, 1.0
      %v1150 = vrcp.pop %v1149
      %v1151 = vmul.f32 1.0, %v1150
      %v1152 = vmul.f32 %v1151, 0.0
      %v1153 = vsub.f32 1.0, %v1151
      %v1154 = vmul.f32 %v1153, %v1021
      %v1155 = vadd.f32 %v1152, %v1154
      %v1156 = vrot.slane %v810, 5
      %v1158 = vadd.f32 %v1135, %v1156
      %v1159 = vadd.f32 %v1158, %v925
      %v1160 = vxor.u32 %v1159, 2147483648
      %v1161 = vmul.f32 %v1160, 1.442695
      %v1162 = vpow.pop %v1161
      %v1163 = vadd.f32 %v1162, 1.0
      %v1164 = vrcp.pop %v1163
      %v1165 = vmul.f32 1.0, %v1164
      %v1166 = vmul.f32 %v1165, %v1155
      %v1167 = vsub.f32 1.0, %v1165
      %v1168 = vmul.f32 %v1167, %v964
      %v1169 = vmul.f32 %v1168, 1.7320508
      %v1170 = vadd.f32 %v1166, %v1169
      %v1172 = vrot.slane %v1155, 4
      %v1174 = vmul.f32 %v388, %v1172
      %v1176 = vrot.slane %v1174, 3
      %v1178 = vadd.f32 %v1078, %v1176
      %v1179 = vrot.slane %v388, 5
      %v1181 = vadd.f32 %v1178, %v1179
      %v1182 = vxor.u32 %v1181, 2147483648
      %v1183 = vmul.f32 %v1182, 1.442695
      %v1184 = vpow.pop %v1183
      %v1185 = vadd.f32 %v1184, 1.0
      %v1186 = vrcp.pop %v1185
      %v1187 = vmul.f32 1.0, %v1186
      %v1188 = vrot.slane %v1155, 7
      %v1190 = vmul.f32 %v1187, %v1188
      %v1191 = vsub.f32 1.0, %v1187
      %v1192 = vmul.f32 %v1191, %v1021
      %v1193 = vadd.f32 %v1190, %v1192
      %v1194 = vrot.slane %v1155, 3
      %v1196 = vmul.f32 %v388, %v1194
      %v1198 = vrot.slane %v1196, 4
      %v1200 = vadd.f32 %v1135, %v1198
      %v1201 = vadd.f32 %v1200, %v1143
      %v1202 = vxor.u32 %v1201, 2147483648
      %v1203 = vmul.f32 %v1202, 1.442695
      %v1204 = vpow.pop %v1203
      %v1205 = vadd.f32 %v1204, 1.0
      %v1206 = vrcp.pop %v1205
      %v1207 = vmul.f32 1.0, %v1206
      %v1208 = vmul.f32 %v1207, %v1193
      %v1209 = vsub.f32 1.0, %v1207
      %v1210 = vmul.f32 %v1209, %v964
      %v1211 = vmul.f32 %v1210, 1.7320508
      %v1212 = vadd.f32 %v1208, %v1211
      %v1214 = vrot.slane %v1193, 5
      %v1216 = vmul.f32 %v388, %v1214
      %v1218 = vrot.slane %v1216, 2
      %v1220 = vadd.f32 %v1078, %v1218
      %v1221 = vrot.slane %v388, 4
      %v1223 = vadd.f32 %v1220, %v1221
      %v1224 = vxor.u32 %v1223, 2147483648
      %v1225 = vmul.f32 %v1224, 1.442695
      %v1226 = vpow.pop %v1225
      %v1227 = vadd.f32 %v1226, 1.0
      %v1228 = vrcp.pop %v1227
      %v1229 = vmul.f32 1.0, %v1228
      %v1230 = vrot.slane %v1193, 7
      %v1232 = vmul.f32 %v1229, %v1230
      %v1233 = vsub.f32 1.0, %v1229
      %v1234 = vmul.f32 %v1233, %v1021
      %v1235 = vadd.f32 %v1232, %v1234
      %v1236 = vrot.slane %v1193, 4
      %v1238 = vmul.f32 %v388, %v1236
      %v1240 = vrot.slane %v1238, 3
      %v1242 = vadd.f32 %v1135, %v1240
      %v1243 = vadd.f32 %v1242, %v1179
      %v1244 = vxor.u32 %v1243, 2147483648
      %v1245 = vmul.f32 %v1244, 1.442695
      %v1246 = vpow.pop %v1245
      %v1247 = vadd.f32 %v1246, 1.0
      %v1248 = vrcp.pop %v1247
      %v1249 = vmul.f32 1.0, %v1248
      %v1250 = vmul.f32 %v1249, %v1235
      %v1251 = vsub.f32 1.0, %v1249
      %v1252 = vmul.f32 %v1251, %v964
      %v1253 = vmul.f32 %v1252, 1.7320508
      %v1254 = vadd.f32 %v1250, %v1253
      %v1256 = vrot.slane %v1235, 6
      %v1258 = vmul.f32 %v388, %v1256
      %v1260 = vrot.slane %v1258, 1
      %v1262 = vadd.f32 %v1078, %v1260
      %v1263 = vadd.f32 %v1262, %v830
      %v1264 = vxor.u32 %v1263, 2147483648
      %v1265 = vmul.f32 %v1264, 1.442695
      %v1266 = vpow.pop %v1265
      %v1267 = vadd.f32 %v1266, 1.0
      %v1268 = vrcp.pop %v1267
      %v1269 = vmul.f32 1.0, %v1268
      %v1270 = vrot.slane %v1235, 7
      %v1272 = vmul.f32 %v1269, %v1270
      %v1273 = vsub.f32 1.0, %v1269
      %v1274 = vmul.f32 %v1273, %v1021
      %v1275 = vadd.f32 %v1272, %v1274
      %v1276 = vrot.slane %v1235, 5
      %v1278 = vmul.f32 %v388, %v1276
      %v1280 = vrot.slane %v1278, 2
      %v1282 = vadd.f32 %v1135, %v1280
      %v1283 = vadd.f32 %v1282, %v1221
      %v1284 = vxor.u32 %v1283, 2147483648
      %v1285 = vmul.f32 %v1284, 1.442695
      %v1286 = vpow.pop %v1285
      %v1287 = vadd.f32 %v1286, 1.0
      %v1288 = vrcp.pop %v1287
      %v1289 = vmul.f32 1.0, %v1288
      %v1290 = vmul.f32 %v1289, %v1275
      %v1291 = vsub.f32 1.0, %v1289
      %v1292 = vmul.f32 %v1291, %v964
      %v1293 = vmul.f32 %v1292, 1.7320508
      %v1294 = vadd.f32 %v1290, %v1293
      %v1295 = vsel %vm959, %v1170, %v1212
      %v1296 = vsel %vm961, %v1295, %v1254
      %v1297 = vsel %vm963, %v1296, %v1294
      %v1298 = vpack.c.bf16 %v1297, %v1297
      %v1299 = vld [vmem:[%s369] sm:$0xf]
      %v1300 = vld [vmem:[%s369 + $0x4] sm:$0xf]
      %v1301 = vld [vmem:[%s369 + $0x8] sm:$0xf]
      %v1302 = vld [vmem:[%s369 + $0xc] sm:$0xf]
      %v1307 = vunpack.c.l.b16 %v1299
      %v1308 = vunpack.c.l.b16 %v1300
      %v1309 = vunpack.c.l.b16 %v1301
      %v1310 = vunpack.c.l.b16 %v1302
      %v1311 = vpack.c.b16 %v1308, %v1307
      %v1312 = vpack.c.b16 %v1310, %v1309
      %v1316 = vsel %vm982, %v1298, 0
      %1318 = vmatprep.subr.bf16.mxu0 0
      %1319 = vmatpush1.bf16.msra.mxu0 0
      %1320 = vmatprep.subr.bf16.mxu0 0
      %1321 = vmatpush1.bf16.msra.mxu0 0
      %1322 = vmatprep.subr.bf16.mxu0 0
      %1323 = vmatpush1.bf16.msra.mxu0 0
      %1324 = vmatprep.subr.bf16.mxu0 0
      %1325 = vmatpush1.bf16.msra.mxu0 0
      %1326 = vmatprep.subr.bf16.mxu0 0
      %1327 = vmatpush1.bf16.msra.mxu0 0
      %1328 = vmatprep.subr.bf16.mxu0 0
      %1329 = vmatpush1.bf16.msra.mxu0 0
      %1330 = vmatprep.subr.bf16.mxu0 0
      %1331 = vmatpush1.bf16.msra.mxu0 %v1312
      %1332 = vmatprep.subr.bf16.mxu0 0
      %1333 = vmatpush1.bf16.msra.mxu0 %v1311
      %1334 = vmatprep.subr.bf16.mxu0 0
      %1335 = vmatpush2.bf16.msra.mxu0 0
      %1336 = vmatprep.subr.bf16.mxu0 0
      %1337 = vmatpush2.bf16.msra.mxu0 0
      %1338 = vmatprep.subr.bf16.mxu0 0
      %1339 = vmatpush2.bf16.msra.mxu0 0
      %1340 = vmatprep.subr.bf16.mxu0 0
      %1341 = vmatpush2.bf16.msra.mxu0 0
      %1342 = vmatprep.subr.bf16.mxu0 0
      %1343 = vmatpush2.bf16.msra.mxu0 0
      %1344 = vmatprep.subr.bf16.mxu0 0
      %1345 = vmatpush2.bf16.msra.mxu0 0
      %1346 = vmatprep.subr.bf16.mxu0 0
      %1347 = vmatpush2.bf16.msra.mxu0 0
      %1348 = vmatprep.subr.bf16.mxu0 0
      %1349 = vmatpush2.bf16.msra.mxu0 0
      %1350 = vmatprep.mubr.bf16.mxu0 0
      %1351 = vmatmul.mubr.bf16.gmra.mxu0 %v1316
      %v1352 = vpop.f32.mrf.mxu0
      %v1353 = vadd.f32 0.0, %v1352
      %v1354 = vpop.f32.mrf.mxu0
      %v1355 = vpop.f32.mrf.mxu0
      %v1356 = vpop.f32.mrf.mxu0
      %1357 = vdwg.mxu0
      %s1358 = scalar_lea.vmem %s369, 16
      %v1359 = vld [vmem:[%s1358] sm:$0xf]
      %v1360 = vld [vmem:[%s1358 + $0x4] sm:$0xf]
      %v1361 = vld [vmem:[%s1358 + $0x8] sm:$0xf]
      %v1362 = vld [vmem:[%s1358 + $0xc] sm:$0xf]
      %v1367 = vunpack.c.l.b16 %v1359
      %v1368 = vunpack.c.l.b16 %v1360
      %v1369 = vunpack.c.l.b16 %v1361
      %v1370 = vunpack.c.l.b16 %v1362
      %v1371 = vpack.c.b16 %v1368, %v1367
      %v1372 = vpack.c.b16 %v1370, %v1369
      %1375 = vmatprep.subr.bf16.mxu0 0
      %1376 = vmatpush1.bf16.msra.mxu0 0
      %1377 = vmatprep.subr.bf16.mxu0 0
      %1378 = vmatpush1.bf16.msra.mxu0 0
      %1379 = vmatprep.subr.bf16.mxu0 0
      %1380 = vmatpush1.bf16.msra.mxu0 0
      %1381 = vmatprep.subr.bf16.mxu0 0
      %1382 = vmatpush1.bf16.msra.mxu0 0
      %1383 = vmatprep.subr.bf16.mxu0 0
      %1384 = vmatpush1.bf16.msra.mxu0 0
      %1385 = vmatprep.subr.bf16.mxu0 0
      %1386 = vmatpush1.bf16.msra.mxu0 0
      %1387 = vmatprep.subr.bf16.mxu0 0
      %1388 = vmatpush1.bf16.msra.mxu0 %v1372
      %1389 = vmatprep.subr.bf16.mxu0 0
      %1390 = vmatpush1.bf16.msra.mxu0 %v1371
      %1391 = vmatprep.subr.bf16.mxu0 0
      %1392 = vmatpush2.bf16.msra.mxu0 0
      %1393 = vmatprep.subr.bf16.mxu0 0
      %1394 = vmatpush2.bf16.msra.mxu0 0
      %1395 = vmatprep.subr.bf16.mxu0 0
      %1396 = vmatpush2.bf16.msra.mxu0 0
      %1397 = vmatprep.subr.bf16.mxu0 0
      %1398 = vmatpush2.bf16.msra.mxu0 0
      %1399 = vmatprep.subr.bf16.mxu0 0
      %1400 = vmatpush2.bf16.msra.mxu0 0
      %1401 = vmatprep.subr.bf16.mxu0 0
      %1402 = vmatpush2.bf16.msra.mxu0 0
      %1403 = vmatprep.subr.bf16.mxu0 0
      %1404 = vmatpush2.bf16.msra.mxu0 0
      %1405 = vmatprep.subr.bf16.mxu0 0
      %1406 = vmatpush2.bf16.msra.mxu0 0
      %1407 = vmatprep.mubr.bf16.mxu0 0
      %1408 = vmatmul.mubr.bf16.gmra.mxu0 %v1316
      %v1409 = vpop.f32.mrf.mxu0
      %v1410 = vadd.f32 0.0, %v1409
      %v1411 = vpop.f32.mrf.mxu0
      %v1412 = vpop.f32.mrf.mxu0
      %v1413 = vpop.f32.mrf.mxu0
      %1414 = vdwg.mxu0
      %s1415 = scalar_lea.vmem %s369, 32
      %v1416 = vld [vmem:[%s1415] sm:$0xf]
      %v1417 = vld [vmem:[%s1415 + $0x4] sm:$0xf]
      %v1418 = vld [vmem:[%s1415 + $0x8] sm:$0xf]
      %v1419 = vld [vmem:[%s1415 + $0xc] sm:$0xf]
      %v1424 = vunpack.c.l.b16 %v1416
      %v1425 = vunpack.c.l.b16 %v1417
      %v1426 = vunpack.c.l.b16 %v1418
      %v1427 = vunpack.c.l.b16 %v1419
      %v1428 = vpack.c.b16 %v1425, %v1424
      %v1429 = vpack.c.b16 %v1427, %v1426
      %1432 = vmatprep.subr.bf16.mxu0 0
      %1433 = vmatpush1.bf16.msra.mxu0 0
      %1434 = vmatprep.subr.bf16.mxu0 0
      %1435 = vmatpush1.bf16.msra.mxu0 0
      %1436 = vmatprep.subr.bf16.mxu0 0
      %1437 = vmatpush1.bf16.msra.mxu0 0
      %1438 = vmatprep.subr.bf16.mxu0 0
      %1439 = vmatpush1.bf16.msra.mxu0 0
      %1440 = vmatprep.subr.bf16.mxu0 0
      %1441 = vmatpush1.bf16.msra.mxu0 0
      %1442 = vmatprep.subr.bf16.mxu0 0
      %1443 = vmatpush1.bf16.msra.mxu0 0
      %1444 = vmatprep.subr.bf16.mxu0 0
      %1445 = vmatpush1.bf16.msra.mxu0 %v1429
      %1446 = vmatprep.subr.bf16.mxu0 0
      %1447 = vmatpush1.bf16.msra.mxu0 %v1428
      %1448 = vmatprep.subr.bf16.mxu0 0
      %1449 = vmatpush2.bf16.msra.mxu0 0
      %1450 = vmatprep.subr.bf16.mxu0 0
      %1451 = vmatpush2.bf16.msra.mxu0 0
      %1452 = vmatprep.subr.bf16.mxu0 0
      %1453 = vmatpush2.bf16.msra.mxu0 0
      %1454 = vmatprep.subr.bf16.mxu0 0
      %1455 = vmatpush2.bf16.msra.mxu0 0
      %1456 = vmatprep.subr.bf16.mxu0 0
      %1457 = vmatpush2.bf16.msra.mxu0 0
      %1458 = vmatprep.subr.bf16.mxu0 0
      %1459 = vmatpush2.bf16.msra.mxu0 0
      %1460 = vmatprep.subr.bf16.mxu0 0
      %1461 = vmatpush2.bf16.msra.mxu0 0
      %1462 = vmatprep.subr.bf16.mxu0 0
      %1463 = vmatpush2.bf16.msra.mxu0 0
      %1464 = vmatprep.mubr.bf16.mxu0 0
      %1465 = vmatmul.mubr.bf16.gmra.mxu0 %v1316
      %v1466 = vpop.f32.mrf.mxu0
      %v1467 = vadd.f32 0.0, %v1466
      %v1468 = vpop.f32.mrf.mxu0
      %v1469 = vpop.f32.mrf.mxu0
      %v1470 = vpop.f32.mrf.mxu0
      %1471 = vdwg.mxu0
      %v1472 = vmul.f32 %v389, 0.0
      %v1473 = vadd.f32 %v1410, %v1472
      %v1475 = vrot.slane %v389, 2
      %v1477 = vadd.f32 %v1473, %v1475
      %v1478 = vxor.u32 %v1477, 2147483648
      %v1479 = vmul.f32 %v1478, 1.442695
      %v1480 = vpow.pop %v1479
      %v1481 = vadd.f32 %v1480, 1.0
      %v1482 = vrcp.pop %v1481
      %v1483 = vmul.f32 1.0, %v1482
      %v1484 = vmul.f32 %v1483, 0.0
      %v1485 = vsub.f32 1.0, %v1483
      %v1486 = vmul.f32 %v1485, %v1353
      %v1487 = vadd.f32 %v1484, %v1486
      %v1489 = vrot.slane %v1472, 1
      %v1491 = vadd.f32 %v1467, %v1489
      %v1492 = vrot.slane %v389, 3
      %v1494 = vadd.f32 %v1491, %v1492
      %v1495 = vxor.u32 %v1494, 2147483648
      %v1496 = vmul.f32 %v1495, 1.442695
      %v1497 = vpow.pop %v1496
      %v1498 = vadd.f32 %v1497, 1.0
      %v1499 = vrcp.pop %v1498
      %v1500 = vmul.f32 1.0, %v1499
      %v1501 = vmul.f32 %v1500, %v1487
      %v1502 = vsub.f32 1.0, %v1500
      %v1503 = vmul.f32 %v1502, %v1297
      %v1504 = vmul.f32 %v1503, 1.7320508
      %v1505 = vadd.f32 %v1501, %v1504
      %v1506 = vmul.f32 %v389, %v1487
      %v1508 = vrot.slane %v1506, 7
      %v1510 = vadd.f32 %v1410, %v1508
      %v1511 = vrot.slane %v389, 1
      %v1513 = vadd.f32 %v1510, %v1511
      %v1514 = vxor.u32 %v1513, 2147483648
      %v1515 = vmul.f32 %v1514, 1.442695
      %v1516 = vpow.pop %v1515
      %v1517 = vadd.f32 %v1516, 1.0
      %v1518 = vrcp.pop %v1517
      %v1519 = vmul.f32 1.0, %v1518
      %v1521 = vrot.slane %v1487, 7
      %v1523 = vmul.f32 %v1519, %v1521
      %v1524 = vsub.f32 1.0, %v1519
      %v1525 = vmul.f32 %v1524, %v1353
      %v1526 = vadd.f32 %v1523, %v1525
      %v1527 = vmul.f32 %v389, %v1521
      %v1528 = vadd.f32 %v1467, %v1527
      %v1529 = vadd.f32 %v1528, %v1475
      %v1530 = vxor.u32 %v1529, 2147483648
      %v1531 = vmul.f32 %v1530, 1.442695
      %v1532 = vpow.pop %v1531
      %v1533 = vadd.f32 %v1532, 1.0
      %v1534 = vrcp.pop %v1533
      %v1535 = vmul.f32 1.0, %v1534
      %v1536 = vmul.f32 %v1535, %v1526
      %v1537 = vsub.f32 1.0, %v1535
      %v1538 = vmul.f32 %v1537, %v1297
      %v1539 = vmul.f32 %v1538, 1.7320508
      %v1540 = vadd.f32 %v1536, %v1539
      %v1542 = vrot.slane %v1526, 1
      %v1544 = vmul.f32 %v389, %v1542
      %v1546 = vrot.slane %v1544, 6
      %v1548 = vadd.f32 %v1410, %v1546
      %v1549 = vadd.f32 %v1548, %v389
      %v1550 = vxor.u32 %v1549, 2147483648
      %v1551 = vmul.f32 %v1550, 1.442695
      %v1552 = vpow.pop %v1551
      %v1553 = vadd.f32 %v1552, 1.0
      %v1554 = vrcp.pop %v1553
      %v1555 = vmul.f32 1.0, %v1554
      %v1556 = vrot.slane %v1526, 7
      %v1558 = vmul.f32 %v1555, %v1556
      %v1559 = vsub.f32 1.0, %v1555
      %v1560 = vmul.f32 %v1559, %v1353
      %v1561 = vadd.f32 %v1558, %v1560
      %v1562 = vmul.f32 %v389, %v1526
      %v1564 = vrot.slane %v1562, 7
      %v1566 = vadd.f32 %v1467, %v1564
      %v1567 = vadd.f32 %v1566, %v1511
      %v1568 = vxor.u32 %v1567, 2147483648
      %v1569 = vmul.f32 %v1568, 1.442695
      %v1570 = vpow.pop %v1569
      %v1571 = vadd.f32 %v1570, 1.0
      %v1572 = vrcp.pop %v1571
      %v1573 = vmul.f32 1.0, %v1572
      %v1574 = vmul.f32 %v1573, %v1561
      %v1575 = vsub.f32 1.0, %v1573
      %v1576 = vmul.f32 %v1575, %v1297
      %v1577 = vmul.f32 %v1576, 1.7320508
      %v1578 = vadd.f32 %v1574, %v1577
      %v1580 = vrot.slane %v1561, 2
      %v1582 = vmul.f32 %v389, %v1580
      %v1584 = vrot.slane %v1582, 5
      %v1586 = vadd.f32 %v1410, %v1584
      %v1587 = vrot.slane %v389, 7
      %v1589 = vadd.f32 %v1586, %v1587
      %v1590 = vxor.u32 %v1589, 2147483648
      %v1591 = vmul.f32 %v1590, 1.442695
      %v1592 = vpow.pop %v1591
      %v1593 = vadd.f32 %v1592, 1.0
      %v1594 = vrcp.pop %v1593
      %v1595 = vmul.f32 1.0, %v1594
      %v1596 = vrot.slane %v1561, 7
      %v1598 = vmul.f32 %v1595, %v1596
      %v1599 = vsub.f32 1.0, %v1595
      %v1600 = vmul.f32 %v1599, %v1353
      %v1601 = vadd.f32 %v1598, %v1600
      %v1602 = vrot.slane %v1561, 1
      %v1604 = vmul.f32 %v389, %v1602
      %v1606 = vrot.slane %v1604, 6
      %v1608 = vadd.f32 %v1467, %v1606
      %v1609 = vadd.f32 %v1608, %v389
      %v1610 = vxor.u32 %v1609, 2147483648
      %v1611 = vmul.f32 %v1610, 1.442695
      %v1612 = vpow.pop %v1611
      %v1613 = vadd.f32 %v1612, 1.0
      %v1614 = vrcp.pop %v1613
      %v1615 = vmul.f32 1.0, %v1614
      %v1616 = vmul.f32 %v1615, %v1601
      %v1617 = vsub.f32 1.0, %v1615
      %v1618 = vmul.f32 %v1617, %v1297
      %v1619 = vmul.f32 %v1618, 1.7320508
      %v1620 = vadd.f32 %v1616, %v1619
      %v1621 = vadd.f32 %v1505, 0.0
      %v1623 = vrot.slane %v1540, 1
      %v1625 = vadd.f32 %v1621, %v1623
      %v1627 = vrot.slane %v1578, 2
      %v1629 = vadd.f32 %v1625, %v1627
      %v1631 = vrot.slane %v1620, 3
      %v1633 = vadd.f32 %v1629, %v1631
      %v1634 = vmul.f32 %v1633, 0.25
      %v1635 = vpack.c.bf16 %v1634, %v1634
      %v1636 = vld [vmem:[%s379] sm:$0xf]
      %v1637 = vld [vmem:[%s379 + $0x4] sm:$0xf]
      %v1638 = vld [vmem:[%s379 + $0x8] sm:$0xf]
      %v1639 = vld [vmem:[%s379 + $0xc] sm:$0xf]
      %v1640 = vld [vmem:[%s382] sm:$0x1]
      %v1645 = vunpack.c.l.b16 %v1636
      %v1646 = vunpack.c.l.b16 %v1637
      %v1647 = vunpack.c.l.b16 %v1638
      %v1648 = vunpack.c.l.b16 %v1639
      %v1649 = vpack.c.b16 %v1646, %v1645
      %v1650 = vpack.c.b16 %v1648, %v1647
      %v1654 = vsel %vm982, %v1635, 0
      %1656 = vmatprep.subr.bf16.mxu0 0
      %1657 = vmatpush1.bf16.msra.mxu0 0
      %1658 = vmatprep.subr.bf16.mxu0 0
      %1659 = vmatpush1.bf16.msra.mxu0 0
      %1660 = vmatprep.subr.bf16.mxu0 0
      %1661 = vmatpush1.bf16.msra.mxu0 0
      %1662 = vmatprep.subr.bf16.mxu0 0
      %1663 = vmatpush1.bf16.msra.mxu0 0
      %1664 = vmatprep.subr.bf16.mxu0 0
      %1665 = vmatpush1.bf16.msra.mxu0 0
      %1666 = vmatprep.subr.bf16.mxu0 0
      %1667 = vmatpush1.bf16.msra.mxu0 0
      %1668 = vmatprep.subr.bf16.mxu0 0
      %1669 = vmatpush1.bf16.msra.mxu0 %v1650
      %1670 = vmatprep.subr.bf16.mxu0 0
      %1671 = vmatpush1.bf16.msra.mxu0 %v1649
      %1672 = vmatprep.subr.bf16.mxu0 0
      %1673 = vmatpush2.bf16.msra.mxu0 0
      %1674 = vmatprep.subr.bf16.mxu0 0
      %1675 = vmatpush2.bf16.msra.mxu0 0
      %1676 = vmatprep.subr.bf16.mxu0 0
      %1677 = vmatpush2.bf16.msra.mxu0 0
      %1678 = vmatprep.subr.bf16.mxu0 0
      %1679 = vmatpush2.bf16.msra.mxu0 0
      %1680 = vmatprep.subr.bf16.mxu0 0
      %1681 = vmatpush2.bf16.msra.mxu0 0
      %1682 = vmatprep.subr.bf16.mxu0 0
      %1683 = vmatpush2.bf16.msra.mxu0 0
      %1684 = vmatprep.subr.bf16.mxu0 0
      %1685 = vmatpush2.bf16.msra.mxu0 0
      %1686 = vmatprep.subr.bf16.mxu0 0
      %1687 = vmatpush2.bf16.msra.mxu0 0
      %1688 = vmatprep.mubr.bf16.mxu0 0
      %1689 = vmatmul.mubr.bf16.gmra.mxu0 %v1654
      %v1690 = vpop.f32.mrf.mxu0
      %v1691 = vadd.f32 %v1640, %v1690
      %v1692 = vpop.f32.mrf.mxu0
      %v1693 = vpop.f32.mrf.mxu0
      %v1694 = vpop.f32.mrf.mxu0
      %1695 = vdwg.mxu0
      %1696 = vst [vmem:[%s385] sm:$0x1] %v1691
      %p1697 = scmp.lt.s32.totalorder %s18, 2
      %s1698 = scalar_select %p1697, %s18, 2
      %s1699 = scalar_lea.vmem %s7, %s1698
      // Predicated region
      $region49: #{spatial_temporal_forward.3} parent=47 // pred_check
        %p1700 = pneg %p218
      $region50: #{spatial_temporal_forward.3} parent=47 // pred_check_branch
        %1702 = sbr.rel (%p1700) target = $region52
      $region51: #{spatial_temporal_forward.3} parent=47 // pred_region
        _
      $region52: #{spatial_temporal_forward.3} parent=47 // pred_fallthru
        _
    $region48: #{spatial_temporal_forward.3} parent=5 // pred_fallthru
      _
    %p1703 = scmp.le.s32.totalorder 2, %s13
    // Predicated region
    $region53: #{spatial_temporal_forward.3} parent=5 // pred_check
      %p1704 = pneg %p1703
    $region54: #{spatial_temporal_forward.3} parent=5 // pred_check_branch
      %1706 = sbr.rel (%p1704) target = $region56
    $region55: #{spatial_temporal_forward.3} parent=5 // pred_region
      %s1707 = ssub.s32 %s13, 2
      // Predicated region
      $region57: #{spatial_temporal_forward.3} parent=55 // pred_check
        %p1708 = pneg %p224
      $region58: #{spatial_temporal_forward.3} parent=55 // pred_check_branch
        %1710 = sbr.rel (%p1708) target = $region60
      $region59: #{spatial_temporal_forward.3} parent=55 // pred_region
        %p1711 = scmp.lt.s32.totalorder %s19, 2
        %s1712 = scalar_select %p1711, %s19, 2
        %s1713 = scalar_lea.vmem %s7, %s1712
      $region60: #{spatial_temporal_forward.3} parent=55 // pred_fallthru
        _
    $region56: #{spatial_temporal_forward.3} parent=5 // pred_fallthru
      _
  $region6: #{spatial_temporal_forward.3} parent=0 // loop_footer
    %s17 = sadd.s32 1, %s13
  $region7: #{spatial_temporal_forward.3} parent=0 // loop_footer_branch
    %12 = sbr.rel target = $region3
  $region8: #{spatial_temporal_forward.3} parent=0 // loop_exit
    _

</llo_original>
